<compile_context>
chip_gen: v6e
topology: v6e:2x2x1
jax: 0.10.0
libtpu: 0.0.40
codegen_flags: <defaults>
</compile_context>

<pallas_src>
import math
import functools

import jax
import jax.numpy as jnp
from jax.experimental import pallas as pl
from jax.experimental.pallas import tpu as pltpu


# ----------------------------- fused kernel -----------------------------

def _layernorm(h, gamma, beta, eps=1e-5):
    mu = jnp.mean(h, axis=-1, keepdims=True)
    d = h - mu
    var = jnp.mean(d * d, axis=-1, keepdims=True)
    return d * jax.lax.rsqrt(var + eps) * gamma + beta


def _encoder_forward(x, it, cfg):
    """Transformer encoder + two stacked bi-LSTMs (single time step), weights from `it`.

    Works both on kernel Refs (ref[...] loads) and on plain jnp arrays (arr[...] is a
    no-op view), so the same code doubles as the pure-JAX reference.
    """
    # positional encoding: after unsqueeze(0), x.size(0) == 1, so only pe[0] is added
    pe0 = next(it)[...]                                   # (1, E)
    x = x + pe0

    for _ in range(cfg["num_layers"]):
        w_attn = next(it)[...]; b_attn = next(it)[...]
        ln1_g = next(it)[...];  ln1_b = next(it)[...]
        w1 = next(it)[...];     b1 = next(it)[...]
        w2 = next(it)[...];     b2 = next(it)[...]
        ln2_g = next(it)[...];  ln2_b = next(it)[...]
        # S=1 => softmax over one key == 1 => attention == out_proj(V_proj(x)),
        # folded offline into one affine map.
        attn = jnp.dot(x, w_attn, preferred_element_type=jnp.float32) + b_attn
        x = _layernorm(x + attn, ln1_g, ln1_b)            # norm1(x + sa(x))
        h = jnp.maximum(jnp.dot(x, w1, preferred_element_type=jnp.float32) + b1, 0.0)
        ff = jnp.dot(h, w2, preferred_element_type=jnp.float32) + b2
        x = _layernorm(x + ff, ln2_g, ln2_b)              # norm2(x + ff(x))

    out = x
    # Single LSTM step from h0=c0=0 (torch gate order (i,f,g,o); f and W_hh contribute 0):
    #   c = sigmoid(i)*tanh(g);  h = sigmoid(o)*tanh(c)
    # Packed gate layout per layer: [i_f|i_b | g_f|g_b | o_f|o_b]  (width 6*hidden)
    for hidden, n_layers in ((cfg["lstm_hidden_size"], cfg["layer_dim"]),
                             (cfg["lstm_hidden_size2"], cfg["layer_dim"])):
        for _ in range(n_layers):
            w = next(it)[...]; b = next(it)[...]
            gates = jnp.dot(out, w, preferred_element_type=jnp.float32) + b
            h2 = 2 * hidden
            i = jax.nn.sigmoid(gates[:, 0:h2])
            g = jnp.tanh(gates[:, h2:2 * h2])
            o = jax.nn.sigmoid(gates[:, 2 * h2:3 * h2])
            out = o * jnp.tanh(i * g)                     # == [h_fwd || h_bwd]
    return out


def _combined_kernel(*refs, cfg_w, cfg_n, c1):
    out_ref, combined_ref = refs[-2], refs[-1]
    it = iter(refs[:-2])
    x_w = next(it)[...]
    x_n = next(it)[...]

    w_out = _encoder_forward(x_w, it, cfg_w)              # (seq, 2*h2_w)
    n_out = _encoder_forward(x_n, it, cfg_n)              # (seq, 2*h2_n)

    fc_w = next(it)[...];  fc_b = next(it)[...]
    fc2_w = next(it)[...]; fc2_b = next(it)[...]

    # combined = concat([w_out, n_out], -1); emit via two static-slice stores and split
    # the fc matmul instead of materializing an in-kernel lane concat.
    combined_ref[:, 0:c1] = w_out
    combined_ref[:, c1:] = n_out

    mid = (jnp.dot(w_out, fc_w[0:c1, :], preferred_element_type=jnp.float32)
           + jnp.dot(n_out, fc_w[c1:, :], preferred_element_type=jnp.float32)
           + fc_b)
    out_ref[...] = jnp.dot(mid, fc2_w, preferred_element_type=jnp.float32) + fc2_b


def combined_model(wdrvi, nmdi, params):
    cfg_w = params["wdrvi"]["cfg"]
    cfg_n = params["nmdi"]["cfg"]
    flat = ([wdrvi, nmdi]
            + params["wdrvi"]["flat"]
            + params["nmdi"]["flat"]
            + [params["fc_w_t"], params["fc_b"], params["fc2_w_t"], params["fc2_b"]])

    seq = wdrvi.shape[0]
    c1 = 2 * cfg_w["lstm_hidden_size2"]
    c2 = 2 * cfg_n["lstm_hidden_size2"]
    combined_dim = c1 + c2
    output_dim = params["fc2_w_t"].shape[1]

    kern = functools.partial(_combined_kernel, cfg_w=cfg_w, cfg_n=cfg_n, c1=c1)

    out, combined = pl.pallas_call(
        kern,
        out_shape=(jax.ShapeDtypeStruct((seq, output_dim), jnp.float32),
                   jax.ShapeDtypeStruct((seq, combined_dim), jnp.float32)),
        grid=(1,),
        in_specs=[pl.BlockSpec(a.shape, lambda i: (0, 0)) for a in flat],
        out_specs=(pl.BlockSpec((seq, output_dim), lambda i: (0, 0)),
                   pl.BlockSpec((seq, combined_dim), lambda i: (0, 0))),
        compiler_params=pltpu.CompilerParams(
            dimension_semantics=("arbitrary",),
            vmem_limit_bytes=32 * 1024 * 1024),
    )(*flat)

    # torch returns (out[:, -1, :], combined) with combined shaped (seq, 1, C);
    # the length-1 time axis is restored here (pure metadata reshape).
    return out, combined[:, None, :]


def combined_model_reference(wdrvi, nmdi, params):
    """Pure-JAX (no Pallas) reference — same math, used only for in-script validation."""
    w_out = _encoder_forward(wdrvi, iter(params["wdrvi"]["flat"]), params["wdrvi"]["cfg"])
    n_out = _encoder_forward(nmdi, iter(params["nmdi"]["flat"]), params["nmdi"]["cfg"])
    combined = jnp.concatenate([w_out, n_out], axis=-1)
    mid = combined @ params["fc_w_t"] + params["fc_b"]
    out = mid @ params["fc2_w_t"] + params["fc2_b"]
    return out, combined[:, None, :]


# ----------------------------- deterministic parameter init -----------------------------

def _init(key, shape, scale=0.05):
    return scale * jax.random.normal(key, shape, dtype=jnp.float32)


def positional_encoding(d_model, max_len=21):
    pe = jnp.zeros((max_len, d_model), dtype=jnp.float32)
    position = jnp.arange(0, max_len, dtype=jnp.float32)[:, None]
    div_term = jnp.exp(jnp.arange(0, d_model, 2, dtype=jnp.float32)
                       * (-math.log(10000.0) / d_model))
    pe = pe.at[:, 0::2].set(jnp.sin(position * div_term))
    if d_model % 2 == 0:
        pe = pe.at[:, 1::2].set(jnp.cos(position * div_term))
    else:
        pe = pe.at[:, 1::2].set(jnp.cos(position * div_term[:-1]))
    return pe  # (max_len, d_model)


def _pack_bilstm(key, d_in, hidden):
    """Pack fwd/bwd W_ih (minus forget gate) into one (d_in, 6*hidden) matmul weight."""
    ks = jax.random.split(key, 6)
    w_f = _init(ks[0], (4 * hidden, d_in))
    b_f = _init(ks[1], (4 * hidden,)) + _init(ks[2], (4 * hidden,))   # b_ih + b_hh
    w_b = _init(ks[3], (4 * hidden, d_in))
    b_b = _init(ks[4], (4 * hidden,)) + _init(ks[5], (4 * hidden,))

    def gate(w, b, g):  # torch gate order (i, f, g, o)
        return w[g * hidden:(g + 1) * hidden], b[g * hidden:(g + 1) * hidden]

    wi_f, bi_f = gate(w_f, b_f, 0); wg_f, bg_f = gate(w_f, b_f, 2); wo_f, bo_f = gate(w_f, b_f, 3)
    wi_b, bi_b = gate(w_b, b_b, 0); wg_b, bg_b = gate(w_b, b_b, 2); wo_b, bo_b = gate(w_b, b_b, 3)
    # forget gate dropped (multiplies c0 == 0); W_hh dropped (multiplies h0 == 0) — exact for T=1
    w_packed = jnp.concatenate([wi_f, wi_b, wg_f, wg_b, wo_f, wo_b], axis=0).T   # (d_in, 6h)
    b_packed = jnp.concatenate([bi_f, bi_b, bg_f, bg_b, bo_f, bo_b]).reshape(1, -1)
    return w_packed, b_packed


def make_encoder_params(key, *, input_size, nhead, lstm_input_size, num_layers,
                        lstm_hidden_size, lstm_hidden_size2, layer_dim,
                        dim_feedforward=2048, max_len=21):
    del nhead  # with seq-axis == 1 the per-head split/concat of V is an exact identity
    E = input_size
    keys = iter(jax.random.split(key, 16 * num_layers + 8))
    flat = [positional_encoding(E, max_len)[0:1, :]]      # pe[0] only

    for _ in range(num_layers):
        in_proj_w = _init(next(keys), (3 * E, E))         # MultiheadAttention in_proj_weight
        in_proj_b = _init(next(keys), (3 * E,))
        wv_t = in_proj_w[2 * E:, :].T                     # only V used (exact for S=1)
        bv = in_proj_b[2 * E:]
        wo_t = _init(next(keys), (E, E)).T
        bo = _init(next(keys), (E,))
        w_attn = wv_t @ wo_t                              # folded V-proj + out-proj
        b_attn = (bv @ wo_t + bo).reshape(1, E)
        w1_t = _init(next(keys), (dim_feedforward, E)).T
        b1 = _init(next(keys), (dim_feedforward,)).reshape(1, -1)
        w2_t = _init(next(keys), (E, dim_feedforward)).T
        b2 = _init(next(keys), (E,)).reshape(1, -1)
        flat += [w_attn, b_attn,
                 jnp.ones((1, E), jnp.float32), jnp.zeros((1, E), jnp.float32),
                 w1_t, b1, w2_t, b2,
                 jnp.ones((1, E), jnp.float32), jnp.zeros((1, E), jnp.float32)]

    for hidden, first_in in ((lstm_hidden_size, lstm_input_size),
                             (lstm_hidden_size2, 2 * lstm_hidden_size)):
        for l in range(layer_dim):
            d_in = first_in if l == 0 else 2 * hidden
            w_p, b_p = _pack_bilstm(next(keys), d_in, hidden)
            flat += [w_p, b_p]

    cfg = dict(input_size=E, num_layers=num_layers, layer_dim=layer_dim,
               lstm_hidden_size=lstm_hidden_size, lstm_hidden_size2=lstm_hidden_size2)
    return dict(cfg=cfg, flat=flat)


# ----------------------------- main -----------------------------

if __name__ == "__main__":
    # bidirectional_set = True (as in the torch script) -> bidirectional factor = 2
    wdrvi_cfg = dict(input_size=16, nhead=2, lstm_input_size=16, num_layers=1,
                     lstm_hidden_size=32, lstm_hidden_size2=16, layer_dim=1)
    nmdi_cfg = dict(input_size=16, nhead=2, lstm_input_size=16, num_layers=1,
                    lstm_hidden_size=32, lstm_hidden_size2=16, layer_dim=1)
    mid_dim, output_dim = 32, 4
    seq = 8

    root = jax.random.PRNGKey(0)
    k_w, k_n, k_fc, k_fc2, k_x1, k_x2 = jax.random.split(root, 6)

    params = dict(
        wdrvi=make_encoder_params(k_w, **wdrvi_cfg),
        nmdi=make_encoder_params(k_n, **nmdi_cfg),
    )
    combined_dim = wdrvi_cfg["lstm_hidden_size2"] * 2 + nmdi_cfg["lstm_hidden_size2"] * 2
    params["fc_w_t"] = _init(k_fc, (mid_dim, combined_dim)).T
    params["fc_b"] = _init(jax.random.fold_in(k_fc, 1), (mid_dim,)).reshape(1, -1)
    params["fc2_w_t"] = _init(k_fc2, (output_dim, mid_dim)).T
    params["fc2_b"] = _init(jax.random.fold_in(k_fc2, 1), (output_dim,)).reshape(1, -1)

    wdrvi = jax.random.normal(k_x1, (seq, wdrvi_cfg["input_size"]), dtype=jnp.float32)
    nmdi = jax.random.normal(k_x2, (seq, nmdi_cfg["input_size"]), dtype=jnp.float32)

    out, combined = combined_model(wdrvi, nmdi, params)
    jax.block_until_ready((out, combined))

    assert out.shape == (seq, output_dim)
    assert combined.shape == (seq, 1, combined_dim)
    assert bool(jnp.all(jnp.isfinite(out))) and bool(jnp.all(jnp.isfinite(combined)))

    # In-script correctness check against a pure-JAX reference of the same math.
    out_ref, combined_ref = combined_model_reference(wdrvi, nmdi, params)
    assert bool(jnp.allclose(out, out_ref, atol=1e-4, rtol=1e-4))
    assert bool(jnp.allclose(combined, combined_ref, atol=1e-4, rtol=1e-4))

    print("KERNEL_OK")
</pallas_src>

<mosaic_0001>
module attributes {stable_mosaic.version = 11 : i64} {
  func.func @_combined_kernel(%arg0: i32, %arg1: memref<8x16xf32, #tpu.memory_space<vmem>>, %arg2: memref<8x16xf32, #tpu.memory_space<vmem>>, %arg3: memref<1x16xf32, #tpu.memory_space<vmem>>, %arg4: memref<16x16xf32, #tpu.memory_space<vmem>>, %arg5: memref<1x16xf32, #tpu.memory_space<vmem>>, %arg6: memref<1x16xf32, #tpu.memory_space<vmem>>, %arg7: memref<1x16xf32, #tpu.memory_space<vmem>>, %arg8: memref<16x2048xf32, #tpu.memory_space<vmem>>, %arg9: memref<1x2048xf32, #tpu.memory_space<vmem>>, %arg10: memref<2048x16xf32, #tpu.memory_space<vmem>>, %arg11: memref<1x16xf32, #tpu.memory_space<vmem>>, %arg12: memref<1x16xf32, #tpu.memory_space<vmem>>, %arg13: memref<1x16xf32, #tpu.memory_space<vmem>>, %arg14: memref<16x192xf32, #tpu.memory_space<vmem>>, %arg15: memref<1x192xf32, #tpu.memory_space<vmem>>, %arg16: memref<64x96xf32, #tpu.memory_space<vmem>>, %arg17: memref<1x96xf32, #tpu.memory_space<vmem>>, %arg18: memref<1x16xf32, #tpu.memory_space<vmem>>, %arg19: memref<16x16xf32, #tpu.memory_space<vmem>>, %arg20: memref<1x16xf32, #tpu.memory_space<vmem>>, %arg21: memref<1x16xf32, #tpu.memory_space<vmem>>, %arg22: memref<1x16xf32, #tpu.memory_space<vmem>>, %arg23: memref<16x2048xf32, #tpu.memory_space<vmem>>, %arg24: memref<1x2048xf32, #tpu.memory_space<vmem>>, %arg25: memref<2048x16xf32, #tpu.memory_space<vmem>>, %arg26: memref<1x16xf32, #tpu.memory_space<vmem>>, %arg27: memref<1x16xf32, #tpu.memory_space<vmem>>, %arg28: memref<1x16xf32, #tpu.memory_space<vmem>>, %arg29: memref<16x192xf32, #tpu.memory_space<vmem>>, %arg30: memref<1x192xf32, #tpu.memory_space<vmem>>, %arg31: memref<64x96xf32, #tpu.memory_space<vmem>>, %arg32: memref<1x96xf32, #tpu.memory_space<vmem>>, %arg33: memref<64x32xf32, #tpu.memory_space<vmem>>, %arg34: memref<1x32xf32, #tpu.memory_space<vmem>>, %arg35: memref<32x4xf32, #tpu.memory_space<vmem>>, %arg36: memref<1x4xf32, #tpu.memory_space<vmem>>, %arg37: memref<8x4xf32, #tpu.memory_space<vmem>>, %arg38: memref<8x64xf32, #tpu.memory_space<vmem>>) attributes {dimension_semantics = [#tpu.dimension_semantics<arbitrary>], iteration_bounds = array<i64: 1>, scalar_prefetch = 0 : i64, scratch_operands = 0 : i64, tpu.core_type = #tpu.core_type<tc>, window_params = [{pipeline_mode = #tpu.pipeline_mode<synchronous>, transform_indices = @transform_0, window_bounds = array<i64: 8, 16>}, {pipeline_mode = #tpu.pipeline_mode<synchronous>, transform_indices = @transform_1, window_bounds = array<i64: 8, 16>}, {pipeline_mode = #tpu.pipeline_mode<synchronous>, transform_indices = @transform_2, window_bounds = array<i64: 1, 16>}, {pipeline_mode = #tpu.pipeline_mode<synchronous>, transform_indices = @transform_3, window_bounds = array<i64: 16, 16>}, {pipeline_mode = #tpu.pipeline_mode<synchronous>, transform_indices = @transform_4, window_bounds = array<i64: 1, 16>}, {pipeline_mode = #tpu.pipeline_mode<synchronous>, transform_indices = @transform_5, window_bounds = array<i64: 1, 16>}, {pipeline_mode = #tpu.pipeline_mode<synchronous>, transform_indices = @transform_6, window_bounds = array<i64: 1, 16>}, {pipeline_mode = #tpu.pipeline_mode<synchronous>, transform_indices = @transform_7, window_bounds = array<i64: 16, 2048>}, {pipeline_mode = #tpu.pipeline_mode<synchronous>, transform_indices = @transform_8, window_bounds = array<i64: 1, 2048>}, {pipeline_mode = #tpu.pipeline_mode<synchronous>, transform_indices = @transform_9, window_bounds = array<i64: 2048, 16>}, {pipeline_mode = #tpu.pipeline_mode<synchronous>, transform_indices = @transform_10, window_bounds = array<i64: 1, 16>}, {pipeline_mode = #tpu.pipeline_mode<synchronous>, transform_indices = @transform_11, window_bounds = array<i64: 1, 16>}, {pipeline_mode = #tpu.pipeline_mode<synchronous>, transform_indices = @transform_12, window_bounds = array<i64: 1, 16>}, {pipeline_mode = #tpu.pipeline_mode<synchronous>, transform_indices = @transform_13, window_bounds = array<i64: 16, 192>}, {pipeline_mode = #tpu.pipeline_mode<synchronous>, transform_indices = @transform_14, window_bounds = array<i64: 1, 192>}, {pipeline_mode = #tpu.pipeline_mode<synchronous>, transform_indices = @transform_15, window_bounds = array<i64: 64, 96>}, {pipeline_mode = #tpu.pipeline_mode<synchronous>, transform_indices = @transform_16, window_bounds = array<i64: 1, 96>}, {pipeline_mode = #tpu.pipeline_mode<synchronous>, transform_indices = @transform_17, window_bounds = array<i64: 1, 16>}, {pipeline_mode = #tpu.pipeline_mode<synchronous>, transform_indices = @transform_18, window_bounds = array<i64: 16, 16>}, {pipeline_mode = #tpu.pipeline_mode<synchronous>, transform_indices = @transform_19, window_bounds = array<i64: 1, 16>}, {pipeline_mode = #tpu.pipeline_mode<synchronous>, transform_indices = @transform_20, window_bounds = array<i64: 1, 16>}, {pipeline_mode = #tpu.pipeline_mode<synchronous>, transform_indices = @transform_21, window_bounds = array<i64: 1, 16>}, {pipeline_mode = #tpu.pipeline_mode<synchronous>, transform_indices = @transform_22, window_bounds = array<i64: 16, 2048>}, {pipeline_mode = #tpu.pipeline_mode<synchronous>, transform_indices = @transform_23, window_bounds = array<i64: 1, 2048>}, {pipeline_mode = #tpu.pipeline_mode<synchronous>, transform_indices = @transform_24, window_bounds = array<i64: 2048, 16>}, {pipeline_mode = #tpu.pipeline_mode<synchronous>, transform_indices = @transform_25, window_bounds = array<i64: 1, 16>}, {pipeline_mode = #tpu.pipeline_mode<synchronous>, transform_indices = @transform_26, window_bounds = array<i64: 1, 16>}, {pipeline_mode = #tpu.pipeline_mode<synchronous>, transform_indices = @transform_27, window_bounds = array<i64: 1, 16>}, {pipeline_mode = #tpu.pipeline_mode<synchronous>, transform_indices = @transform_28, window_bounds = array<i64: 16, 192>}, {pipeline_mode = #tpu.pipeline_mode<synchronous>, transform_indices = @transform_29, window_bounds = array<i64: 1, 192>}, {pipeline_mode = #tpu.pipeline_mode<synchronous>, transform_indices = @transform_30, window_bounds = array<i64: 64, 96>}, {pipeline_mode = #tpu.pipeline_mode<synchronous>, transform_indices = @transform_31, window_bounds = array<i64: 1, 96>}, {pipeline_mode = #tpu.pipeline_mode<synchronous>, transform_indices = @transform_32, window_bounds = array<i64: 64, 32>}, {pipeline_mode = #tpu.pipeline_mode<synchronous>, transform_indices = @transform_33, window_bounds = array<i64: 1, 32>}, {pipeline_mode = #tpu.pipeline_mode<synchronous>, transform_indices = @transform_34, window_bounds = array<i64: 32, 4>}, {pipeline_mode = #tpu.pipeline_mode<synchronous>, transform_indices = @transform_35, window_bounds = array<i64: 1, 4>}, {pipeline_mode = #tpu.pipeline_mode<synchronous>, transform_indices = @transform_36, window_bounds = array<i64: 8, 4>}, {pipeline_mode = #tpu.pipeline_mode<synchronous>, transform_indices = @transform_37, window_bounds = array<i64: 8, 64>}]} {
    %c0 = arith.constant 0 : index
    %c0_0 = arith.constant 0 : index
    %0 = vector.load %arg1[%c0, %c0_0] : memref<8x16xf32, #tpu.memory_space<vmem>>, vector<8x16xf32>
    %c0_1 = arith.constant 0 : index
    %c0_2 = arith.constant 0 : index
    %1 = vector.load %arg2[%c0_1, %c0_2] : memref<8x16xf32, #tpu.memory_space<vmem>>, vector<8x16xf32>
    %c0_3 = arith.constant 0 : index
    %c0_4 = arith.constant 0 : index
    %2 = vector.load %arg3[%c0_3, %c0_4] : memref<1x16xf32, #tpu.memory_space<vmem>>, vector<1x16xf32>
    %3 = vector.broadcast %2 : vector<1x16xf32> to vector<8x16xf32>
    %4 = arith.addf %0, %3 : vector<8x16xf32>
    %c0_5 = arith.constant 0 : index
    %c0_6 = arith.constant 0 : index
    %5 = vector.load %arg4[%c0_5, %c0_6] : memref<16x16xf32, #tpu.memory_space<vmem>>, vector<16x16xf32>
    %c0_7 = arith.constant 0 : index
    %c0_8 = arith.constant 0 : index
    %6 = vector.load %arg5[%c0_7, %c0_8] : memref<1x16xf32, #tpu.memory_space<vmem>>, vector<1x16xf32>
    %c0_9 = arith.constant 0 : index
    %c0_10 = arith.constant 0 : index
    %7 = vector.load %arg6[%c0_9, %c0_10] : memref<1x16xf32, #tpu.memory_space<vmem>>, vector<1x16xf32>
    %c0_11 = arith.constant 0 : index
    %c0_12 = arith.constant 0 : index
    %8 = vector.load %arg7[%c0_11, %c0_12] : memref<1x16xf32, #tpu.memory_space<vmem>>, vector<1x16xf32>
    %c0_13 = arith.constant 0 : index
    %c0_14 = arith.constant 0 : index
    %9 = vector.load %arg8[%c0_13, %c0_14] : memref<16x2048xf32, #tpu.memory_space<vmem>>, vector<16x2048xf32>
    %c0_15 = arith.constant 0 : index
    %c0_16 = arith.constant 0 : index
    %10 = vector.load %arg9[%c0_15, %c0_16] : memref<1x2048xf32, #tpu.memory_space<vmem>>, vector<1x2048xf32>
    %c0_17 = arith.constant 0 : index
    %c0_18 = arith.constant 0 : index
    %11 = vector.load %arg10[%c0_17, %c0_18] : memref<2048x16xf32, #tpu.memory_space<vmem>>, vector<2048x16xf32>
    %c0_19 = arith.constant 0 : index
    %c0_20 = arith.constant 0 : index
    %12 = vector.load %arg11[%c0_19, %c0_20] : memref<1x16xf32, #tpu.memory_space<vmem>>, vector<1x16xf32>
    %c0_21 = arith.constant 0 : index
    %c0_22 = arith.constant 0 : index
    %13 = vector.load %arg12[%c0_21, %c0_22] : memref<1x16xf32, #tpu.memory_space<vmem>>, vector<1x16xf32>
    %c0_23 = arith.constant 0 : index
    %c0_24 = arith.constant 0 : index
    %14 = vector.load %arg13[%c0_23, %c0_24] : memref<1x16xf32, #tpu.memory_space<vmem>>, vector<1x16xf32>
    %cst = arith.constant dense<0.000000e+00> : vector<8x16xf32>
    %15 = tpu.matmul %4, %5, %cst {dimension_numbers = #tpu.dot_dimension_numbers<[1], [0], [0], [1], [0, 0, 1, 1], [], []>} : vector<8x16xf32>, vector<16x16xf32>, vector<8x16xf32> -> vector<8x16xf32>
    %16 = vector.broadcast %6 : vector<1x16xf32> to vector<8x16xf32>
    %17 = arith.addf %15, %16 : vector<8x16xf32>
    %18 = arith.addf %4, %17 : vector<8x16xf32>
    %cst_25 = arith.constant dense<0.000000e+00> : vector<8xf32>
    %19 = vector.multi_reduction <add>, %18, %cst_25 [1] : vector<8x16xf32> to vector<8xf32>
    %20 = vector.shape_cast %19 : vector<8xf32> to vector<8x1xf32>
    %cst_26 = arith.constant 1.600000e+01 : f32
    %21 = vector.broadcast %cst_26 : f32 to vector<8x1xf32>
    %22 = arith.divf %20, %21 : vector<8x1xf32>
    %23 = vector.broadcast %22 : vector<8x1xf32> to vector<8x16xf32>
    %24 = arith.subf %18, %23 : vector<8x16xf32>
    %25 = arith.mulf %24, %24 : vector<8x16xf32>
    %cst_27 = arith.constant dense<0.000000e+00> : vector<8xf32>
    %26 = vector.multi_reduction <add>, %25, %cst_27 [1] : vector<8x16xf32> to vector<8xf32>
    %27 = vector.shape_cast %26 : vector<8xf32> to vector<8x1xf32>
    %cst_28 = arith.constant 1.600000e+01 : f32
    %28 = vector.broadcast %cst_28 : f32 to vector<8x1xf32>
    %29 = arith.divf %27, %28 : vector<8x1xf32>
    %cst_29 = arith.constant 9.99999974E-6 : f32
    %30 = vector.broadcast %cst_29 : f32 to vector<8x1xf32>
    %31 = arith.addf %29, %30 : vector<8x1xf32>
    %32 = math.rsqrt %31 : vector<8x1xf32>
    %33 = vector.broadcast %32 : vector<8x1xf32> to vector<8x16xf32>
    %34 = arith.mulf %24, %33 : vector<8x16xf32>
    %35 = vector.broadcast %7 : vector<1x16xf32> to vector<8x16xf32>
    %36 = arith.mulf %34, %35 : vector<8x16xf32>
    %37 = vector.broadcast %8 : vector<1x16xf32> to vector<8x16xf32>
    %38 = arith.addf %36, %37 : vector<8x16xf32>
    %cst_30 = arith.constant dense<0.000000e+00> : vector<8x2048xf32>
    %39 = tpu.matmul %38, %9, %cst_30 {dimension_numbers = #tpu.dot_dimension_numbers<[1], [0], [0], [1], [0, 0, 1, 1], [], []>} : vector<8x16xf32>, vector<16x2048xf32>, vector<8x2048xf32> -> vector<8x2048xf32>
    %40 = vector.broadcast %10 : vector<1x2048xf32> to vector<8x2048xf32>
    %41 = arith.addf %39, %40 : vector<8x2048xf32>
    %cst_31 = arith.constant 0.000000e+00 : f32
    %42 = vector.broadcast %cst_31 : f32 to vector<8x2048xf32>
    %43 = arith.maximumf %41, %42 : vector<8x2048xf32>
    %cst_32 = arith.constant dense<0.000000e+00> : vector<8x16xf32>
    %44 = tpu.matmul %43, %11, %cst_32 {dimension_numbers = #tpu.dot_dimension_numbers<[1], [0], [0], [1], [0, 0, 1, 1], [], []>} : vector<8x2048xf32>, vector<2048x16xf32>, vector<8x16xf32> -> vector<8x16xf32>
    %45 = vector.broadcast %12 : vector<1x16xf32> to vector<8x16xf32>
    %46 = arith.addf %44, %45 : vector<8x16xf32>
    %47 = arith.addf %38, %46 : vector<8x16xf32>
    %cst_33 = arith.constant dense<0.000000e+00> : vector<8xf32>
    %48 = vector.multi_reduction <add>, %47, %cst_33 [1] : vector<8x16xf32> to vector<8xf32>
    %49 = vector.shape_cast %48 : vector<8xf32> to vector<8x1xf32>
    %cst_34 = arith.constant 1.600000e+01 : f32
    %50 = vector.broadcast %cst_34 : f32 to vector<8x1xf32>
    %51 = arith.divf %49, %50 : vector<8x1xf32>
    %52 = vector.broadcast %51 : vector<8x1xf32> to vector<8x16xf32>
    %53 = arith.subf %47, %52 : vector<8x16xf32>
    %54 = arith.mulf %53, %53 : vector<8x16xf32>
    %cst_35 = arith.constant dense<0.000000e+00> : vector<8xf32>
    %55 = vector.multi_reduction <add>, %54, %cst_35 [1] : vector<8x16xf32> to vector<8xf32>
    %56 = vector.shape_cast %55 : vector<8xf32> to vector<8x1xf32>
    %cst_36 = arith.constant 1.600000e+01 : f32
    %57 = vector.broadcast %cst_36 : f32 to vector<8x1xf32>
    %58 = arith.divf %56, %57 : vector<8x1xf32>
    %cst_37 = arith.constant 9.99999974E-6 : f32
    %59 = vector.broadcast %cst_37 : f32 to vector<8x1xf32>
    %60 = arith.addf %58, %59 : vector<8x1xf32>
    %61 = math.rsqrt %60 : vector<8x1xf32>
    %62 = vector.broadcast %61 : vector<8x1xf32> to vector<8x16xf32>
    %63 = arith.mulf %53, %62 : vector<8x16xf32>
    %64 = vector.broadcast %13 : vector<1x16xf32> to vector<8x16xf32>
    %65 = arith.mulf %63, %64 : vector<8x16xf32>
    %66 = vector.broadcast %14 : vector<1x16xf32> to vector<8x16xf32>
    %67 = arith.addf %65, %66 : vector<8x16xf32>
    %c0_38 = arith.constant 0 : index
    %c0_39 = arith.constant 0 : index
    %68 = vector.load %arg14[%c0_38, %c0_39] : memref<16x192xf32, #tpu.memory_space<vmem>>, vector<16x192xf32>
    %c0_40 = arith.constant 0 : index
    %c0_41 = arith.constant 0 : index
    %69 = vector.load %arg15[%c0_40, %c0_41] : memref<1x192xf32, #tpu.memory_space<vmem>>, vector<1x192xf32>
    %cst_42 = arith.constant dense<0.000000e+00> : vector<8x192xf32>
    %70 = tpu.matmul %67, %68, %cst_42 {dimension_numbers = #tpu.dot_dimension_numbers<[1], [0], [0], [1], [0, 0, 1, 1], [], []>} : vector<8x16xf32>, vector<16x192xf32>, vector<8x192xf32> -> vector<8x192xf32>
    %71 = vector.broadcast %69 : vector<1x192xf32> to vector<8x192xf32>
    %72 = arith.addf %70, %71 : vector<8x192xf32>
    %73 = vector.extract_strided_slice %72 {offsets = [0, 0], sizes = [8, 64], strides = [1, 1]} : vector<8x192xf32> to vector<8x64xf32>
    %74 = arith.negf %73 : vector<8x64xf32>
    %75 = math.exp %74 : vector<8x64xf32>
    %cst_43 = arith.constant 1.000000e+00 : f32
    %76 = vector.broadcast %cst_43 : f32 to vector<8x64xf32>
    %77 = arith.addf %76, %75 : vector<8x64xf32>
    %78 = arith.divf %76, %77 : vector<8x64xf32>
    %79 = vector.extract_strided_slice %72 {offsets = [0, 64], sizes = [8, 64], strides = [1, 1]} : vector<8x192xf32> to vector<8x64xf32>
    %80 = math.tanh %79 : vector<8x64xf32>
    %81 = vector.extract_strided_slice %72 {offsets = [0, 128], sizes = [8, 64], strides = [1, 1]} : vector<8x192xf32> to vector<8x64xf32>
    %82 = arith.negf %81 : vector<8x64xf32>
    %83 = math.exp %82 : vector<8x64xf32>
    %cst_44 = arith.constant 1.000000e+00 : f32
    %84 = vector.broadcast %cst_44 : f32 to vector<8x64xf32>
    %85 = arith.addf %84, %83 : vector<8x64xf32>
    %86 = arith.divf %84, %85 : vector<8x64xf32>
    %87 = arith.mulf %78, %80 : vector<8x64xf32>
    %88 = math.tanh %87 : vector<8x64xf32>
    %89 = arith.mulf %86, %88 : vector<8x64xf32>
    %c0_45 = arith.constant 0 : index
    %c0_46 = arith.constant 0 : index
    %90 = vector.load %arg16[%c0_45, %c0_46] : memref<64x96xf32, #tpu.memory_space<vmem>>, vector<64x96xf32>
    %c0_47 = arith.constant 0 : index
    %c0_48 = arith.constant 0 : index
    %91 = vector.load %arg17[%c0_47, %c0_48] : memref<1x96xf32, #tpu.memory_space<vmem>>, vector<1x96xf32>
    %cst_49 = arith.constant dense<0.000000e+00> : vector<8x96xf32>
    %92 = tpu.matmul %89, %90, %cst_49 {dimension_numbers = #tpu.dot_dimension_numbers<[1], [0], [0], [1], [0, 0, 1, 1], [], []>} : vector<8x64xf32>, vector<64x96xf32>, vector<8x96xf32> -> vector<8x96xf32>
    %93 = vector.broadcast %91 : vector<1x96xf32> to vector<8x96xf32>
    %94 = arith.addf %92, %93 : vector<8x96xf32>
    %95 = vector.extract_strided_slice %94 {offsets = [0, 0], sizes = [8, 32], strides = [1, 1]} : vector<8x96xf32> to vector<8x32xf32>
    %96 = arith.negf %95 : vector<8x32xf32>
    %97 = math.exp %96 : vector<8x32xf32>
    %cst_50 = arith.constant 1.000000e+00 : f32
    %98 = vector.broadcast %cst_50 : f32 to vector<8x32xf32>
    %99 = arith.addf %98, %97 : vector<8x32xf32>
    %100 = arith.divf %98, %99 : vector<8x32xf32>
    %101 = vector.extract_strided_slice %94 {offsets = [0, 32], sizes = [8, 32], strides = [1, 1]} : vector<8x96xf32> to vector<8x32xf32>
    %102 = math.tanh %101 : vector<8x32xf32>
    %103 = vector.extract_strided_slice %94 {offsets = [0, 64], sizes = [8, 32], strides = [1, 1]} : vector<8x96xf32> to vector<8x32xf32>
    %104 = arith.negf %103 : vector<8x32xf32>
    %105 = math.exp %104 : vector<8x32xf32>
    %cst_51 = arith.constant 1.000000e+00 : f32
    %106 = vector.broadcast %cst_51 : f32 to vector<8x32xf32>
    %107 = arith.addf %106, %105 : vector<8x32xf32>
    %108 = arith.divf %106, %107 : vector<8x32xf32>
    %109 = arith.mulf %100, %102 : vector<8x32xf32>
    %110 = math.tanh %109 : vector<8x32xf32>
    %111 = arith.mulf %108, %110 : vector<8x32xf32>
    %c0_52 = arith.constant 0 : index
    %c0_53 = arith.constant 0 : index
    %112 = vector.load %arg18[%c0_52, %c0_53] : memref<1x16xf32, #tpu.memory_space<vmem>>, vector<1x16xf32>
    %113 = vector.broadcast %112 : vector<1x16xf32> to vector<8x16xf32>
    %114 = arith.addf %1, %113 : vector<8x16xf32>
    %c0_54 = arith.constant 0 : index
    %c0_55 = arith.constant 0 : index
    %115 = vector.load %arg19[%c0_54, %c0_55] : memref<16x16xf32, #tpu.memory_space<vmem>>, vector<16x16xf32>
    %c0_56 = arith.constant 0 : index
    %c0_57 = arith.constant 0 : index
    %116 = vector.load %arg20[%c0_56, %c0_57] : memref<1x16xf32, #tpu.memory_space<vmem>>, vector<1x16xf32>
    %c0_58 = arith.constant 0 : index
    %c0_59 = arith.constant 0 : index
    %117 = vector.load %arg21[%c0_58, %c0_59] : memref<1x16xf32, #tpu.memory_space<vmem>>, vector<1x16xf32>
    %c0_60 = arith.constant 0 : index
    %c0_61 = arith.constant 0 : index
    %118 = vector.load %arg22[%c0_60, %c0_61] : memref<1x16xf32, #tpu.memory_space<vmem>>, vector<1x16xf32>
    %c0_62 = arith.constant 0 : index
    %c0_63 = arith.constant 0 : index
    %119 = vector.load %arg23[%c0_62, %c0_63] : memref<16x2048xf32, #tpu.memory_space<vmem>>, vector<16x2048xf32>
    %c0_64 = arith.constant 0 : index
    %c0_65 = arith.constant 0 : index
    %120 = vector.load %arg24[%c0_64, %c0_65] : memref<1x2048xf32, #tpu.memory_space<vmem>>, vector<1x2048xf32>
    %c0_66 = arith.constant 0 : index
    %c0_67 = arith.constant 0 : index
    %121 = vector.load %arg25[%c0_66, %c0_67] : memref<2048x16xf32, #tpu.memory_space<vmem>>, vector<2048x16xf32>
    %c0_68 = arith.constant 0 : index
    %c0_69 = arith.constant 0 : index
    %122 = vector.load %arg26[%c0_68, %c0_69] : memref<1x16xf32, #tpu.memory_space<vmem>>, vector<1x16xf32>
    %c0_70 = arith.constant 0 : index
    %c0_71 = arith.constant 0 : index
    %123 = vector.load %arg27[%c0_70, %c0_71] : memref<1x16xf32, #tpu.memory_space<vmem>>, vector<1x16xf32>
    %c0_72 = arith.constant 0 : index
    %c0_73 = arith.constant 0 : index
    %124 = vector.load %arg28[%c0_72, %c0_73] : memref<1x16xf32, #tpu.memory_space<vmem>>, vector<1x16xf32>
    %cst_74 = arith.constant dense<0.000000e+00> : vector<8x16xf32>
    %125 = tpu.matmul %114, %115, %cst_74 {dimension_numbers = #tpu.dot_dimension_numbers<[1], [0], [0], [1], [0, 0, 1, 1], [], []>} : vector<8x16xf32>, vector<16x16xf32>, vector<8x16xf32> -> vector<8x16xf32>
    %126 = vector.broadcast %116 : vector<1x16xf32> to vector<8x16xf32>
    %127 = arith.addf %125, %126 : vector<8x16xf32>
    %128 = arith.addf %114, %127 : vector<8x16xf32>
    %cst_75 = arith.constant dense<0.000000e+00> : vector<8xf32>
    %129 = vector.multi_reduction <add>, %128, %cst_75 [1] : vector<8x16xf32> to vector<8xf32>
    %130 = vector.shape_cast %129 : vector<8xf32> to vector<8x1xf32>
    %cst_76 = arith.constant 1.600000e+01 : f32
    %131 = vector.broadcast %cst_76 : f32 to vector<8x1xf32>
    %132 = arith.divf %130, %131 : vector<8x1xf32>
    %133 = vector.broadcast %132 : vector<8x1xf32> to vector<8x16xf32>
    %134 = arith.subf %128, %133 : vector<8x16xf32>
    %135 = arith.mulf %134, %134 : vector<8x16xf32>
    %cst_77 = arith.constant dense<0.000000e+00> : vector<8xf32>
    %136 = vector.multi_reduction <add>, %135, %cst_77 [1] : vector<8x16xf32> to vector<8xf32>
    %137 = vector.shape_cast %136 : vector<8xf32> to vector<8x1xf32>
    %cst_78 = arith.constant 1.600000e+01 : f32
    %138 = vector.broadcast %cst_78 : f32 to vector<8x1xf32>
    %139 = arith.divf %137, %138 : vector<8x1xf32>
    %cst_79 = arith.constant 9.99999974E-6 : f32
    %140 = vector.broadcast %cst_79 : f32 to vector<8x1xf32>
    %141 = arith.addf %139, %140 : vector<8x1xf32>
    %142 = math.rsqrt %141 : vector<8x1xf32>
    %143 = vector.broadcast %142 : vector<8x1xf32> to vector<8x16xf32>
    %144 = arith.mulf %134, %143 : vector<8x16xf32>
    %145 = vector.broadcast %117 : vector<1x16xf32> to vector<8x16xf32>
    %146 = arith.mulf %144, %145 : vector<8x16xf32>
    %147 = vector.broadcast %118 : vector<1x16xf32> to vector<8x16xf32>
    %148 = arith.addf %146, %147 : vector<8x16xf32>
    %cst_80 = arith.constant dense<0.000000e+00> : vector<8x2048xf32>
    %149 = tpu.matmul %148, %119, %cst_80 {dimension_numbers = #tpu.dot_dimension_numbers<[1], [0], [0], [1], [0, 0, 1, 1], [], []>} : vector<8x16xf32>, vector<16x2048xf32>, vector<8x2048xf32> -> vector<8x2048xf32>
    %150 = vector.broadcast %120 : vector<1x2048xf32> to vector<8x2048xf32>
    %151 = arith.addf %149, %150 : vector<8x2048xf32>
    %cst_81 = arith.constant 0.000000e+00 : f32
    %152 = vector.broadcast %cst_81 : f32 to vector<8x2048xf32>
    %153 = arith.maximumf %151, %152 : vector<8x2048xf32>
    %cst_82 = arith.constant dense<0.000000e+00> : vector<8x16xf32>
    %154 = tpu.matmul %153, %121, %cst_82 {dimension_numbers = #tpu.dot_dimension_numbers<[1], [0], [0], [1], [0, 0, 1, 1], [], []>} : vector<8x2048xf32>, vector<2048x16xf32>, vector<8x16xf32> -> vector<8x16xf32>
    %155 = vector.broadcast %122 : vector<1x16xf32> to vector<8x16xf32>
    %156 = arith.addf %154, %155 : vector<8x16xf32>
    %157 = arith.addf %148, %156 : vector<8x16xf32>
    %cst_83 = arith.constant dense<0.000000e+00> : vector<8xf32>
    %158 = vector.multi_reduction <add>, %157, %cst_83 [1] : vector<8x16xf32> to vector<8xf32>
    %159 = vector.shape_cast %158 : vector<8xf32> to vector<8x1xf32>
    %cst_84 = arith.constant 1.600000e+01 : f32
    %160 = vector.broadcast %cst_84 : f32 to vector<8x1xf32>
    %161 = arith.divf %159, %160 : vector<8x1xf32>
    %162 = vector.broadcast %161 : vector<8x1xf32> to vector<8x16xf32>
    %163 = arith.subf %157, %162 : vector<8x16xf32>
    %164 = arith.mulf %163, %163 : vector<8x16xf32>
    %cst_85 = arith.constant dense<0.000000e+00> : vector<8xf32>
    %165 = vector.multi_reduction <add>, %164, %cst_85 [1] : vector<8x16xf32> to vector<8xf32>
    %166 = vector.shape_cast %165 : vector<8xf32> to vector<8x1xf32>
    %cst_86 = arith.constant 1.600000e+01 : f32
    %167 = vector.broadcast %cst_86 : f32 to vector<8x1xf32>
    %168 = arith.divf %166, %167 : vector<8x1xf32>
    %cst_87 = arith.constant 9.99999974E-6 : f32
    %169 = vector.broadcast %cst_87 : f32 to vector<8x1xf32>
    %170 = arith.addf %168, %169 : vector<8x1xf32>
    %171 = math.rsqrt %170 : vector<8x1xf32>
    %172 = vector.broadcast %171 : vector<8x1xf32> to vector<8x16xf32>
    %173 = arith.mulf %163, %172 : vector<8x16xf32>
    %174 = vector.broadcast %123 : vector<1x16xf32> to vector<8x16xf32>
    %175 = arith.mulf %173, %174 : vector<8x16xf32>
    %176 = vector.broadcast %124 : vector<1x16xf32> to vector<8x16xf32>
    %177 = arith.addf %175, %176 : vector<8x16xf32>
    %c0_88 = arith.constant 0 : index
    %c0_89 = arith.constant 0 : index
    %178 = vector.load %arg29[%c0_88, %c0_89] : memref<16x192xf32, #tpu.memory_space<vmem>>, vector<16x192xf32>
    %c0_90 = arith.constant 0 : index
    %c0_91 = arith.constant 0 : index
    %179 = vector.load %arg30[%c0_90, %c0_91] : memref<1x192xf32, #tpu.memory_space<vmem>>, vector<1x192xf32>
    %cst_92 = arith.constant dense<0.000000e+00> : vector<8x192xf32>
    %180 = tpu.matmul %177, %178, %cst_92 {dimension_numbers = #tpu.dot_dimension_numbers<[1], [0], [0], [1], [0, 0, 1, 1], [], []>} : vector<8x16xf32>, vector<16x192xf32>, vector<8x192xf32> -> vector<8x192xf32>
    %181 = vector.broadcast %179 : vector<1x192xf32> to vector<8x192xf32>
    %182 = arith.addf %180, %181 : vector<8x192xf32>
    %183 = vector.extract_strided_slice %182 {offsets = [0, 0], sizes = [8, 64], strides = [1, 1]} : vector<8x192xf32> to vector<8x64xf32>
    %184 = arith.negf %183 : vector<8x64xf32>
    %185 = math.exp %184 : vector<8x64xf32>
    %cst_93 = arith.constant 1.000000e+00 : f32
    %186 = vector.broadcast %cst_93 : f32 to vector<8x64xf32>
    %187 = arith.addf %186, %185 : vector<8x64xf32>
    %188 = arith.divf %186, %187 : vector<8x64xf32>
    %189 = vector.extract_strided_slice %182 {offsets = [0, 64], sizes = [8, 64], strides = [1, 1]} : vector<8x192xf32> to vector<8x64xf32>
    %190 = math.tanh %189 : vector<8x64xf32>
    %191 = vector.extract_strided_slice %182 {offsets = [0, 128], sizes = [8, 64], strides = [1, 1]} : vector<8x192xf32> to vector<8x64xf32>
    %192 = arith.negf %191 : vector<8x64xf32>
    %193 = math.exp %192 : vector<8x64xf32>
    %cst_94 = arith.constant 1.000000e+00 : f32
    %194 = vector.broadcast %cst_94 : f32 to vector<8x64xf32>
    %195 = arith.addf %194, %193 : vector<8x64xf32>
    %196 = arith.divf %194, %195 : vector<8x64xf32>
    %197 = arith.mulf %188, %190 : vector<8x64xf32>
    %198 = math.tanh %197 : vector<8x64xf32>
    %199 = arith.mulf %196, %198 : vector<8x64xf32>
    %c0_95 = arith.constant 0 : index
    %c0_96 = arith.constant 0 : index
    %200 = vector.load %arg31[%c0_95, %c0_96] : memref<64x96xf32, #tpu.memory_space<vmem>>, vector<64x96xf32>
    %c0_97 = arith.constant 0 : index
    %c0_98 = arith.constant 0 : index
    %201 = vector.load %arg32[%c0_97, %c0_98] : memref<1x96xf32, #tpu.memory_space<vmem>>, vector<1x96xf32>
    %cst_99 = arith.constant dense<0.000000e+00> : vector<8x96xf32>
    %202 = tpu.matmul %199, %200, %cst_99 {dimension_numbers = #tpu.dot_dimension_numbers<[1], [0], [0], [1], [0, 0, 1, 1], [], []>} : vector<8x64xf32>, vector<64x96xf32>, vector<8x96xf32> -> vector<8x96xf32>
    %203 = vector.broadcast %201 : vector<1x96xf32> to vector<8x96xf32>
    %204 = arith.addf %202, %203 : vector<8x96xf32>
    %205 = vector.extract_strided_slice %204 {offsets = [0, 0], sizes = [8, 32], strides = [1, 1]} : vector<8x96xf32> to vector<8x32xf32>
    %206 = arith.negf %205 : vector<8x32xf32>
    %207 = math.exp %206 : vector<8x32xf32>
    %cst_100 = arith.constant 1.000000e+00 : f32
    %208 = vector.broadcast %cst_100 : f32 to vector<8x32xf32>
    %209 = arith.addf %208, %207 : vector<8x32xf32>
    %210 = arith.divf %208, %209 : vector<8x32xf32>
    %211 = vector.extract_strided_slice %204 {offsets = [0, 32], sizes = [8, 32], strides = [1, 1]} : vector<8x96xf32> to vector<8x32xf32>
    %212 = math.tanh %211 : vector<8x32xf32>
    %213 = vector.extract_strided_slice %204 {offsets = [0, 64], sizes = [8, 32], strides = [1, 1]} : vector<8x96xf32> to vector<8x32xf32>
    %214 = arith.negf %213 : vector<8x32xf32>
    %215 = math.exp %214 : vector<8x32xf32>
    %cst_101 = arith.constant 1.000000e+00 : f32
    %216 = vector.broadcast %cst_101 : f32 to vector<8x32xf32>
    %217 = arith.addf %216, %215 : vector<8x32xf32>
    %218 = arith.divf %216, %217 : vector<8x32xf32>
    %219 = arith.mulf %210, %212 : vector<8x32xf32>
    %220 = math.tanh %219 : vector<8x32xf32>
    %221 = arith.mulf %218, %220 : vector<8x32xf32>
    %c0_102 = arith.constant 0 : index
    %c0_103 = arith.constant 0 : index
    %222 = vector.load %arg33[%c0_102, %c0_103] : memref<64x32xf32, #tpu.memory_space<vmem>>, vector<64x32xf32>
    %c0_104 = arith.constant 0 : index
    %c0_105 = arith.constant 0 : index
    %223 = vector.load %arg34[%c0_104, %c0_105] : memref<1x32xf32, #tpu.memory_space<vmem>>, vector<1x32xf32>
    %c0_106 = arith.constant 0 : index
    %c0_107 = arith.constant 0 : index
    %224 = vector.load %arg35[%c0_106, %c0_107] : memref<32x4xf32, #tpu.memory_space<vmem>>, vector<32x4xf32>
    %c0_108 = arith.constant 0 : index
    %c0_109 = arith.constant 0 : index
    %225 = vector.load %arg36[%c0_108, %c0_109] : memref<1x4xf32, #tpu.memory_space<vmem>>, vector<1x4xf32>
    %c0_110 = arith.constant 0 : index
    %c0_111 = arith.constant 0 : index
    %226 = vector.load %arg38[%c0_110, %c0_111] : memref<8x64xf32, #tpu.memory_space<vmem>>, vector<8x32xf32>
    tpu.vector_store %arg38[%c0_110, %c0_111], %111 {strides = array<i32>} : memref<8x64xf32, #tpu.memory_space<vmem>>, vector<8x32xf32>,
    %c0_112 = arith.constant 0 : index
    %c32 = arith.constant 32 : index
    %227 = vector.load %arg38[%c0_112, %c32] : memref<8x64xf32, #tpu.memory_space<vmem>>, vector<8x32xf32>
    tpu.vector_store %arg38[%c0_112, %c32], %221 {strides = array<i32>} : memref<8x64xf32, #tpu.memory_space<vmem>>, vector<8x32xf32>,
    %228 = vector.extract_strided_slice %222 {offsets = [0, 0], sizes = [32, 32], strides = [1, 1]} : vector<64x32xf32> to vector<32x32xf32>
    %cst_113 = arith.constant dense<0.000000e+00> : vector<8x32xf32>
    %229 = tpu.matmul %111, %228, %cst_113 {dimension_numbers = #tpu.dot_dimension_numbers<[1], [0], [0], [1], [0, 0, 1, 1], [], []>} : vector<8x32xf32>, vector<32x32xf32>, vector<8x32xf32> -> vector<8x32xf32>
    %230 = vector.extract_strided_slice %222 {offsets = [32, 0], sizes = [32, 32], strides = [1, 1]} : vector<64x32xf32> to vector<32x32xf32>
    %cst_114 = arith.constant dense<0.000000e+00> : vector<8x32xf32>
    %231 = tpu.matmul %221, %230, %cst_114 {dimension_numbers = #tpu.dot_dimension_numbers<[1], [0], [0], [1], [0, 0, 1, 1], [], []>} : vector<8x32xf32>, vector<32x32xf32>, vector<8x32xf32> -> vector<8x32xf32>
    %232 = arith.addf %229, %231 : vector<8x32xf32>
    %233 = vector.broadcast %223 : vector<1x32xf32> to vector<8x32xf32>
    %234 = arith.addf %232, %233 : vector<8x32xf32>
    %cst_115 = arith.constant dense<0.000000e+00> : vector<8x4xf32>
    %235 = tpu.matmul %234, %224, %cst_115 {dimension_numbers = #tpu.dot_dimension_numbers<[1], [0], [0], [1], [0, 0, 1, 1], [], []>} : vector<8x32xf32>, vector<32x4xf32>, vector<8x4xf32> -> vector<8x4xf32>
    %236 = vector.broadcast %225 : vector<1x4xf32> to vector<8x4xf32>
    %237 = arith.addf %235, %236 : vector<8x4xf32>
    %c0_116 = arith.constant 0 : index
    %c0_117 = arith.constant 0 : index
    %238 = vector.load %arg37[%c0_116, %c0_117] : memref<8x4xf32, #tpu.memory_space<vmem>>, vector<8x4xf32>
    tpu.vector_store %arg37[%c0_116, %c0_117], %237 {strides = array<i32>} : memref<8x4xf32, #tpu.memory_space<vmem>>, vector<8x4xf32>,
    return
  }
  func.func @transform_0(%arg0: i32) -> (i32, i32) {
    %c0_i32 = arith.constant 0 : i32
    %c0_i32_0 = arith.constant 0 : i32
    %c0_i32_1 = arith.constant 0 : i32
    return %c0_i32, %c0_i32_0 : i32, i32
  }
  func.func @transform_1(%arg0: i32) -> (i32, i32) {
    %c0_i32 = arith.constant 0 : i32
    %c0_i32_0 = arith.constant 0 : i32
    %c0_i32_1 = arith.constant 0 : i32
    return %c0_i32, %c0_i32_0 : i32, i32
  }
  func.func @transform_2(%arg0: i32) -> (i32, i32) {
    %c0_i32 = arith.constant 0 : i32
    %c0_i32_0 = arith.constant 0 : i32
    %c0_i32_1 = arith.constant 0 : i32
    return %c0_i32, %c0_i32_0 : i32, i32
  }
  func.func @transform_3(%arg0: i32) -> (i32, i32) {
    %c0_i32 = arith.constant 0 : i32
    %c0_i32_0 = arith.constant 0 : i32
    %c0_i32_1 = arith.constant 0 : i32
    return %c0_i32, %c0_i32_0 : i32, i32
  }
  func.func @transform_4(%arg0: i32) -> (i32, i32) {
    %c0_i32 = arith.constant 0 : i32
    %c0_i32_0 = arith.constant 0 : i32
    %c0_i32_1 = arith.constant 0 : i32
    return %c0_i32, %c0_i32_0 : i32, i32
  }
  func.func @transform_5(%arg0: i32) -> (i32, i32) {
    %c0_i32 = arith.constant 0 : i32
    %c0_i32_0 = arith.constant 0 : i32
    %c0_i32_1 = arith.constant 0 : i32
    return %c0_i32, %c0_i32_0 : i32, i32
  }
  func.func @transform_6(%arg0: i32) -> (i32, i32) {
    %c0_i32 = arith.constant 0 : i32
    %c0_i32_0 = arith.constant 0 : i32
    %c0_i32_1 = arith.constant 0 : i32
    return %c0_i32, %c0_i32_0 : i32, i32
  }
  func.func @transform_7(%arg0: i32) -> (i32, i32) {
    %c0_i32 = arith.constant 0 : i32
    %c0_i32_0 = arith.constant 0 : i32
    %c0_i32_1 = arith.constant 0 : i32
    return %c0_i32, %c0_i32_0 : i32, i32
  }
  func.func @transform_8(%arg0: i32) -> (i32, i32) {
    %c0_i32 = arith.constant 0 : i32
    %c0_i32_0 = arith.constant 0 : i32
    %c0_i32_1 = arith.constant 0 : i32
    return %c0_i32, %c0_i32_0 : i32, i32
  }
  func.func @transform_9(%arg0: i32) -> (i32, i32) {
    %c0_i32 = arith.constant 0 : i32
    %c0_i32_0 = arith.constant 0 : i32
    %c0_i32_1 = arith.constant 0 : i32
    return %c0_i32, %c0_i32_0 : i32, i32
  }
  func.func @transform_10(%arg0: i32) -> (i32, i32) {
    %c0_i32 = arith.constant 0 : i32
    %c0_i32_0 = arith.constant 0 : i32
    %c0_i32_1 = arith.constant 0 : i32
    return %c0_i32, %c0_i32_0 : i32, i32
  }
  func.func @transform_11(%arg0: i32) -> (i32, i32) {
    %c0_i32 = arith.constant 0 : i32
    %c0_i32_0 = arith.constant 0 : i32
    %c0_i32_1 = arith.constant 0 : i32
    return %c0_i32, %c0_i32_0 : i32, i32
  }
  func.func @transform_12(%arg0: i32) -> (i32, i32) {
    %c0_i32 = arith.constant 0 : i32
    %c0_i32_0 = arith.constant 0 : i32
    %c0_i32_1 = arith.constant 0 : i32
    return %c0_i32, %c0_i32_0 : i32, i32
  }
  func.func @transform_13(%arg0: i32) -> (i32, i32) {
    %c0_i32 = arith.constant 0 : i32
    %c0_i32_0 = arith.constant 0 : i32
    %c0_i32_1 = arith.constant 0 : i32
    return %c0_i32, %c0_i32_0 : i32, i32
  }
  func.func @transform_14(%arg0: i32) -> (i32, i32) {
    %c0_i32 = arith.constant 0 : i32
    %c0_i32_0 = arith.constant 0 : i32
    %c0_i32_1 = arith.constant 0 : i32
    return %c0_i32, %c0_i32_0 : i32, i32
  }
  func.func @transform_15(%arg0: i32) -> (i32, i32) {
    %c0_i32 = arith.constant 0 : i32
    %c0_i32_0 = arith.constant 0 : i32
    %c0_i32_1 = arith.constant 0 : i32
    return %c0_i32, %c0_i32_0 : i32, i32
  }
  func.func @transform_16(%arg0: i32) -> (i32, i32) {
    %c0_i32 = arith.constant 0 : i32
    %c0_i32_0 = arith.constant 0 : i32
    %c0_i32_1 = arith.constant 0 : i32
    return %c0_i32, %c0_i32_0 : i32, i32
  }
  func.func @transform_17(%arg0: i32) -> (i32, i32) {
    %c0_i32 = arith.constant 0 : i32
    %c0_i32_0 = arith.constant 0 : i32
    %c0_i32_1 = arith.constant 0 : i32
    return %c0_i32, %c0_i32_0 : i32, i32
  }
  func.func @transform_18(%arg0: i32) -> (i32, i32) {
    %c0_i32 = arith.constant 0 : i32
    %c0_i32_0 = arith.constant 0 : i32
    %c0_i32_1 = arith.constant 0 : i32
    return %c0_i32, %c0_i32_0 : i32, i32
  }
  func.func @transform_19(%arg0: i32) -> (i32, i32) {
    %c0_i32 = arith.constant 0 : i32
    %c0_i32_0 = arith.constant 0 : i32
    %c0_i32_1 = arith.constant 0 : i32
    return %c0_i32, %c0_i32_0 : i32, i32
  }
  func.func @transform_20(%arg0: i32) -> (i32, i32) {
    %c0_i32 = arith.constant 0 : i32
    %c0_i32_0 = arith.constant 0 : i32
    %c0_i32_1 = arith.constant 0 : i32
    return %c0_i32, %c0_i32_0 : i32, i32
  }
  func.func @transform_21(%arg0: i32) -> (i32, i32) {
    %c0_i32 = arith.constant 0 : i32
    %c0_i32_0 = arith.constant 0 : i32
    %c0_i32_1 = arith.constant 0 : i32
    return %c0_i32, %c0_i32_0 : i32, i32
  }
  func.func @transform_22(%arg0: i32) -> (i32, i32) {
    %c0_i32 = arith.constant 0 : i32
    %c0_i32_0 = arith.constant 0 : i32
    %c0_i32_1 = arith.constant 0 : i32
    return %c0_i32, %c0_i32_0 : i32, i32
  }
  func.func @transform_23(%arg0: i32) -> (i32, i32) {
    %c0_i32 = arith.constant 0 : i32
    %c0_i32_0 = arith.constant 0 : i32
    %c0_i32_1 = arith.constant 0 : i32
    return %c0_i32, %c0_i32_0 : i32, i32
  }
  func.func @transform_24(%arg0: i32) -> (i32, i32) {
    %c0_i32 = arith.constant 0 : i32
    %c0_i32_0 = arith.constant 0 : i32
    %c0_i32_1 = arith.constant 0 : i32
    return %c0_i32, %c0_i32_0 : i32, i32
  }
  func.func @transform_25(%arg0: i32) -> (i32, i32) {
    %c0_i32 = arith.constant 0 : i32
    %c0_i32_0 = arith.constant 0 : i32
    %c0_i32_1 = arith.constant 0 : i32
    return %c0_i32, %c0_i32_0 : i32, i32
  }
  func.func @transform_26(%arg0: i32) -> (i32, i32) {
    %c0_i32 = arith.constant 0 : i32
    %c0_i32_0 = arith.constant 0 : i32
    %c0_i32_1 = arith.constant 0 : i32
    return %c0_i32, %c0_i32_0 : i32, i32
  }
  func.func @transform_27(%arg0: i32) -> (i32, i32) {
    %c0_i32 = arith.constant 0 : i32
    %c0_i32_0 = arith.constant 0 : i32
    %c0_i32_1 = arith.constant 0 : i32
    return %c0_i32, %c0_i32_0 : i32, i32
  }
  func.func @transform_28(%arg0: i32) -> (i32, i32) {
    %c0_i32 = arith.constant 0 : i32
    %c0_i32_0 = arith.constant 0 : i32
    %c0_i32_1 = arith.constant 0 : i32
    return %c0_i32, %c0_i32_0 : i32, i32
  }
  func.func @transform_29(%arg0: i32) -> (i32, i32) {
    %c0_i32 = arith.constant 0 : i32
    %c0_i32_0 = arith.constant 0 : i32
    %c0_i32_1 = arith.constant 0 : i32
    return %c0_i32, %c0_i32_0 : i32, i32
  }
  func.func @transform_30(%arg0: i32) -> (i32, i32) {
    %c0_i32 = arith.constant 0 : i32
    %c0_i32_0 = arith.constant 0 : i32
    %c0_i32_1 = arith.constant 0 : i32
    return %c0_i32, %c0_i32_0 : i32, i32
  }
  func.func @transform_31(%arg0: i32) -> (i32, i32) {
    %c0_i32 = arith.constant 0 : i32
    %c0_i32_0 = arith.constant 0 : i32
    %c0_i32_1 = arith.constant 0 : i32
    return %c0_i32, %c0_i32_0 : i32, i32
  }
  func.func @transform_32(%arg0: i32) -> (i32, i32) {
    %c0_i32 = arith.constant 0 : i32
    %c0_i32_0 = arith.constant 0 : i32
    %c0_i32_1 = arith.constant 0 : i32
    return %c0_i32, %c0_i32_0 : i32, i32
  }
  func.func @transform_33(%arg0: i32) -> (i32, i32) {
    %c0_i32 = arith.constant 0 : i32
    %c0_i32_0 = arith.constant 0 : i32
    %c0_i32_1 = arith.constant 0 : i32
    return %c0_i32, %c0_i32_0 : i32, i32
  }
  func.func @transform_34(%arg0: i32) -> (i32, i32) {
    %c0_i32 = arith.constant 0 : i32
    %c0_i32_0 = arith.constant 0 : i32
    %c0_i32_1 = arith.constant 0 : i32
    return %c0_i32, %c0_i32_0 : i32, i32
  }
  func.func @transform_35(%arg0: i32) -> (i32, i32) {
    %c0_i32 = arith.constant 0 : i32
    %c0_i32_0 = arith.constant 0 : i32
    %c0_i32_1 = arith.constant 0 : i32
    return %c0_i32, %c0_i32_0 : i32, i32
  }
  func.func @transform_36(%arg0: i32) -> (i32, i32) {
    %c0_i32 = arith.constant 0 : i32
    %c0_i32_0 = arith.constant 0 : i32
    %c0_i32_1 = arith.constant 0 : i32
    return %c0_i32, %c0_i32_0 : i32, i32
  }
  func.func @transform_37(%arg0: i32) -> (i32, i32) {
    %c0_i32 = arith.constant 0 : i32
    %c0_i32_0 = arith.constant 0 : i32
    %c0_i32_1 = arith.constant 0 : i32
    return %c0_i32, %c0_i32_0 : i32, i32
  }
}

</mosaic_0001>

<llo_original>
// kernel: tpu_custom_call.1
$region0: #{tpu_custom_call.1}
  #allocation0 [shape = 'u32[]', space=smem, size = 0x4, offset = 0x4, fixed_abs, tag = 'smem constant byte address 0x4 - core index']
  #allocation1 [shape = 'u32[144,128]{1,0:T(1,128)}', space=vmem, size = 0x12000, scoped, tag = 'internal scratch']
  %s0 = inlined_call_operand.smem [shape: u32[38], index: -1, kind: input, shape index: {}]
  %s1 = sld [smem:[%s0]]
  %s2 = scalar_lea.smem %s0, 1
  %s3 = sld [smem:[%s2]]
  %s4 = scalar_lea.smem %s0, 2
  %s5 = sld [smem:[%s4]]
  %s6 = scalar_lea.smem %s0, 3
  %s7 = sld [smem:[%s6]]
  %s8 = scalar_lea.smem %s0, 4
  %s9 = sld [smem:[%s8]]
  %s10 = scalar_lea.smem %s0, 5
  %s11 = sld [smem:[%s10]]
  %s12 = scalar_lea.smem %s0, 6
  %s13 = sld [smem:[%s12]]
  %s14 = scalar_lea.smem %s0, 7
  %s15 = sld [smem:[%s14]]
  %s16 = scalar_lea.smem %s0, 8
  %s17 = sld [smem:[%s16]]
  %s18 = scalar_lea.smem %s0, 9
  %s19 = sld [smem:[%s18]]
  %s20 = scalar_lea.smem %s0, 10
  %s21 = sld [smem:[%s20]]
  %s22 = scalar_lea.smem %s0, 11
  %s23 = sld [smem:[%s22]]
  %s24 = scalar_lea.smem %s0, 12
  %s25 = sld [smem:[%s24]]
  %s26 = scalar_lea.smem %s0, 13
  %s27 = sld [smem:[%s26]]
  %s28 = scalar_lea.smem %s0, 14
  %s29 = sld [smem:[%s28]]
  %s30 = scalar_lea.smem %s0, 15
  %s31 = sld [smem:[%s30]]
  %s32 = scalar_lea.smem %s0, 16
  %s33 = sld [smem:[%s32]]
  %s34 = scalar_lea.smem %s0, 17
  %s35 = sld [smem:[%s34]]
  %s36 = scalar_lea.smem %s0, 18
  %s37 = sld [smem:[%s36]]
  %s38 = scalar_lea.smem %s0, 19
  %s39 = sld [smem:[%s38]]
  %s40 = scalar_lea.smem %s0, 20
  %s41 = sld [smem:[%s40]]
  %s42 = scalar_lea.smem %s0, 21
  %s43 = sld [smem:[%s42]]
  %s44 = scalar_lea.smem %s0, 22
  %s45 = sld [smem:[%s44]]
  %s46 = scalar_lea.smem %s0, 23
  %s47 = sld [smem:[%s46]]
  %s48 = scalar_lea.smem %s0, 24
  %s49 = sld [smem:[%s48]]
  %s50 = scalar_lea.smem %s0, 25
  %s51 = sld [smem:[%s50]]
  %s52 = scalar_lea.smem %s0, 26
  %s53 = sld [smem:[%s52]]
  %s54 = scalar_lea.smem %s0, 27
  %s55 = sld [smem:[%s54]]
  %s56 = scalar_lea.smem %s0, 28
  %s57 = sld [smem:[%s56]]
  %s58 = scalar_lea.smem %s0, 29
  %s59 = sld [smem:[%s58]]
  %s60 = scalar_lea.smem %s0, 30
  %s61 = sld [smem:[%s60]]
  %s62 = scalar_lea.smem %s0, 31
  %s63 = sld [smem:[%s62]]
  %s64 = scalar_lea.smem %s0, 32
  %s65 = sld [smem:[%s64]]
  %s66 = scalar_lea.smem %s0, 33
  %s67 = sld [smem:[%s66]]
  %s68 = scalar_lea.smem %s0, 34
  %s69 = sld [smem:[%s68]]
  %s70 = scalar_lea.smem %s0, 35
  %s71 = sld [smem:[%s70]]
  %s72 = scalar_lea.smem %s0, 36
  %s73 = sld [smem:[%s72]]
  %s74 = scalar_lea.smem %s0, 37
  %s75 = sld [smem:[%s74]]
  %76 = xla_tuple %s73, %s75
  %s77 = sld [smem:[#allocation0]]
  $region162: #{tpu_custom_call.1} parent=0
    _
  %s79 = ssub.s32 1, %s77
  %s80 = scalar_select 0, %s79, %s77
  $region1: #{tpu_custom_call.1} parent=0
    #allocation2 [shape = 'u8[4096]{0}', space=vmem, size = 0x1000, scoped, tag = 'output window, operand 1, single buffered']
    #allocation3 [shape = 's32[1]{0}', space=sflag, size = 0x4, scoped, tag = 'scoped memory for tpu_custom_call.1']
    %81 = vsyncpa [#allocation3], 0
    // Predicated region
    $region2: #{tpu_custom_call.1} parent=1 // pred_check
      _
    $region3: #{tpu_custom_call.1} parent=1 // pred_check_branch
      %83 = sbr.rel (0) target = $region5
    $region4: #{tpu_custom_call.1} parent=1 // pred_region
      _
    $region5: #{tpu_custom_call.1} parent=1 // pred_fallthru
      _
    // Predicated region
    $region6: #{tpu_custom_call.1} parent=1 // pred_check
      _
    $region7: #{tpu_custom_call.1} parent=1 // pred_check_branch
      %85 = sbr.rel (0) target = $region9
    $region8: #{tpu_custom_call.1} parent=1 // pred_region
      _
    $region9: #{tpu_custom_call.1} parent=1 // pred_fallthru
      _
    // Predicated region
    $region10: #{tpu_custom_call.1} parent=1 // pred_check
      _
    $region11: #{tpu_custom_call.1} parent=1 // pred_check_branch
      %87 = sbr.rel (0) target = $region13
    $region12: #{tpu_custom_call.1} parent=1 // pred_region
      _
    $region13: #{tpu_custom_call.1} parent=1 // pred_fallthru
      _
    // Predicated region
    $region14: #{tpu_custom_call.1} parent=1 // pred_check
      _
    $region15: #{tpu_custom_call.1} parent=1 // pred_check_branch
      %89 = sbr.rel (0) target = $region17
    $region16: #{tpu_custom_call.1} parent=1 // pred_region
      _
    $region17: #{tpu_custom_call.1} parent=1 // pred_fallthru
      _
    // Predicated region
    $region18: #{tpu_custom_call.1} parent=1 // pred_check
      _
    $region19: #{tpu_custom_call.1} parent=1 // pred_check_branch
      %91 = sbr.rel (0) target = $region21
    $region20: #{tpu_custom_call.1} parent=1 // pred_region
      _
    $region21: #{tpu_custom_call.1} parent=1 // pred_fallthru
      _
    // Predicated region
    $region22: #{tpu_custom_call.1} parent=1 // pred_check
      _
    $region23: #{tpu_custom_call.1} parent=1 // pred_check_branch
      %93 = sbr.rel (0) target = $region25
    $region24: #{tpu_custom_call.1} parent=1 // pred_region
      _
    $region25: #{tpu_custom_call.1} parent=1 // pred_fallthru
      _
    // Predicated region
    $region26: #{tpu_custom_call.1} parent=1 // pred_check
      _
    $region27: #{tpu_custom_call.1} parent=1 // pred_check_branch
      %95 = sbr.rel (0) target = $region29
    $region28: #{tpu_custom_call.1} parent=1 // pred_region
      _
    $region29: #{tpu_custom_call.1} parent=1 // pred_fallthru
      _
    // Predicated region
    $region30: #{tpu_custom_call.1} parent=1 // pred_check
      _
    $region31: #{tpu_custom_call.1} parent=1 // pred_check_branch
      %97 = sbr.rel (0) target = $region33
    $region32: #{tpu_custom_call.1} parent=1 // pred_region
      _
    $region33: #{tpu_custom_call.1} parent=1 // pred_fallthru
      _
    // Predicated region
    $region34: #{tpu_custom_call.1} parent=1 // pred_check
      _
    $region35: #{tpu_custom_call.1} parent=1 // pred_check_branch
      %99 = sbr.rel (0) target = $region37
    $region36: #{tpu_custom_call.1} parent=1 // pred_region
      _
    $region37: #{tpu_custom_call.1} parent=1 // pred_fallthru
      _
    // Predicated region
    $region38: #{tpu_custom_call.1} parent=1 // pred_check
      _
    $region39: #{tpu_custom_call.1} parent=1 // pred_check_branch
      %101 = sbr.rel (0) target = $region41
    $region40: #{tpu_custom_call.1} parent=1 // pred_region
      _
    $region41: #{tpu_custom_call.1} parent=1 // pred_fallthru
      _
    // Predicated region
    $region42: #{tpu_custom_call.1} parent=1 // pred_check
      _
    $region43: #{tpu_custom_call.1} parent=1 // pred_check_branch
      %103 = sbr.rel (0) target = $region45
    $region44: #{tpu_custom_call.1} parent=1 // pred_region
      _
    $region45: #{tpu_custom_call.1} parent=1 // pred_fallthru
      _
    // Predicated region
    $region46: #{tpu_custom_call.1} parent=1 // pred_check
      _
    $region47: #{tpu_custom_call.1} parent=1 // pred_check_branch
      %105 = sbr.rel (0) target = $region49
    $region48: #{tpu_custom_call.1} parent=1 // pred_region
      _
    $region49: #{tpu_custom_call.1} parent=1 // pred_fallthru
      _
    // Predicated region
    $region50: #{tpu_custom_call.1} parent=1 // pred_check
      _
    $region51: #{tpu_custom_call.1} parent=1 // pred_check_branch
      %107 = sbr.rel (0) target = $region53
    $region52: #{tpu_custom_call.1} parent=1 // pred_region
      _
    $region53: #{tpu_custom_call.1} parent=1 // pred_fallthru
      _
    // Predicated region
    $region54: #{tpu_custom_call.1} parent=1 // pred_check
      _
    $region55: #{tpu_custom_call.1} parent=1 // pred_check_branch
      %109 = sbr.rel (0) target = $region57
    $region56: #{tpu_custom_call.1} parent=1 // pred_region
      _
    $region57: #{tpu_custom_call.1} parent=1 // pred_fallthru
      _
    // Predicated region
    $region58: #{tpu_custom_call.1} parent=1 // pred_check
      _
    $region59: #{tpu_custom_call.1} parent=1 // pred_check_branch
      %111 = sbr.rel (0) target = $region61
    $region60: #{tpu_custom_call.1} parent=1 // pred_region
      _
    $region61: #{tpu_custom_call.1} parent=1 // pred_fallthru
      _
    // Predicated region
    $region62: #{tpu_custom_call.1} parent=1 // pred_check
      _
    $region63: #{tpu_custom_call.1} parent=1 // pred_check_branch
      %113 = sbr.rel (0) target = $region65
    $region64: #{tpu_custom_call.1} parent=1 // pred_region
      _
    $region65: #{tpu_custom_call.1} parent=1 // pred_fallthru
      _
    // Predicated region
    $region66: #{tpu_custom_call.1} parent=1 // pred_check
      _
    $region67: #{tpu_custom_call.1} parent=1 // pred_check_branch
      %115 = sbr.rel (0) target = $region69
    $region68: #{tpu_custom_call.1} parent=1 // pred_region
      _
    $region69: #{tpu_custom_call.1} parent=1 // pred_fallthru
      _
    // Predicated region
    $region70: #{tpu_custom_call.1} parent=1 // pred_check
      _
    $region71: #{tpu_custom_call.1} parent=1 // pred_check_branch
      %117 = sbr.rel (0) target = $region73
    $region72: #{tpu_custom_call.1} parent=1 // pred_region
      _
    $region73: #{tpu_custom_call.1} parent=1 // pred_fallthru
      _
    // Predicated region
    $region74: #{tpu_custom_call.1} parent=1 // pred_check
      _
    $region75: #{tpu_custom_call.1} parent=1 // pred_check_branch
      %119 = sbr.rel (0) target = $region77
    $region76: #{tpu_custom_call.1} parent=1 // pred_region
      _
    $region77: #{tpu_custom_call.1} parent=1 // pred_fallthru
      _
    // Predicated region
    $region78: #{tpu_custom_call.1} parent=1 // pred_check
      _
    $region79: #{tpu_custom_call.1} parent=1 // pred_check_branch
      %121 = sbr.rel (0) target = $region81
    $region80: #{tpu_custom_call.1} parent=1 // pred_region
      _
    $region81: #{tpu_custom_call.1} parent=1 // pred_fallthru
      _
    // Predicated region
    $region82: #{tpu_custom_call.1} parent=1 // pred_check
      _
    $region83: #{tpu_custom_call.1} parent=1 // pred_check_branch
      %123 = sbr.rel (0) target = $region85
    $region84: #{tpu_custom_call.1} parent=1 // pred_region
      _
    $region85: #{tpu_custom_call.1} parent=1 // pred_fallthru
      _
    // Predicated region
    $region86: #{tpu_custom_call.1} parent=1 // pred_check
      _
    $region87: #{tpu_custom_call.1} parent=1 // pred_check_branch
      %125 = sbr.rel (0) target = $region89
    $region88: #{tpu_custom_call.1} parent=1 // pred_region
      _
    $region89: #{tpu_custom_call.1} parent=1 // pred_fallthru
      _
    // Predicated region
    $region90: #{tpu_custom_call.1} parent=1 // pred_check
      _
    $region91: #{tpu_custom_call.1} parent=1 // pred_check_branch
      %127 = sbr.rel (0) target = $region93
    $region92: #{tpu_custom_call.1} parent=1 // pred_region
      _
    $region93: #{tpu_custom_call.1} parent=1 // pred_fallthru
      _
    // Predicated region
    $region94: #{tpu_custom_call.1} parent=1 // pred_check
      _
    $region95: #{tpu_custom_call.1} parent=1 // pred_check_branch
      %129 = sbr.rel (0) target = $region97
    $region96: #{tpu_custom_call.1} parent=1 // pred_region
      _
    $region97: #{tpu_custom_call.1} parent=1 // pred_fallthru
      _
    // Predicated region
    $region98: #{tpu_custom_call.1} parent=1 // pred_check
      _
    $region99: #{tpu_custom_call.1} parent=1 // pred_check_branch
      %131 = sbr.rel (0) target = $region101
    $region100: #{tpu_custom_call.1} parent=1 // pred_region
      _
    $region101: #{tpu_custom_call.1} parent=1 // pred_fallthru
      _
    // Predicated region
    $region102: #{tpu_custom_call.1} parent=1 // pred_check
      _
    $region103: #{tpu_custom_call.1} parent=1 // pred_check_branch
      %133 = sbr.rel (0) target = $region105
    $region104: #{tpu_custom_call.1} parent=1 // pred_region
      _
    $region105: #{tpu_custom_call.1} parent=1 // pred_fallthru
      _
    // Predicated region
    $region106: #{tpu_custom_call.1} parent=1 // pred_check
      _
    $region107: #{tpu_custom_call.1} parent=1 // pred_check_branch
      %135 = sbr.rel (0) target = $region109
    $region108: #{tpu_custom_call.1} parent=1 // pred_region
      _
    $region109: #{tpu_custom_call.1} parent=1 // pred_fallthru
      _
    // Predicated region
    $region110: #{tpu_custom_call.1} parent=1 // pred_check
      _
    $region111: #{tpu_custom_call.1} parent=1 // pred_check_branch
      %137 = sbr.rel (0) target = $region113
    $region112: #{tpu_custom_call.1} parent=1 // pred_region
      _
    $region113: #{tpu_custom_call.1} parent=1 // pred_fallthru
      _
    // Predicated region
    $region114: #{tpu_custom_call.1} parent=1 // pred_check
      _
    $region115: #{tpu_custom_call.1} parent=1 // pred_check_branch
      %139 = sbr.rel (0) target = $region117
    $region116: #{tpu_custom_call.1} parent=1 // pred_region
      _
    $region117: #{tpu_custom_call.1} parent=1 // pred_fallthru
      _
    // Predicated region
    $region118: #{tpu_custom_call.1} parent=1 // pred_check
      _
    $region119: #{tpu_custom_call.1} parent=1 // pred_check_branch
      %141 = sbr.rel (0) target = $region121
    $region120: #{tpu_custom_call.1} parent=1 // pred_region
      _
    $region121: #{tpu_custom_call.1} parent=1 // pred_fallthru
      _
    // Predicated region
    $region122: #{tpu_custom_call.1} parent=1 // pred_check
      _
    $region123: #{tpu_custom_call.1} parent=1 // pred_check_branch
      %143 = sbr.rel (0) target = $region125
    $region124: #{tpu_custom_call.1} parent=1 // pred_region
      _
    $region125: #{tpu_custom_call.1} parent=1 // pred_fallthru
      _
    // Predicated region
    $region126: #{tpu_custom_call.1} parent=1 // pred_check
      _
    $region127: #{tpu_custom_call.1} parent=1 // pred_check_branch
      %145 = sbr.rel (0) target = $region129
    $region128: #{tpu_custom_call.1} parent=1 // pred_region
      _
    $region129: #{tpu_custom_call.1} parent=1 // pred_fallthru
      _
    // Predicated region
    $region130: #{tpu_custom_call.1} parent=1 // pred_check
      _
    $region131: #{tpu_custom_call.1} parent=1 // pred_check_branch
      %147 = sbr.rel (0) target = $region133
    $region132: #{tpu_custom_call.1} parent=1 // pred_region
      _
    $region133: #{tpu_custom_call.1} parent=1 // pred_fallthru
      _
    // Predicated region
    $region134: #{tpu_custom_call.1} parent=1 // pred_check
      _
    $region135: #{tpu_custom_call.1} parent=1 // pred_check_branch
      %149 = sbr.rel (0) target = $region137
    $region136: #{tpu_custom_call.1} parent=1 // pred_region
      _
    $region137: #{tpu_custom_call.1} parent=1 // pred_fallthru
      _
    // Predicated region
    $region138: #{tpu_custom_call.1} parent=1 // pred_check
      _
    $region139: #{tpu_custom_call.1} parent=1 // pred_check_branch
      %151 = sbr.rel (0) target = $region141
    $region140: #{tpu_custom_call.1} parent=1 // pred_region
      _
    $region141: #{tpu_custom_call.1} parent=1 // pred_fallthru
      _
    // Predicated region
    $region142: #{tpu_custom_call.1} parent=1 // pred_check
      _
    $region143: #{tpu_custom_call.1} parent=1 // pred_check_branch
      %153 = sbr.rel (0) target = $region145
    $region144: #{tpu_custom_call.1} parent=1 // pred_region
      _
    $region145: #{tpu_custom_call.1} parent=1 // pred_fallthru
      _
    %v154 = vld [vmem:[%s1] sm:$0xff]
    %v155 = vld [vmem:[%s3] sm:$0xff]
    %v156 = vld [vmem:[%s5] sm:$0x1]
    %v158 = vlaneseq
    %v159 = vshrl.u32 %v158, 7
    %v160 = vsub.s32 0, %v159
    %v161 = vrot.slane %v156, %v160
    %v163 = vadd.f32 %v154, %v161
    %v164 = vld [vmem:[%s7] sm:$0xff]
    %v165 = vld [vmem:[%s7 + $0x8] sm:$0xff]
    %v166 = vld [vmem:[%s9] sm:$0x1]
    %v167 = vld [vmem:[%s11] sm:$0x1]
    %v168 = vld [vmem:[%s13] sm:$0x1]
    %v169 = vld [vmem:[%s15] sm:$0xff]
    %v170 = vld [vmem:[%s15 + $0x8] sm:$0xff]
    %v171 = vld [vmem:[%s15 + $0x10] sm:$0xff]
    %v172 = vld [vmem:[%s15 + $0x18] sm:$0xff]
    %v173 = vld [vmem:[%s15 + $0x20] sm:$0xff]
    %v174 = vld [vmem:[%s15 + $0x28] sm:$0xff]
    %v175 = vld [vmem:[%s15 + $0x30] sm:$0xff]
    %v176 = vld [vmem:[%s15 + $0x38] sm:$0xff]
    %v177 = vld [vmem:[%s15 + $0x40] sm:$0xff]
    %v178 = vld [vmem:[%s15 + $0x48] sm:$0xff]
    %v179 = vld [vmem:[%s15 + $0x50] sm:$0xff]
    %v180 = vld [vmem:[%s15 + $0x58] sm:$0xff]
    %v181 = vld [vmem:[%s15 + $0x60] sm:$0xff]
    %v182 = vld [vmem:[%s15 + $0x68] sm:$0xff]
    %v183 = vld [vmem:[%s15 + $0x70] sm:$0xff]
    %v184 = vld [vmem:[%s15 + $0x78] sm:$0xff]
    %v185 = vld [vmem:[%s15 + $0x80] sm:$0xff]
    %v186 = vld [vmem:[%s15 + $0x88] sm:$0xff]
    %v187 = vld [vmem:[%s15 + $0x90] sm:$0xff]
    %v188 = vld [vmem:[%s15 + $0x98] sm:$0xff]
    %v189 = vld [vmem:[%s15 + $0xa0] sm:$0xff]
    %v190 = vld [vmem:[%s15 + $0xa8] sm:$0xff]
    %v191 = vld [vmem:[%s15 + $0xb0] sm:$0xff]
    %v192 = vld [vmem:[%s15 + $0xb8] sm:$0xff]
    %v193 = vld [vmem:[%s15 + $0xc0] sm:$0xff]
    %v194 = vld [vmem:[%s15 + $0xc8] sm:$0xff]
    %v195 = vld [vmem:[%s15 + $0xd0] sm:$0xff]
    %v196 = vld [vmem:[%s15 + $0xd8] sm:$0xff]
    %v197 = vld [vmem:[%s15 + $0xe0] sm:$0xff]
    %v198 = vld [vmem:[%s15 + $0xe8] sm:$0xff]
    %v199 = vld [vmem:[%s15 + $0xf0] sm:$0xff]
    %v200 = vld [vmem:[%s15 + $0xf8] sm:$0xff]
    %v201 = vld [vmem:[%s17] sm:$0xff]
    %v202 = vld [vmem:[%s17 + $0x8] sm:$0xff]
    %v203 = vld [vmem:[%s19] sm:$0xff]
    %v204 = vld [vmem:[%s19 + $0x8] sm:$0xff]
    %v205 = vld [vmem:[%s19 + $0x10] sm:$0xff]
    %v206 = vld [vmem:[%s19 + $0x18] sm:$0xff]
    %v207 = vld [vmem:[%s19 + $0x20] sm:$0xff]
    %v208 = vld [vmem:[%s19 + $0x28] sm:$0xff]
    %v209 = vld [vmem:[%s19 + $0x30] sm:$0xff]
    %v210 = vld [vmem:[%s19 + $0x38] sm:$0xff]
    %v211 = vld [vmem:[%s19 + $0x40] sm:$0xff]
    %v212 = vld [vmem:[%s19 + $0x48] sm:$0xff]
    %v213 = vld [vmem:[%s19 + $0x50] sm:$0xff]
    %v214 = vld [vmem:[%s19 + $0x58] sm:$0xff]
    %v215 = vld [vmem:[%s19 + $0x60] sm:$0xff]
    %v216 = vld [vmem:[%s19 + $0x68] sm:$0xff]
    %v217 = vld [vmem:[%s19 + $0x70] sm:$0xff]
    %v218 = vld [vmem:[%s19 + $0x78] sm:$0xff]
    %v219 = vld [vmem:[%s19 + $0x80] sm:$0xff]
    %v220 = vld [vmem:[%s19 + $0x88] sm:$0xff]
    %v221 = vld [vmem:[%s19 + $0x90] sm:$0xff]
    %v222 = vld [vmem:[%s19 + $0x98] sm:$0xff]
    %v223 = vld [vmem:[%s19 + $0xa0] sm:$0xff]
    %v224 = vld [vmem:[%s19 + $0xa8] sm:$0xff]
    %v225 = vld [vmem:[%s19 + $0xb0] sm:$0xff]
    %v226 = vld [vmem:[%s19 + $0xb8] sm:$0xff]
    %v227 = vld [vmem:[%s19 + $0xc0] sm:$0xff]
    %v228 = vld [vmem:[%s19 + $0xc8] sm:$0xff]
    %v229 = vld [vmem:[%s19 + $0xd0] sm:$0xff]
    %v230 = vld [vmem:[%s19 + $0xd8] sm:$0xff]
    %v231 = vld [vmem:[%s19 + $0xe0] sm:$0xff]
    %v232 = vld [vmem:[%s19 + $0xe8] sm:$0xff]
    %v233 = vld [vmem:[%s19 + $0xf0] sm:$0xff]
    %v234 = vld [vmem:[%s19 + $0xf8] sm:$0xff]
    %v235 = vld [vmem:[%s19 + $0x100] sm:$0xff]
    %v236 = vld [vmem:[%s19 + $0x108] sm:$0xff]
    %v237 = vld [vmem:[%s19 + $0x110] sm:$0xff]
    %v238 = vld [vmem:[%s19 + $0x118] sm:$0xff]
    %v239 = vld [vmem:[%s19 + $0x120] sm:$0xff]
    %v240 = vld [vmem:[%s19 + $0x128] sm:$0xff]
    %v241 = vld [vmem:[%s19 + $0x130] sm:$0xff]
    %v242 = vld [vmem:[%s19 + $0x138] sm:$0xff]
    %v243 = vld [vmem:[%s19 + $0x140] sm:$0xff]
    %v244 = vld [vmem:[%s19 + $0x148] sm:$0xff]
    %v245 = vld [vmem:[%s19 + $0x150] sm:$0xff]
    %v246 = vld [vmem:[%s19 + $0x158] sm:$0xff]
    %v247 = vld [vmem:[%s19 + $0x160] sm:$0xff]
    %v248 = vld [vmem:[%s19 + $0x168] sm:$0xff]
    %v249 = vld [vmem:[%s19 + $0x170] sm:$0xff]
    %v250 = vld [vmem:[%s19 + $0x178] sm:$0xff]
    %v251 = vld [vmem:[%s19 + $0x180] sm:$0xff]
    %v252 = vld [vmem:[%s19 + $0x188] sm:$0xff]
    %v253 = vld [vmem:[%s19 + $0x190] sm:$0xff]
    %v254 = vld [vmem:[%s19 + $0x198] sm:$0xff]
    %v255 = vld [vmem:[%s19 + $0x1a0] sm:$0xff]
    %v256 = vld [vmem:[%s19 + $0x1a8] sm:$0xff]
    %v257 = vld [vmem:[%s19 + $0x1b0] sm:$0xff]
    %v258 = vld [vmem:[%s19 + $0x1b8] sm:$0xff]
    %v259 = vld [vmem:[%s19 + $0x1c0] sm:$0xff]
    %v260 = vld [vmem:[%s19 + $0x1c8] sm:$0xff]
    %v261 = vld [vmem:[%s19 + $0x1d0] sm:$0xff]
    %v262 = vld [vmem:[%s19 + $0x1d8] sm:$0xff]
    %v263 = vld [vmem:[%s19 + $0x1e0] sm:$0xff]
    %v264 = vld [vmem:[%s19 + $0x1e8] sm:$0xff]
    %v265 = vld [vmem:[%s19 + $0x1f0] sm:$0xff]
    %v266 = vld [vmem:[%s19 + $0x1f8] sm:$0xff]
    %v267 = vld [vmem:[%s19 + $0x200] sm:$0xff]
    %v268 = vld [vmem:[%s19 + $0x208] sm:$0xff]
    %v269 = vld [vmem:[%s19 + $0x210] sm:$0xff]
    %v270 = vld [vmem:[%s19 + $0x218] sm:$0xff]
    %v271 = vld [vmem:[%s19 + $0x220] sm:$0xff]
    %v272 = vld [vmem:[%s19 + $0x228] sm:$0xff]
    %v273 = vld [vmem:[%s19 + $0x230] sm:$0xff]
    %v274 = vld [vmem:[%s19 + $0x238] sm:$0xff]
    %v275 = vld [vmem:[%s19 + $0x240] sm:$0xff]
    %v276 = vld [vmem:[%s19 + $0x248] sm:$0xff]
    %v277 = vld [vmem:[%s19 + $0x250] sm:$0xff]
    %v278 = vld [vmem:[%s19 + $0x258] sm:$0xff]
    %v279 = vld [vmem:[%s19 + $0x260] sm:$0xff]
    %v280 = vld [vmem:[%s19 + $0x268] sm:$0xff]
    %v281 = vld [vmem:[%s19 + $0x270] sm:$0xff]
    %v282 = vld [vmem:[%s19 + $0x278] sm:$0xff]
    %v283 = vld [vmem:[%s19 + $0x280] sm:$0xff]
    %v284 = vld [vmem:[%s19 + $0x288] sm:$0xff]
    %v285 = vld [vmem:[%s19 + $0x290] sm:$0xff]
    %v286 = vld [vmem:[%s19 + $0x298] sm:$0xff]
    %v287 = vld [vmem:[%s19 + $0x2a0] sm:$0xff]
    %v288 = vld [vmem:[%s19 + $0x2a8] sm:$0xff]
    %v289 = vld [vmem:[%s19 + $0x2b0] sm:$0xff]
    %v290 = vld [vmem:[%s19 + $0x2b8] sm:$0xff]
    %v291 = vld [vmem:[%s19 + $0x2c0] sm:$0xff]
    %v292 = vld [vmem:[%s19 + $0x2c8] sm:$0xff]
    %v293 = vld [vmem:[%s19 + $0x2d0] sm:$0xff]
    %v294 = vld [vmem:[%s19 + $0x2d8] sm:$0xff]
    %v295 = vld [vmem:[%s19 + $0x2e0] sm:$0xff]
    %v296 = vld [vmem:[%s19 + $0x2e8] sm:$0xff]
    %v297 = vld [vmem:[%s19 + $0x2f0] sm:$0xff]
    %v298 = vld [vmem:[%s19 + $0x2f8] sm:$0xff]
    %v299 = vld [vmem:[%s19 + $0x300] sm:$0xff]
    %v300 = vld [vmem:[%s19 + $0x308] sm:$0xff]
    %v301 = vld [vmem:[%s19 + $0x310] sm:$0xff]
    %v302 = vld [vmem:[%s19 + $0x318] sm:$0xff]
    %v303 = vld [vmem:[%s19 + $0x320] sm:$0xff]
    %v304 = vld [vmem:[%s19 + $0x328] sm:$0xff]
    %v305 = vld [vmem:[%s19 + $0x330] sm:$0xff]
    %v306 = vld [vmem:[%s19 + $0x338] sm:$0xff]
    %v307 = vld [vmem:[%s19 + $0x340] sm:$0xff]
    %v308 = vld [vmem:[%s19 + $0x348] sm:$0xff]
    %v309 = vld [vmem:[%s19 + $0x350] sm:$0xff]
    %v310 = vld [vmem:[%s19 + $0x358] sm:$0xff]
    %v311 = vld [vmem:[%s19 + $0x360] sm:$0xff]
    %v312 = vld [vmem:[%s19 + $0x368] sm:$0xff]
    %v313 = vld [vmem:[%s19 + $0x370] sm:$0xff]
    %v314 = vld [vmem:[%s19 + $0x378] sm:$0xff]
    %v315 = vld [vmem:[%s19 + $0x380] sm:$0xff]
    %v316 = vld [vmem:[%s19 + $0x388] sm:$0xff]
    %v317 = vld [vmem:[%s19 + $0x390] sm:$0xff]
    %v318 = vld [vmem:[%s19 + $0x398] sm:$0xff]
    %v319 = vld [vmem:[%s19 + $0x3a0] sm:$0xff]
    %v320 = vld [vmem:[%s19 + $0x3a8] sm:$0xff]
    %v321 = vld [vmem:[%s19 + $0x3b0] sm:$0xff]
    %v322 = vld [vmem:[%s19 + $0x3b8] sm:$0xff]
    %v323 = vld [vmem:[%s19 + $0x3c0] sm:$0xff]
    %v324 = vld [vmem:[%s19 + $0x3c8] sm:$0xff]
    %v325 = vld [vmem:[%s19 + $0x3d0] sm:$0xff]
    %v326 = vld [vmem:[%s19 + $0x3d8] sm:$0xff]
    %v327 = vld [vmem:[%s19 + $0x3e0] sm:$0xff]
    %v328 = vld [vmem:[%s19 + $0x3e8] sm:$0xff]
    %v329 = vld [vmem:[%s19 + $0x3f0] sm:$0xff]
    %v330 = vld [vmem:[%s19 + $0x3f8] sm:$0xff]
    %v331 = vld [vmem:[%s19 + $0x400] sm:$0xff]
    %v332 = vld [vmem:[%s19 + $0x408] sm:$0xff]
    %v333 = vld [vmem:[%s19 + $0x410] sm:$0xff]
    %v334 = vld [vmem:[%s19 + $0x418] sm:$0xff]
    %v335 = vld [vmem:[%s19 + $0x420] sm:$0xff]
    %v336 = vld [vmem:[%s19 + $0x428] sm:$0xff]
    %v337 = vld [vmem:[%s19 + $0x430] sm:$0xff]
    %v338 = vld [vmem:[%s19 + $0x438] sm:$0xff]
    %v339 = vld [vmem:[%s19 + $0x440] sm:$0xff]
    %v340 = vld [vmem:[%s19 + $0x448] sm:$0xff]
    %v341 = vld [vmem:[%s19 + $0x450] sm:$0xff]
    %v342 = vld [vmem:[%s19 + $0x458] sm:$0xff]
    %v343 = vld [vmem:[%s19 + $0x460] sm:$0xff]
    %v344 = vld [vmem:[%s19 + $0x468] sm:$0xff]
    %v345 = vld [vmem:[%s19 + $0x470] sm:$0xff]
    %v346 = vld [vmem:[%s19 + $0x478] sm:$0xff]
    %v347 = vld [vmem:[%s19 + $0x480] sm:$0xff]
    %v348 = vld [vmem:[%s19 + $0x488] sm:$0xff]
    %v349 = vld [vmem:[%s19 + $0x490] sm:$0xff]
    %v350 = vld [vmem:[%s19 + $0x498] sm:$0xff]
    %v351 = vld [vmem:[%s19 + $0x4a0] sm:$0xff]
    %v352 = vld [vmem:[%s19 + $0x4a8] sm:$0xff]
    %v353 = vld [vmem:[%s19 + $0x4b0] sm:$0xff]
    %v354 = vld [vmem:[%s19 + $0x4b8] sm:$0xff]
    %v355 = vld [vmem:[%s19 + $0x4c0] sm:$0xff]
    %v356 = vld [vmem:[%s19 + $0x4c8] sm:$0xff]
    %v357 = vld [vmem:[%s19 + $0x4d0] sm:$0xff]
    %v358 = vld [vmem:[%s19 + $0x4d8] sm:$0xff]
    %v359 = vld [vmem:[%s19 + $0x4e0] sm:$0xff]
    %v360 = vld [vmem:[%s19 + $0x4e8] sm:$0xff]
    %v361 = vld [vmem:[%s19 + $0x4f0] sm:$0xff]
    %v362 = vld [vmem:[%s19 + $0x4f8] sm:$0xff]
    %v363 = vld [vmem:[%s19 + $0x500] sm:$0xff]
    %v364 = vld [vmem:[%s19 + $0x508] sm:$0xff]
    %v365 = vld [vmem:[%s19 + $0x510] sm:$0xff]
    %v366 = vld [vmem:[%s19 + $0x518] sm:$0xff]
    %v367 = vld [vmem:[%s19 + $0x520] sm:$0xff]
    %v368 = vld [vmem:[%s19 + $0x528] sm:$0xff]
    %v369 = vld [vmem:[%s19 + $0x530] sm:$0xff]
    %v370 = vld [vmem:[%s19 + $0x538] sm:$0xff]
    %v371 = vld [vmem:[%s19 + $0x540] sm:$0xff]
    %v372 = vld [vmem:[%s19 + $0x548] sm:$0xff]
    %v373 = vld [vmem:[%s19 + $0x550] sm:$0xff]
    %v374 = vld [vmem:[%s19 + $0x558] sm:$0xff]
    %v375 = vld [vmem:[%s19 + $0x560] sm:$0xff]
    %v376 = vld [vmem:[%s19 + $0x568] sm:$0xff]
    %v377 = vld [vmem:[%s19 + $0x570] sm:$0xff]
    %v378 = vld [vmem:[%s19 + $0x578] sm:$0xff]
    %v379 = vld [vmem:[%s19 + $0x580] sm:$0xff]
    %v380 = vld [vmem:[%s19 + $0x588] sm:$0xff]
    %v381 = vld [vmem:[%s19 + $0x590] sm:$0xff]
    %v382 = vld [vmem:[%s19 + $0x598] sm:$0xff]
    %v383 = vld [vmem:[%s19 + $0x5a0] sm:$0xff]
    %v384 = vld [vmem:[%s19 + $0x5a8] sm:$0xff]
    %v385 = vld [vmem:[%s19 + $0x5b0] sm:$0xff]
    %v386 = vld [vmem:[%s19 + $0x5b8] sm:$0xff]
    %v387 = vld [vmem:[%s19 + $0x5c0] sm:$0xff]
    %v388 = vld [vmem:[%s19 + $0x5c8] sm:$0xff]
    %v389 = vld [vmem:[%s19 + $0x5d0] sm:$0xff]
    %v390 = vld [vmem:[%s19 + $0x5d8] sm:$0xff]
    %v391 = vld [vmem:[%s19 + $0x5e0] sm:$0xff]
    %v392 = vld [vmem:[%s19 + $0x5e8] sm:$0xff]
    %v393 = vld [vmem:[%s19 + $0x5f0] sm:$0xff]
    %v394 = vld [vmem:[%s19 + $0x5f8] sm:$0xff]
    %v395 = vld [vmem:[%s19 + $0x600] sm:$0xff]
    %v396 = vld [vmem:[%s19 + $0x608] sm:$0xff]
    %v397 = vld [vmem:[%s19 + $0x610] sm:$0xff]
    %v398 = vld [vmem:[%s19 + $0x618] sm:$0xff]
    %v399 = vld [vmem:[%s19 + $0x620] sm:$0xff]
    %v400 = vld [vmem:[%s19 + $0x628] sm:$0xff]
    %v401 = vld [vmem:[%s19 + $0x630] sm:$0xff]
    %v402 = vld [vmem:[%s19 + $0x638] sm:$0xff]
    %v403 = vld [vmem:[%s19 + $0x640] sm:$0xff]
    %v404 = vld [vmem:[%s19 + $0x648] sm:$0xff]
    %v405 = vld [vmem:[%s19 + $0x650] sm:$0xff]
    %v406 = vld [vmem:[%s19 + $0x658] sm:$0xff]
    %v407 = vld [vmem:[%s19 + $0x660] sm:$0xff]
    %v408 = vld [vmem:[%s19 + $0x668] sm:$0xff]
    %v409 = vld [vmem:[%s19 + $0x670] sm:$0xff]
    %v410 = vld [vmem:[%s19 + $0x678] sm:$0xff]
    %v411 = vld [vmem:[%s19 + $0x680] sm:$0xff]
    %v412 = vld [vmem:[%s19 + $0x688] sm:$0xff]
    %v413 = vld [vmem:[%s19 + $0x690] sm:$0xff]
    %v414 = vld [vmem:[%s19 + $0x698] sm:$0xff]
    %v415 = vld [vmem:[%s19 + $0x6a0] sm:$0xff]
    %v416 = vld [vmem:[%s19 + $0x6a8] sm:$0xff]
    %v417 = vld [vmem:[%s19 + $0x6b0] sm:$0xff]
    %v418 = vld [vmem:[%s19 + $0x6b8] sm:$0xff]
    %v419 = vld [vmem:[%s19 + $0x6c0] sm:$0xff]
    %v420 = vld [vmem:[%s19 + $0x6c8] sm:$0xff]
    %v421 = vld [vmem:[%s19 + $0x6d0] sm:$0xff]
    %v422 = vld [vmem:[%s19 + $0x6d8] sm:$0xff]
    %v423 = vld [vmem:[%s19 + $0x6e0] sm:$0xff]
    %v424 = vld [vmem:[%s19 + $0x6e8] sm:$0xff]
    %v425 = vld [vmem:[%s19 + $0x6f0] sm:$0xff]
    %v426 = vld [vmem:[%s19 + $0x6f8] sm:$0xff]
    %v427 = vld [vmem:[%s19 + $0x700] sm:$0xff]
    %v428 = vld [vmem:[%s19 + $0x708] sm:$0xff]
    %v429 = vld [vmem:[%s19 + $0x710] sm:$0xff]
    %v430 = vld [vmem:[%s19 + $0x718] sm:$0xff]
    %v431 = vld [vmem:[%s19 + $0x720] sm:$0xff]
    %v432 = vld [vmem:[%s19 + $0x728] sm:$0xff]
    %v433 = vld [vmem:[%s19 + $0x730] sm:$0xff]
    %v434 = vld [vmem:[%s19 + $0x738] sm:$0xff]
    %v435 = vld [vmem:[%s19 + $0x740] sm:$0xff]
    %v436 = vld [vmem:[%s19 + $0x748] sm:$0xff]
    %v437 = vld [vmem:[%s19 + $0x750] sm:$0xff]
    %v438 = vld [vmem:[%s19 + $0x758] sm:$0xff]
    %v439 = vld [vmem:[%s19 + $0x760] sm:$0xff]
    %v440 = vld [vmem:[%s19 + $0x768] sm:$0xff]
    %v441 = vld [vmem:[%s19 + $0x770] sm:$0xff]
    %v442 = vld [vmem:[%s19 + $0x778] sm:$0xff]
    %v443 = vld [vmem:[%s19 + $0x780] sm:$0xff]
    %v444 = vld [vmem:[%s19 + $0x788] sm:$0xff]
    %v445 = vld [vmem:[%s19 + $0x790] sm:$0xff]
    %v446 = vld [vmem:[%s19 + $0x798] sm:$0xff]
    %v447 = vld [vmem:[%s19 + $0x7a0] sm:$0xff]
    %v448 = vld [vmem:[%s19 + $0x7a8] sm:$0xff]
    %v449 = vld [vmem:[%s19 + $0x7b0] sm:$0xff]
    %v450 = vld [vmem:[%s19 + $0x7b8] sm:$0xff]
    %v451 = vld [vmem:[%s19 + $0x7c0] sm:$0xff]
    %v452 = vld [vmem:[%s19 + $0x7c8] sm:$0xff]
    %v453 = vld [vmem:[%s19 + $0x7d0] sm:$0xff]
    %v454 = vld [vmem:[%s19 + $0x7d8] sm:$0xff]
    %v455 = vld [vmem:[%s19 + $0x7e0] sm:$0xff]
    %v456 = vld [vmem:[%s19 + $0x7e8] sm:$0xff]
    %v457 = vld [vmem:[%s19 + $0x7f0] sm:$0xff]
    %v458 = vld [vmem:[%s19 + $0x7f8] sm:$0xff]
    %v459 = vld [vmem:[%s21] sm:$0x1]
    %v460 = vld [vmem:[%s23] sm:$0x1]
    %v461 = vld [vmem:[%s25] sm:$0x1]
    %v463 = vlaneseq
    %v464 = vshrl.u32 %v463, 7
    %v465 = vsub.s32 0, %v464
    %v466 = vrot.slane %v166, %v465
    %vm468 = vcmask 130048
    %v470 = vsel %vm468, %v163, 0
    %472 = vmatprep.subr.mxu0 0.0
    %473 = vmatpush1.msra.mxu0 0.0
    %474 = vmatprep.subr.mxu0 0.0
    %475 = vmatpush1.msra.mxu0 0.0
    %476 = vmatprep.subr.mxu0 0.0
    %477 = vmatpush1.msra.mxu0 0.0
    %478 = vmatprep.subr.mxu0 0.0
    %479 = vmatpush1.msra.mxu0 0.0
    %480 = vmatprep.subr.mxu0 0.0
    %481 = vmatpush1.msra.mxu0 0.0
    %482 = vmatprep.subr.mxu0 0.0
    %483 = vmatpush1.msra.mxu0 0.0
    %484 = vmatprep.subr.mxu0 0.0
    %485 = vmatpush1.msra.mxu0 0.0
    %486 = vmatprep.subr.mxu0 0.0
    %487 = vmatpush1.msra.mxu0 0.0
    %488 = vmatprep.subr.mxu0 0.0
    %489 = vmatpush1.msra.mxu0 0.0
    %490 = vmatprep.subr.mxu0 0.0
    %491 = vmatpush1.msra.mxu0 0.0
    %492 = vmatprep.subr.mxu0 0.0
    %493 = vmatpush1.msra.mxu0 0.0
    %494 = vmatprep.subr.mxu0 0.0
    %495 = vmatpush1.msra.mxu0 0.0
    %496 = vmatprep.subr.mxu0 0.0
    %497 = vmatpush1.msra.mxu0 0.0
    %498 = vmatprep.subr.mxu0 0.0
    %499 = vmatpush1.msra.mxu0 0.0
    %500 = vmatprep.subr.mxu0 0.0
    %501 = vmatpush1.msra.mxu0 %v165
    %502 = vmatprep.subr.mxu0 0.0
    %503 = vmatpush1.msra.mxu0 %v164
    %504 = vmatprep.subr.mxu0 0.0
    %505 = vmatpush2.msra.mxu0 0.0
    %506 = vmatprep.subr.mxu0 0.0
    %507 = vmatpush2.msra.mxu0 0.0
    %508 = vmatprep.subr.mxu0 0.0
    %509 = vmatpush2.msra.mxu0 0.0
    %510 = vmatprep.subr.mxu0 0.0
    %511 = vmatpush2.msra.mxu0 0.0
    %512 = vmatprep.subr.mxu0 0.0
    %513 = vmatpush2.msra.mxu0 0.0
    %514 = vmatprep.subr.mxu0 0.0
    %515 = vmatpush2.msra.mxu0 0.0
    %516 = vmatprep.subr.mxu0 0.0
    %517 = vmatpush2.msra.mxu0 0.0
    %518 = vmatprep.subr.mxu0 0.0
    %519 = vmatpush2.msra.mxu0 0.0
    %520 = vmatprep.subr.mxu0 0.0
    %521 = vmatpush2.msra.mxu0 0.0
    %522 = vmatprep.subr.mxu0 0.0
    %523 = vmatpush2.msra.mxu0 0.0
    %524 = vmatprep.subr.mxu0 0.0
    %525 = vmatpush2.msra.mxu0 0.0
    %526 = vmatprep.subr.mxu0 0.0
    %527 = vmatpush2.msra.mxu0 0.0
    %528 = vmatprep.subr.mxu0 0.0
    %529 = vmatpush2.msra.mxu0 0.0
    %530 = vmatprep.subr.mxu0 0.0
    %531 = vmatpush2.msra.mxu0 0.0
    %532 = vmatprep.subr.mxu0 0.0
    %533 = vmatpush2.msra.mxu0 0.0
    %534 = vmatprep.subr.mxu0 0.0
    %535 = vmatpush2.msra.mxu0 0.0
    %536 = vmatprep.mubr.f32.mxu0 0.0
    %537 = vmatmul.mubr.f32.gmra.mxu0 %v470
    %v538 = vpop.f32.mrf.mxu0
    %v539 = vadd.f32 %v466, %v538
    %v540 = vpop.f32.mrf.mxu0
    %541 = vdwg.mxu0
    %v542 = vadd.f32 %v163, %v539
    %v543 = vsel %vm468, %v542, 0.0
    %544 = vadd.xlane.f32.xlu0 %v543
    %v545 = vpop.xlane.xlu0 %544
    %v546 = vrcp.pop 16.0
    %v547 = vmul.f32 %v545, %v546
    %v548 = vsub.f32 %v542, %v547
    %v549 = vmul.f32 %v548, %v548
    %v550 = vsel %vm468, %v549, 0.0
    %551 = vadd.xlane.f32.xlu0 %v550
    %v552 = vpop.xlane.xlu0 %551
    %v553 = vmul.f32 %v552, %v546
    %v554 = vadd.f32 %v553, 1e-05
    %v555 = vrsqrt.pop %v554
    %v556 = vmul.f32 %v548, %v555
    %v558 = vlaneseq
    %v559 = vshrl.u32 %v558, 7
    %v560 = vsub.s32 0, %v559
    %v561 = vrot.slane %v167, %v560
    %v563 = vmul.f32 %v556, %v561
    %v565 = vlaneseq
    %v566 = vshrl.u32 %v565, 7
    %v567 = vsub.s32 0, %v566
    %v568 = vrot.slane %v168, %v567
    %v570 = vadd.f32 %v563, %v568
    %v573 = vlaneseq
    %v574 = vshrl.u32 %v573, 7
    %v575 = vsub.s32 0, %v574
    %v576 = vrot.slane %v201, %v575
    %v577 = vlaneseq
    %v578 = vshrl.u32 %v577, 7
    %v579 = vsub.s32 1, %v578
    %v580 = vrot.slane %v201, %v579
    %v581 = vlaneseq
    %v582 = vshrl.u32 %v581, 7
    %v583 = vsub.s32 2, %v582
    %v584 = vrot.slane %v201, %v583
    %v585 = vlaneseq
    %v586 = vshrl.u32 %v585, 7
    %v587 = vsub.s32 3, %v586
    %v588 = vrot.slane %v201, %v587
    %v589 = vlaneseq
    %v590 = vshrl.u32 %v589, 7
    %v591 = vsub.s32 4, %v590
    %v592 = vrot.slane %v201, %v591
    %v593 = vlaneseq
    %v594 = vshrl.u32 %v593, 7
    %v595 = vsub.s32 5, %v594
    %v596 = vrot.slane %v201, %v595
    %v597 = vlaneseq
    %v598 = vshrl.u32 %v597, 7
    %v599 = vsub.s32 6, %v598
    %v600 = vrot.slane %v201, %v599
    %v601 = vlaneseq
    %v602 = vshrl.u32 %v601, 7
    %v603 = vsub.s32 7, %v602
    %v604 = vrot.slane %v201, %v603
    %v605 = vlaneseq
    %v606 = vshrl.u32 %v605, 7
    %v607 = vsub.s32 0, %v606
    %v608 = vrot.slane %v202, %v607
    %v609 = vlaneseq
    %v610 = vshrl.u32 %v609, 7
    %v611 = vsub.s32 1, %v610
    %v612 = vrot.slane %v202, %v611
    %v613 = vlaneseq
    %v614 = vshrl.u32 %v613, 7
    %v615 = vsub.s32 2, %v614
    %v616 = vrot.slane %v202, %v615
    %v617 = vlaneseq
    %v618 = vshrl.u32 %v617, 7
    %v619 = vsub.s32 3, %v618
    %v620 = vrot.slane %v202, %v619
    %v621 = vlaneseq
    %v622 = vshrl.u32 %v621, 7
    %v623 = vsub.s32 4, %v622
    %v624 = vrot.slane %v202, %v623
    %v625 = vlaneseq
    %v626 = vshrl.u32 %v625, 7
    %v627 = vsub.s32 5, %v626
    %v628 = vrot.slane %v202, %v627
    %v629 = vlaneseq
    %v630 = vshrl.u32 %v629, 7
    %v631 = vsub.s32 6, %v630
    %v632 = vrot.slane %v202, %v631
    %v633 = vlaneseq
    %v634 = vshrl.u32 %v633, 7
    %v635 = vsub.s32 7, %v634
    %v636 = vrot.slane %v202, %v635
    %v654 = vsel %vm468, %v570, 0
    %656 = vmatprep.subr.mxu0 0.0
    %657 = vmatpush1.msra.mxu0 0.0
    %658 = vmatprep.subr.mxu0 0.0
    %659 = vmatpush1.msra.mxu0 0.0
    %660 = vmatprep.subr.mxu0 0.0
    %661 = vmatpush1.msra.mxu0 0.0
    %662 = vmatprep.subr.mxu0 0.0
    %663 = vmatpush1.msra.mxu0 0.0
    %664 = vmatprep.subr.mxu0 0.0
    %665 = vmatpush1.msra.mxu0 0.0
    %666 = vmatprep.subr.mxu0 0.0
    %667 = vmatpush1.msra.mxu0 0.0
    %668 = vmatprep.subr.mxu0 0.0
    %669 = vmatpush1.msra.mxu0 0.0
    %670 = vmatprep.subr.mxu0 0.0
    %671 = vmatpush1.msra.mxu0 0.0
    %672 = vmatprep.subr.mxu0 0.0
    %673 = vmatpush1.msra.mxu0 0.0
    %674 = vmatprep.subr.mxu0 0.0
    %675 = vmatpush1.msra.mxu0 0.0
    %676 = vmatprep.subr.mxu0 0.0
    %677 = vmatpush1.msra.mxu0 0.0
    %678 = vmatprep.subr.mxu0 0.0
    %679 = vmatpush1.msra.mxu0 0.0
    %680 = vmatprep.subr.mxu0 0.0
    %681 = vmatpush1.msra.mxu0 0.0
    %682 = vmatprep.subr.mxu0 0.0
    %683 = vmatpush1.msra.mxu0 0.0
    %684 = vmatprep.subr.mxu0 %v186
    %685 = vmatpush1.msra.mxu0 %v185
    %686 = vmatprep.subr.mxu0 %v170
    %687 = vmatpush1.msra.mxu0 %v169
    %688 = vmatprep.subr.mxu0 0.0
    %689 = vmatpush2.msra.mxu0 0.0
    %690 = vmatprep.subr.mxu0 0.0
    %691 = vmatpush2.msra.mxu0 0.0
    %692 = vmatprep.subr.mxu0 0.0
    %693 = vmatpush2.msra.mxu0 0.0
    %694 = vmatprep.subr.mxu0 0.0
    %695 = vmatpush2.msra.mxu0 0.0
    %696 = vmatprep.subr.mxu0 0.0
    %697 = vmatpush2.msra.mxu0 0.0
    %698 = vmatprep.subr.mxu0 0.0
    %699 = vmatpush2.msra.mxu0 0.0
    %700 = vmatprep.subr.mxu0 0.0
    %701 = vmatpush2.msra.mxu0 0.0
    %702 = vmatprep.subr.mxu0 0.0
    %703 = vmatpush2.msra.mxu0 0.0
    %704 = vmatprep.subr.mxu0 0.0
    %705 = vmatpush2.msra.mxu0 0.0
    %706 = vmatprep.subr.mxu0 0.0
    %707 = vmatpush2.msra.mxu0 0.0
    %708 = vmatprep.subr.mxu0 0.0
    %709 = vmatpush2.msra.mxu0 0.0
    %710 = vmatprep.subr.mxu0 0.0
    %711 = vmatpush2.msra.mxu0 0.0
    %712 = vmatprep.subr.mxu0 0.0
    %713 = vmatpush2.msra.mxu0 0.0
    %714 = vmatprep.subr.mxu0 0.0
    %715 = vmatpush2.msra.mxu0 0.0
    %716 = vmatprep.subr.mxu0 0.0
    %717 = vmatpush2.msra.mxu0 0.0
    %718 = vmatprep.subr.mxu0 0.0
    %719 = vmatpush2.msra.mxu0 0.0
    %720 = vmatprep.mubr.f32.mxu0 0.0
    %721 = vmatmul.mubr.f32.gmra.mxu0 %v654
    %v722 = vpop.f32.mrf.mxu0
    %v723 = vadd.f32 %v576, %v722
    %v724 = vpop.f32.mrf.mxu0
    %v725 = vadd.f32 %v580, %v724
    %726 = vdwg.mxu0
    %727 = vmatprep.subr.mxu0 0.0
    %728 = vmatpush1.msra.mxu0 0.0
    %729 = vmatprep.subr.mxu0 0.0
    %730 = vmatpush1.msra.mxu0 0.0
    %731 = vmatprep.subr.mxu0 0.0
    %732 = vmatpush1.msra.mxu0 0.0
    %733 = vmatprep.subr.mxu0 0.0
    %734 = vmatpush1.msra.mxu0 0.0
    %735 = vmatprep.subr.mxu0 0.0
    %736 = vmatpush1.msra.mxu0 0.0
    %737 = vmatprep.subr.mxu0 0.0
    %738 = vmatpush1.msra.mxu0 0.0
    %739 = vmatprep.subr.mxu0 0.0
    %740 = vmatpush1.msra.mxu0 0.0
    %741 = vmatprep.subr.mxu0 0.0
    %742 = vmatpush1.msra.mxu0 0.0
    %743 = vmatprep.subr.mxu0 0.0
    %744 = vmatpush1.msra.mxu0 0.0
    %745 = vmatprep.subr.mxu0 0.0
    %746 = vmatpush1.msra.mxu0 0.0
    %747 = vmatprep.subr.mxu0 0.0
    %748 = vmatpush1.msra.mxu0 0.0
    %749 = vmatprep.subr.mxu0 0.0
    %750 = vmatpush1.msra.mxu0 0.0
    %751 = vmatprep.subr.mxu0 0.0
    %752 = vmatpush1.msra.mxu0 0.0
    %753 = vmatprep.subr.mxu0 0.0
    %754 = vmatpush1.msra.mxu0 0.0
    %755 = vmatprep.subr.mxu0 %v188
    %756 = vmatpush1.msra.mxu0 %v187
    %757 = vmatprep.subr.mxu0 %v172
    %758 = vmatpush1.msra.mxu0 %v171
    %759 = vmatprep.subr.mxu0 0.0
    %760 = vmatpush2.msra.mxu0 0.0
    %761 = vmatprep.subr.mxu0 0.0
    %762 = vmatpush2.msra.mxu0 0.0
    %763 = vmatprep.subr.mxu0 0.0
    %764 = vmatpush2.msra.mxu0 0.0
    %765 = vmatprep.subr.mxu0 0.0
    %766 = vmatpush2.msra.mxu0 0.0
    %767 = vmatprep.subr.mxu0 0.0
    %768 = vmatpush2.msra.mxu0 0.0
    %769 = vmatprep.subr.mxu0 0.0
    %770 = vmatpush2.msra.mxu0 0.0
    %771 = vmatprep.subr.mxu0 0.0
    %772 = vmatpush2.msra.mxu0 0.0
    %773 = vmatprep.subr.mxu0 0.0
    %774 = vmatpush2.msra.mxu0 0.0
    %775 = vmatprep.subr.mxu0 0.0
    %776 = vmatpush2.msra.mxu0 0.0
    %777 = vmatprep.subr.mxu0 0.0
    %778 = vmatpush2.msra.mxu0 0.0
    %779 = vmatprep.subr.mxu0 0.0
    %780 = vmatpush2.msra.mxu0 0.0
    %781 = vmatprep.subr.mxu0 0.0
    %782 = vmatpush2.msra.mxu0 0.0
    %783 = vmatprep.subr.mxu0 0.0
    %784 = vmatpush2.msra.mxu0 0.0
    %785 = vmatprep.subr.mxu0 0.0
    %786 = vmatpush2.msra.mxu0 0.0
    %787 = vmatprep.subr.mxu0 0.0
    %788 = vmatpush2.msra.mxu0 0.0
    %789 = vmatprep.subr.mxu0 0.0
    %790 = vmatpush2.msra.mxu0 0.0
    %791 = vmatprep.mubr.f32.mxu0 0.0
    %792 = vmatmul.mubr.f32.gmra.mxu0 %v654
    %v793 = vpop.f32.mrf.mxu0
    %v794 = vadd.f32 %v584, %v793
    %v795 = vpop.f32.mrf.mxu0
    %v796 = vadd.f32 %v588, %v795
    %797 = vdwg.mxu0
    %798 = vmatprep.subr.mxu0 0.0
    %799 = vmatpush1.msra.mxu0 0.0
    %800 = vmatprep.subr.mxu0 0.0
    %801 = vmatpush1.msra.mxu0 0.0
    %802 = vmatprep.subr.mxu0 0.0
    %803 = vmatpush1.msra.mxu0 0.0
    %804 = vmatprep.subr.mxu0 0.0
    %805 = vmatpush1.msra.mxu0 0.0
    %806 = vmatprep.subr.mxu0 0.0
    %807 = vmatpush1.msra.mxu0 0.0
    %808 = vmatprep.subr.mxu0 0.0
    %809 = vmatpush1.msra.mxu0 0.0
    %810 = vmatprep.subr.mxu0 0.0
    %811 = vmatpush1.msra.mxu0 0.0
    %812 = vmatprep.subr.mxu0 0.0
    %813 = vmatpush1.msra.mxu0 0.0
    %814 = vmatprep.subr.mxu0 0.0
    %815 = vmatpush1.msra.mxu0 0.0
    %816 = vmatprep.subr.mxu0 0.0
    %817 = vmatpush1.msra.mxu0 0.0
    %818 = vmatprep.subr.mxu0 0.0
    %819 = vmatpush1.msra.mxu0 0.0
    %820 = vmatprep.subr.mxu0 0.0
    %821 = vmatpush1.msra.mxu0 0.0
    %822 = vmatprep.subr.mxu0 0.0
    %823 = vmatpush1.msra.mxu0 0.0
    %824 = vmatprep.subr.mxu0 0.0
    %825 = vmatpush1.msra.mxu0 0.0
    %826 = vmatprep.subr.mxu0 %v190
    %827 = vmatpush1.msra.mxu0 %v189
    %828 = vmatprep.subr.mxu0 %v174
    %829 = vmatpush1.msra.mxu0 %v173
    %830 = vmatprep.subr.mxu0 0.0
    %831 = vmatpush2.msra.mxu0 0.0
    %832 = vmatprep.subr.mxu0 0.0
    %833 = vmatpush2.msra.mxu0 0.0
    %834 = vmatprep.subr.mxu0 0.0
    %835 = vmatpush2.msra.mxu0 0.0
    %836 = vmatprep.subr.mxu0 0.0
    %837 = vmatpush2.msra.mxu0 0.0
    %838 = vmatprep.subr.mxu0 0.0
    %839 = vmatpush2.msra.mxu0 0.0
    %840 = vmatprep.subr.mxu0 0.0
    %841 = vmatpush2.msra.mxu0 0.0
    %842 = vmatprep.subr.mxu0 0.0
    %843 = vmatpush2.msra.mxu0 0.0
    %844 = vmatprep.subr.mxu0 0.0
    %845 = vmatpush2.msra.mxu0 0.0
    %846 = vmatprep.subr.mxu0 0.0
    %847 = vmatpush2.msra.mxu0 0.0
    %848 = vmatprep.subr.mxu0 0.0
    %849 = vmatpush2.msra.mxu0 0.0
    %850 = vmatprep.subr.mxu0 0.0
    %851 = vmatpush2.msra.mxu0 0.0
    %852 = vmatprep.subr.mxu0 0.0
    %853 = vmatpush2.msra.mxu0 0.0
    %854 = vmatprep.subr.mxu0 0.0
    %855 = vmatpush2.msra.mxu0 0.0
    %856 = vmatprep.subr.mxu0 0.0
    %857 = vmatpush2.msra.mxu0 0.0
    %858 = vmatprep.subr.mxu0 0.0
    %859 = vmatpush2.msra.mxu0 0.0
    %860 = vmatprep.subr.mxu0 0.0
    %861 = vmatpush2.msra.mxu0 0.0
    %862 = vmatprep.mubr.f32.mxu0 0.0
    %863 = vmatmul.mubr.f32.gmra.mxu0 %v654
    %v864 = vpop.f32.mrf.mxu0
    %v865 = vadd.f32 %v592, %v864
    %v866 = vpop.f32.mrf.mxu0
    %v867 = vadd.f32 %v596, %v866
    %868 = vdwg.mxu0
    %869 = vmatprep.subr.mxu0 0.0
    %870 = vmatpush1.msra.mxu0 0.0
    %871 = vmatprep.subr.mxu0 0.0
    %872 = vmatpush1.msra.mxu0 0.0
    %873 = vmatprep.subr.mxu0 0.0
    %874 = vmatpush1.msra.mxu0 0.0
    %875 = vmatprep.subr.mxu0 0.0
    %876 = vmatpush1.msra.mxu0 0.0
    %877 = vmatprep.subr.mxu0 0.0
    %878 = vmatpush1.msra.mxu0 0.0
    %879 = vmatprep.subr.mxu0 0.0
    %880 = vmatpush1.msra.mxu0 0.0
    %881 = vmatprep.subr.mxu0 0.0
    %882 = vmatpush1.msra.mxu0 0.0
    %883 = vmatprep.subr.mxu0 0.0
    %884 = vmatpush1.msra.mxu0 0.0
    %885 = vmatprep.subr.mxu0 0.0
    %886 = vmatpush1.msra.mxu0 0.0
    %887 = vmatprep.subr.mxu0 0.0
    %888 = vmatpush1.msra.mxu0 0.0
    %889 = vmatprep.subr.mxu0 0.0
    %890 = vmatpush1.msra.mxu0 0.0
    %891 = vmatprep.subr.mxu0 0.0
    %892 = vmatpush1.msra.mxu0 0.0
    %893 = vmatprep.subr.mxu0 0.0
    %894 = vmatpush1.msra.mxu0 0.0
    %895 = vmatprep.subr.mxu0 0.0
    %896 = vmatpush1.msra.mxu0 0.0
    %897 = vmatprep.subr.mxu0 %v192
    %898 = vmatpush1.msra.mxu0 %v191
    %899 = vmatprep.subr.mxu0 %v176
    %900 = vmatpush1.msra.mxu0 %v175
    %901 = vmatprep.subr.mxu0 0.0
    %902 = vmatpush2.msra.mxu0 0.0
    %903 = vmatprep.subr.mxu0 0.0
    %904 = vmatpush2.msra.mxu0 0.0
    %905 = vmatprep.subr.mxu0 0.0
    %906 = vmatpush2.msra.mxu0 0.0
    %907 = vmatprep.subr.mxu0 0.0
    %908 = vmatpush2.msra.mxu0 0.0
    %909 = vmatprep.subr.mxu0 0.0
    %910 = vmatpush2.msra.mxu0 0.0
    %911 = vmatprep.subr.mxu0 0.0
    %912 = vmatpush2.msra.mxu0 0.0
    %913 = vmatprep.subr.mxu0 0.0
    %914 = vmatpush2.msra.mxu0 0.0
    %915 = vmatprep.subr.mxu0 0.0
    %916 = vmatpush2.msra.mxu0 0.0
    %917 = vmatprep.subr.mxu0 0.0
    %918 = vmatpush2.msra.mxu0 0.0
    %919 = vmatprep.subr.mxu0 0.0
    %920 = vmatpush2.msra.mxu0 0.0
    %921 = vmatprep.subr.mxu0 0.0
    %922 = vmatpush2.msra.mxu0 0.0
    %923 = vmatprep.subr.mxu0 0.0
    %924 = vmatpush2.msra.mxu0 0.0
    %925 = vmatprep.subr.mxu0 0.0
    %926 = vmatpush2.msra.mxu0 0.0
    %927 = vmatprep.subr.mxu0 0.0
    %928 = vmatpush2.msra.mxu0 0.0
    %929 = vmatprep.subr.mxu0 0.0
    %930 = vmatpush2.msra.mxu0 0.0
    %931 = vmatprep.subr.mxu0 0.0
    %932 = vmatpush2.msra.mxu0 0.0
    %933 = vmatprep.mubr.f32.mxu0 0.0
    %934 = vmatmul.mubr.f32.gmra.mxu0 %v654
    %v935 = vpop.f32.mrf.mxu0
    %v936 = vadd.f32 %v600, %v935
    %v937 = vpop.f32.mrf.mxu0
    %v938 = vadd.f32 %v604, %v937
    %939 = vdwg.mxu0
    %940 = vmatprep.subr.mxu0 0.0
    %941 = vmatpush1.msra.mxu0 0.0
    %942 = vmatprep.subr.mxu0 0.0
    %943 = vmatpush1.msra.mxu0 0.0
    %944 = vmatprep.subr.mxu0 0.0
    %945 = vmatpush1.msra.mxu0 0.0
    %946 = vmatprep.subr.mxu0 0.0
    %947 = vmatpush1.msra.mxu0 0.0
    %948 = vmatprep.subr.mxu0 0.0
    %949 = vmatpush1.msra.mxu0 0.0
    %950 = vmatprep.subr.mxu0 0.0
    %951 = vmatpush1.msra.mxu0 0.0
    %952 = vmatprep.subr.mxu0 0.0
    %953 = vmatpush1.msra.mxu0 0.0
    %954 = vmatprep.subr.mxu0 0.0
    %955 = vmatpush1.msra.mxu0 0.0
    %956 = vmatprep.subr.mxu0 0.0
    %957 = vmatpush1.msra.mxu0 0.0
    %958 = vmatprep.subr.mxu0 0.0
    %959 = vmatpush1.msra.mxu0 0.0
    %960 = vmatprep.subr.mxu0 0.0
    %961 = vmatpush1.msra.mxu0 0.0
    %962 = vmatprep.subr.mxu0 0.0
    %963 = vmatpush1.msra.mxu0 0.0
    %964 = vmatprep.subr.mxu0 0.0
    %965 = vmatpush1.msra.mxu0 0.0
    %966 = vmatprep.subr.mxu0 0.0
    %967 = vmatpush1.msra.mxu0 0.0
    %968 = vmatprep.subr.mxu0 %v194
    %969 = vmatpush1.msra.mxu0 %v193
    %970 = vmatprep.subr.mxu0 %v178
    %971 = vmatpush1.msra.mxu0 %v177
    %972 = vmatprep.subr.mxu0 0.0
    %973 = vmatpush2.msra.mxu0 0.0
    %974 = vmatprep.subr.mxu0 0.0
    %975 = vmatpush2.msra.mxu0 0.0
    %976 = vmatprep.subr.mxu0 0.0
    %977 = vmatpush2.msra.mxu0 0.0
    %978 = vmatprep.subr.mxu0 0.0
    %979 = vmatpush2.msra.mxu0 0.0
    %980 = vmatprep.subr.mxu0 0.0
    %981 = vmatpush2.msra.mxu0 0.0
    %982 = vmatprep.subr.mxu0 0.0
    %983 = vmatpush2.msra.mxu0 0.0
    %984 = vmatprep.subr.mxu0 0.0
    %985 = vmatpush2.msra.mxu0 0.0
    %986 = vmatprep.subr.mxu0 0.0
    %987 = vmatpush2.msra.mxu0 0.0
    %988 = vmatprep.subr.mxu0 0.0
    %989 = vmatpush2.msra.mxu0 0.0
    %990 = vmatprep.subr.mxu0 0.0
    %991 = vmatpush2.msra.mxu0 0.0
    %992 = vmatprep.subr.mxu0 0.0
    %993 = vmatpush2.msra.mxu0 0.0
    %994 = vmatprep.subr.mxu0 0.0
    %995 = vmatpush2.msra.mxu0 0.0
    %996 = vmatprep.subr.mxu0 0.0
    %997 = vmatpush2.msra.mxu0 0.0
    %998 = vmatprep.subr.mxu0 0.0
    %999 = vmatpush2.msra.mxu0 0.0
    %1000 = vmatprep.subr.mxu0 0.0
    %1001 = vmatpush2.msra.mxu0 0.0
    %1002 = vmatprep.subr.mxu0 0.0
    %1003 = vmatpush2.msra.mxu0 0.0
    %1004 = vmatprep.mubr.f32.mxu0 0.0
    %1005 = vmatmul.mubr.f32.gmra.mxu0 %v654
    %v1006 = vpop.f32.mrf.mxu0
    %v1007 = vadd.f32 %v608, %v1006
    %v1008 = vpop.f32.mrf.mxu0
    %v1009 = vadd.f32 %v612, %v1008
    %1010 = vdwg.mxu0
    %1011 = vmatprep.subr.mxu0 0.0
    %1012 = vmatpush1.msra.mxu0 0.0
    %1013 = vmatprep.subr.mxu0 0.0
    %1014 = vmatpush1.msra.mxu0 0.0
    %1015 = vmatprep.subr.mxu0 0.0
    %1016 = vmatpush1.msra.mxu0 0.0
    %1017 = vmatprep.subr.mxu0 0.0
    %1018 = vmatpush1.msra.mxu0 0.0
    %1019 = vmatprep.subr.mxu0 0.0
    %1020 = vmatpush1.msra.mxu0 0.0
    %1021 = vmatprep.subr.mxu0 0.0
    %1022 = vmatpush1.msra.mxu0 0.0
    %1023 = vmatprep.subr.mxu0 0.0
    %1024 = vmatpush1.msra.mxu0 0.0
    %1025 = vmatprep.subr.mxu0 0.0
    %1026 = vmatpush1.msra.mxu0 0.0
    %1027 = vmatprep.subr.mxu0 0.0
    %1028 = vmatpush1.msra.mxu0 0.0
    %1029 = vmatprep.subr.mxu0 0.0
    %1030 = vmatpush1.msra.mxu0 0.0
    %1031 = vmatprep.subr.mxu0 0.0
    %1032 = vmatpush1.msra.mxu0 0.0
    %1033 = vmatprep.subr.mxu0 0.0
    %1034 = vmatpush1.msra.mxu0 0.0
    %1035 = vmatprep.subr.mxu0 0.0
    %1036 = vmatpush1.msra.mxu0 0.0
    %1037 = vmatprep.subr.mxu0 0.0
    %1038 = vmatpush1.msra.mxu0 0.0
    %1039 = vmatprep.subr.mxu0 %v196
    %1040 = vmatpush1.msra.mxu0 %v195
    %1041 = vmatprep.subr.mxu0 %v180
    %1042 = vmatpush1.msra.mxu0 %v179
    %1043 = vmatprep.subr.mxu0 0.0
    %1044 = vmatpush2.msra.mxu0 0.0
    %1045 = vmatprep.subr.mxu0 0.0
    %1046 = vmatpush2.msra.mxu0 0.0
    %1047 = vmatprep.subr.mxu0 0.0
    %1048 = vmatpush2.msra.mxu0 0.0
    %1049 = vmatprep.subr.mxu0 0.0
    %1050 = vmatpush2.msra.mxu0 0.0
    %1051 = vmatprep.subr.mxu0 0.0
    %1052 = vmatpush2.msra.mxu0 0.0
    %1053 = vmatprep.subr.mxu0 0.0
    %1054 = vmatpush2.msra.mxu0 0.0
    %1055 = vmatprep.subr.mxu0 0.0
    %1056 = vmatpush2.msra.mxu0 0.0
    %1057 = vmatprep.subr.mxu0 0.0
    %1058 = vmatpush2.msra.mxu0 0.0
    %1059 = vmatprep.subr.mxu0 0.0
    %1060 = vmatpush2.msra.mxu0 0.0
    %1061 = vmatprep.subr.mxu0 0.0
    %1062 = vmatpush2.msra.mxu0 0.0
    %1063 = vmatprep.subr.mxu0 0.0
    %1064 = vmatpush2.msra.mxu0 0.0
    %1065 = vmatprep.subr.mxu0 0.0
    %1066 = vmatpush2.msra.mxu0 0.0
    %1067 = vmatprep.subr.mxu0 0.0
    %1068 = vmatpush2.msra.mxu0 0.0
    %1069 = vmatprep.subr.mxu0 0.0
    %1070 = vmatpush2.msra.mxu0 0.0
    %1071 = vmatprep.subr.mxu0 0.0
    %1072 = vmatpush2.msra.mxu0 0.0
    %1073 = vmatprep.subr.mxu0 0.0
    %1074 = vmatpush2.msra.mxu0 0.0
    %1075 = vmatprep.mubr.f32.mxu0 0.0
    %1076 = vmatmul.mubr.f32.gmra.mxu0 %v654
    %v1077 = vpop.f32.mrf.mxu0
    %v1078 = vadd.f32 %v616, %v1077
    %v1079 = vpop.f32.mrf.mxu0
    %v1080 = vadd.f32 %v620, %v1079
    %1081 = vdwg.mxu0
    %1082 = vmatprep.subr.mxu0 0.0
    %1083 = vmatpush1.msra.mxu0 0.0
    %1084 = vmatprep.subr.mxu0 0.0
    %1085 = vmatpush1.msra.mxu0 0.0
    %1086 = vmatprep.subr.mxu0 0.0
    %1087 = vmatpush1.msra.mxu0 0.0
    %1088 = vmatprep.subr.mxu0 0.0
    %1089 = vmatpush1.msra.mxu0 0.0
    %1090 = vmatprep.subr.mxu0 0.0
    %1091 = vmatpush1.msra.mxu0 0.0
    %1092 = vmatprep.subr.mxu0 0.0
    %1093 = vmatpush1.msra.mxu0 0.0
    %1094 = vmatprep.subr.mxu0 0.0
    %1095 = vmatpush1.msra.mxu0 0.0
    %1096 = vmatprep.subr.mxu0 0.0
    %1097 = vmatpush1.msra.mxu0 0.0
    %1098 = vmatprep.subr.mxu0 0.0
    %1099 = vmatpush1.msra.mxu0 0.0
    %1100 = vmatprep.subr.mxu0 0.0
    %1101 = vmatpush1.msra.mxu0 0.0
    %1102 = vmatprep.subr.mxu0 0.0
    %1103 = vmatpush1.msra.mxu0 0.0
    %1104 = vmatprep.subr.mxu0 0.0
    %1105 = vmatpush1.msra.mxu0 0.0
    %1106 = vmatprep.subr.mxu0 0.0
    %1107 = vmatpush1.msra.mxu0 0.0
    %1108 = vmatprep.subr.mxu0 0.0
    %1109 = vmatpush1.msra.mxu0 0.0
    %1110 = vmatprep.subr.mxu0 %v198
    %1111 = vmatpush1.msra.mxu0 %v197
    %1112 = vmatprep.subr.mxu0 %v182
    %1113 = vmatpush1.msra.mxu0 %v181
    %1114 = vmatprep.subr.mxu0 0.0
    %1115 = vmatpush2.msra.mxu0 0.0
    %1116 = vmatprep.subr.mxu0 0.0
    %1117 = vmatpush2.msra.mxu0 0.0
    %1118 = vmatprep.subr.mxu0 0.0
    %1119 = vmatpush2.msra.mxu0 0.0
    %1120 = vmatprep.subr.mxu0 0.0
    %1121 = vmatpush2.msra.mxu0 0.0
    %1122 = vmatprep.subr.mxu0 0.0
    %1123 = vmatpush2.msra.mxu0 0.0
    %1124 = vmatprep.subr.mxu0 0.0
    %1125 = vmatpush2.msra.mxu0 0.0
    %1126 = vmatprep.subr.mxu0 0.0
    %1127 = vmatpush2.msra.mxu0 0.0
    %1128 = vmatprep.subr.mxu0 0.0
    %1129 = vmatpush2.msra.mxu0 0.0
    %1130 = vmatprep.subr.mxu0 0.0
    %1131 = vmatpush2.msra.mxu0 0.0
    %1132 = vmatprep.subr.mxu0 0.0
    %1133 = vmatpush2.msra.mxu0 0.0
    %1134 = vmatprep.subr.mxu0 0.0
    %1135 = vmatpush2.msra.mxu0 0.0
    %1136 = vmatprep.subr.mxu0 0.0
    %1137 = vmatpush2.msra.mxu0 0.0
    %1138 = vmatprep.subr.mxu0 0.0
    %1139 = vmatpush2.msra.mxu0 0.0
    %1140 = vmatprep.subr.mxu0 0.0
    %1141 = vmatpush2.msra.mxu0 0.0
    %1142 = vmatprep.subr.mxu0 0.0
    %1143 = vmatpush2.msra.mxu0 0.0
    %1144 = vmatprep.subr.mxu0 0.0
    %1145 = vmatpush2.msra.mxu0 0.0
    %1146 = vmatprep.mubr.f32.mxu0 0.0
    %1147 = vmatmul.mubr.f32.gmra.mxu0 %v654
    %v1148 = vpop.f32.mrf.mxu0
    %v1149 = vadd.f32 %v624, %v1148
    %v1150 = vpop.f32.mrf.mxu0
    %v1151 = vadd.f32 %v628, %v1150
    %1152 = vdwg.mxu0
    %1153 = vmatprep.subr.mxu0 0.0
    %1154 = vmatpush1.msra.mxu0 0.0
    %1155 = vmatprep.subr.mxu0 0.0
    %1156 = vmatpush1.msra.mxu0 0.0
    %1157 = vmatprep.subr.mxu0 0.0
    %1158 = vmatpush1.msra.mxu0 0.0
    %1159 = vmatprep.subr.mxu0 0.0
    %1160 = vmatpush1.msra.mxu0 0.0
    %1161 = vmatprep.subr.mxu0 0.0
    %1162 = vmatpush1.msra.mxu0 0.0
    %1163 = vmatprep.subr.mxu0 0.0
    %1164 = vmatpush1.msra.mxu0 0.0
    %1165 = vmatprep.subr.mxu0 0.0
    %1166 = vmatpush1.msra.mxu0 0.0
    %1167 = vmatprep.subr.mxu0 0.0
    %1168 = vmatpush1.msra.mxu0 0.0
    %1169 = vmatprep.subr.mxu0 0.0
    %1170 = vmatpush1.msra.mxu0 0.0
    %1171 = vmatprep.subr.mxu0 0.0
    %1172 = vmatpush1.msra.mxu0 0.0
    %1173 = vmatprep.subr.mxu0 0.0
    %1174 = vmatpush1.msra.mxu0 0.0
    %1175 = vmatprep.subr.mxu0 0.0
    %1176 = vmatpush1.msra.mxu0 0.0
    %1177 = vmatprep.subr.mxu0 0.0
    %1178 = vmatpush1.msra.mxu0 0.0
    %1179 = vmatprep.subr.mxu0 0.0
    %1180 = vmatpush1.msra.mxu0 0.0
    %1181 = vmatprep.subr.mxu0 %v200
    %1182 = vmatpush1.msra.mxu0 %v199
    %1183 = vmatprep.subr.mxu0 %v184
    %1184 = vmatpush1.msra.mxu0 %v183
    %1185 = vmatprep.subr.mxu0 0.0
    %1186 = vmatpush2.msra.mxu0 0.0
    %1187 = vmatprep.subr.mxu0 0.0
    %1188 = vmatpush2.msra.mxu0 0.0
    %1189 = vmatprep.subr.mxu0 0.0
    %1190 = vmatpush2.msra.mxu0 0.0
    %1191 = vmatprep.subr.mxu0 0.0
    %1192 = vmatpush2.msra.mxu0 0.0
    %1193 = vmatprep.subr.mxu0 0.0
    %1194 = vmatpush2.msra.mxu0 0.0
    %1195 = vmatprep.subr.mxu0 0.0
    %1196 = vmatpush2.msra.mxu0 0.0
    %1197 = vmatprep.subr.mxu0 0.0
    %1198 = vmatpush2.msra.mxu0 0.0
    %1199 = vmatprep.subr.mxu0 0.0
    %1200 = vmatpush2.msra.mxu0 0.0
    %1201 = vmatprep.subr.mxu0 0.0
    %1202 = vmatpush2.msra.mxu0 0.0
    %1203 = vmatprep.subr.mxu0 0.0
    %1204 = vmatpush2.msra.mxu0 0.0
    %1205 = vmatprep.subr.mxu0 0.0
    %1206 = vmatpush2.msra.mxu0 0.0
    %1207 = vmatprep.subr.mxu0 0.0
    %1208 = vmatpush2.msra.mxu0 0.0
    %1209 = vmatprep.subr.mxu0 0.0
    %1210 = vmatpush2.msra.mxu0 0.0
    %1211 = vmatprep.subr.mxu0 0.0
    %1212 = vmatpush2.msra.mxu0 0.0
    %1213 = vmatprep.subr.mxu0 0.0
    %1214 = vmatpush2.msra.mxu0 0.0
    %1215 = vmatprep.subr.mxu0 0.0
    %1216 = vmatpush2.msra.mxu0 0.0
    %1217 = vmatprep.mubr.f32.mxu0 0.0
    %1218 = vmatmul.mubr.f32.gmra.mxu0 %v654
    %v1219 = vpop.f32.mrf.mxu0
    %v1220 = vadd.f32 %v632, %v1219
    %v1221 = vpop.f32.mrf.mxu0
    %v1222 = vadd.f32 %v636, %v1221
    %1223 = vdwg.mxu0
    %v1224 = vmax.f32 %v723, 0.0
    %v1225 = vmax.f32 %v725, 0.0
    %v1226 = vmax.f32 %v794, 0.0
    %v1227 = vmax.f32 %v796, 0.0
    %v1228 = vmax.f32 %v865, 0.0
    %v1229 = vmax.f32 %v867, 0.0
    %v1230 = vmax.f32 %v936, 0.0
    %v1231 = vmax.f32 %v938, 0.0
    %v1232 = vmax.f32 %v1007, 0.0
    %v1233 = vmax.f32 %v1009, 0.0
    %v1234 = vmax.f32 %v1078, 0.0
    %v1235 = vmax.f32 %v1080, 0.0
    %v1236 = vmax.f32 %v1149, 0.0
    %v1237 = vmax.f32 %v1151, 0.0
    %v1238 = vmax.f32 %v1220, 0.0
    %v1239 = vmax.f32 %v1222, 0.0
    %v1241 = vlaneseq
    %v1242 = vshrl.u32 %v1241, 7
    %v1243 = vsub.s32 0, %v1242
    %v1244 = vrot.slane %v459, %v1243
    %1246 = vmatprep.subr.mxu0 0.0
    %1247 = vmatpush1.msra.mxu0 %v218
    %1248 = vmatprep.subr.mxu0 0.0
    %1249 = vmatpush1.msra.mxu0 %v217
    %1250 = vmatprep.subr.mxu0 0.0
    %1251 = vmatpush1.msra.mxu0 %v216
    %1252 = vmatprep.subr.mxu0 0.0
    %1253 = vmatpush1.msra.mxu0 %v215
    %1254 = vmatprep.subr.mxu0 0.0
    %1255 = vmatpush1.msra.mxu0 %v214
    %1256 = vmatprep.subr.mxu0 0.0
    %1257 = vmatpush1.msra.mxu0 %v213
    %1258 = vmatprep.subr.mxu0 0.0
    %1259 = vmatpush1.msra.mxu0 %v212
    %1260 = vmatprep.subr.mxu0 0.0
    %1261 = vmatpush1.msra.mxu0 %v211
    %1262 = vmatprep.subr.mxu0 0.0
    %1263 = vmatpush1.msra.mxu0 %v210
    %1264 = vmatprep.subr.mxu0 0.0
    %1265 = vmatpush1.msra.mxu0 %v209
    %1266 = vmatprep.subr.mxu0 0.0
    %1267 = vmatpush1.msra.mxu0 %v208
    %1268 = vmatprep.subr.mxu0 0.0
    %1269 = vmatpush1.msra.mxu0 %v207
    %1270 = vmatprep.subr.mxu0 0.0
    %1271 = vmatpush1.msra.mxu0 %v206
    %1272 = vmatprep.subr.mxu0 0.0
    %1273 = vmatpush1.msra.mxu0 %v205
    %1274 = vmatprep.subr.mxu0 0.0
    %1275 = vmatpush1.msra.mxu0 %v204
    %1276 = vmatprep.subr.mxu0 0.0
    %1277 = vmatpush1.msra.mxu0 %v203
    %1278 = vmatprep.subr.mxu0 0.0
    %1279 = vmatpush2.msra.mxu0 %v234
    %1280 = vmatprep.subr.mxu0 0.0
    %1281 = vmatpush2.msra.mxu0 %v233
    %1282 = vmatprep.subr.mxu0 0.0
    %1283 = vmatpush2.msra.mxu0 %v232
    %1284 = vmatprep.subr.mxu0 0.0
    %1285 = vmatpush2.msra.mxu0 %v231
    %1286 = vmatprep.subr.mxu0 0.0
    %1287 = vmatpush2.msra.mxu0 %v230
    %1288 = vmatprep.subr.mxu0 0.0
    %1289 = vmatpush2.msra.mxu0 %v229
    %1290 = vmatprep.subr.mxu0 0.0
    %1291 = vmatpush2.msra.mxu0 %v228
    %1292 = vmatprep.subr.mxu0 0.0
    %1293 = vmatpush2.msra.mxu0 %v227
    %1294 = vmatprep.subr.mxu0 0.0
    %1295 = vmatpush2.msra.mxu0 %v226
    %1296 = vmatprep.subr.mxu0 0.0
    %1297 = vmatpush2.msra.mxu0 %v225
    %1298 = vmatprep.subr.mxu0 0.0
    %1299 = vmatpush2.msra.mxu0 %v224
    %1300 = vmatprep.subr.mxu0 0.0
    %1301 = vmatpush2.msra.mxu0 %v223
    %1302 = vmatprep.subr.mxu0 0.0
    %1303 = vmatpush2.msra.mxu0 %v222
    %1304 = vmatprep.subr.mxu0 0.0
    %1305 = vmatpush2.msra.mxu0 %v221
    %1306 = vmatprep.subr.mxu0 0.0
    %1307 = vmatpush2.msra.mxu0 %v220
    %1308 = vmatprep.subr.mxu0 0.0
    %1309 = vmatpush2.msra.mxu0 %v219
    %1310 = vmatprep.mubr.f32.mxu0 %v1225
    %1311 = vmatmul.mubr.f32.gmra.mxu0 %v1224
    %v1312 = vpop.f32.mrf.mxu0
    %v1313 = vadd.f32 %v1244, %v1312
    %v1314 = vpop.f32.mrf.mxu0
    %1315 = vdwg.mxu0
    %1316 = vmatprep.subr.mxu0 0.0
    %1317 = vmatpush1.msra.mxu0 %v250
    %1318 = vmatprep.subr.mxu0 0.0
    %1319 = vmatpush1.msra.mxu0 %v249
    %1320 = vmatprep.subr.mxu0 0.0
    %1321 = vmatpush1.msra.mxu0 %v248
    %1322 = vmatprep.subr.mxu0 0.0
    %1323 = vmatpush1.msra.mxu0 %v247
    %1324 = vmatprep.subr.mxu0 0.0
    %1325 = vmatpush1.msra.mxu0 %v246
    %1326 = vmatprep.subr.mxu0 0.0
    %1327 = vmatpush1.msra.mxu0 %v245
    %1328 = vmatprep.subr.mxu0 0.0
    %1329 = vmatpush1.msra.mxu0 %v244
    %1330 = vmatprep.subr.mxu0 0.0
    %1331 = vmatpush1.msra.mxu0 %v243
    %1332 = vmatprep.subr.mxu0 0.0
    %1333 = vmatpush1.msra.mxu0 %v242
    %1334 = vmatprep.subr.mxu0 0.0
    %1335 = vmatpush1.msra.mxu0 %v241
    %1336 = vmatprep.subr.mxu0 0.0
    %1337 = vmatpush1.msra.mxu0 %v240
    %1338 = vmatprep.subr.mxu0 0.0
    %1339 = vmatpush1.msra.mxu0 %v239
    %1340 = vmatprep.subr.mxu0 0.0
    %1341 = vmatpush1.msra.mxu0 %v238
    %1342 = vmatprep.subr.mxu0 0.0
    %1343 = vmatpush1.msra.mxu0 %v237
    %1344 = vmatprep.subr.mxu0 0.0
    %1345 = vmatpush1.msra.mxu0 %v236
    %1346 = vmatprep.subr.mxu0 0.0
    %1347 = vmatpush1.msra.mxu0 %v235
    %1348 = vmatprep.subr.mxu0 0.0
    %1349 = vmatpush2.msra.mxu0 %v266
    %1350 = vmatprep.subr.mxu0 0.0
    %1351 = vmatpush2.msra.mxu0 %v265
    %1352 = vmatprep.subr.mxu0 0.0
    %1353 = vmatpush2.msra.mxu0 %v264
    %1354 = vmatprep.subr.mxu0 0.0
    %1355 = vmatpush2.msra.mxu0 %v263
    %1356 = vmatprep.subr.mxu0 0.0
    %1357 = vmatpush2.msra.mxu0 %v262
    %1358 = vmatprep.subr.mxu0 0.0
    %1359 = vmatpush2.msra.mxu0 %v261
    %1360 = vmatprep.subr.mxu0 0.0
    %1361 = vmatpush2.msra.mxu0 %v260
    %1362 = vmatprep.subr.mxu0 0.0
    %1363 = vmatpush2.msra.mxu0 %v259
    %1364 = vmatprep.subr.mxu0 0.0
    %1365 = vmatpush2.msra.mxu0 %v258
    %1366 = vmatprep.subr.mxu0 0.0
    %1367 = vmatpush2.msra.mxu0 %v257
    %1368 = vmatprep.subr.mxu0 0.0
    %1369 = vmatpush2.msra.mxu0 %v256
    %1370 = vmatprep.subr.mxu0 0.0
    %1371 = vmatpush2.msra.mxu0 %v255
    %1372 = vmatprep.subr.mxu0 0.0
    %1373 = vmatpush2.msra.mxu0 %v254
    %1374 = vmatprep.subr.mxu0 0.0
    %1375 = vmatpush2.msra.mxu0 %v253
    %1376 = vmatprep.subr.mxu0 0.0
    %1377 = vmatpush2.msra.mxu0 %v252
    %1378 = vmatprep.subr.mxu0 0.0
    %1379 = vmatpush2.msra.mxu0 %v251
    %1380 = vmatprep.mubr.f32.mxu0 %v1227
    %1381 = vmatmul.mubr.f32.gmra.mxu0 %v1226
    %v1382 = vpop.f32.mrf.mxu0
    %v1383 = vadd.f32 %v1313, %v1382
    %v1384 = vpop.f32.mrf.mxu0
    %1385 = vdwg.mxu0
    %1386 = vmatprep.subr.mxu0 0.0
    %1387 = vmatpush1.msra.mxu0 %v282
    %1388 = vmatprep.subr.mxu0 0.0
    %1389 = vmatpush1.msra.mxu0 %v281
    %1390 = vmatprep.subr.mxu0 0.0
    %1391 = vmatpush1.msra.mxu0 %v280
    %1392 = vmatprep.subr.mxu0 0.0
    %1393 = vmatpush1.msra.mxu0 %v279
    %1394 = vmatprep.subr.mxu0 0.0
    %1395 = vmatpush1.msra.mxu0 %v278
    %1396 = vmatprep.subr.mxu0 0.0
    %1397 = vmatpush1.msra.mxu0 %v277
    %1398 = vmatprep.subr.mxu0 0.0
    %1399 = vmatpush1.msra.mxu0 %v276
    %1400 = vmatprep.subr.mxu0 0.0
    %1401 = vmatpush1.msra.mxu0 %v275
    %1402 = vmatprep.subr.mxu0 0.0
    %1403 = vmatpush1.msra.mxu0 %v274
    %1404 = vmatprep.subr.mxu0 0.0
    %1405 = vmatpush1.msra.mxu0 %v273
    %1406 = vmatprep.subr.mxu0 0.0
    %1407 = vmatpush1.msra.mxu0 %v272
    %1408 = vmatprep.subr.mxu0 0.0
    %1409 = vmatpush1.msra.mxu0 %v271
    %1410 = vmatprep.subr.mxu0 0.0
    %1411 = vmatpush1.msra.mxu0 %v270
    %1412 = vmatprep.subr.mxu0 0.0
    %1413 = vmatpush1.msra.mxu0 %v269
    %1414 = vmatprep.subr.mxu0 0.0
    %1415 = vmatpush1.msra.mxu0 %v268
    %1416 = vmatprep.subr.mxu0 0.0
    %1417 = vmatpush1.msra.mxu0 %v267
    %1418 = vmatprep.subr.mxu0 0.0
    %1419 = vmatpush2.msra.mxu0 %v298
    %1420 = vmatprep.subr.mxu0 0.0
    %1421 = vmatpush2.msra.mxu0 %v297
    %1422 = vmatprep.subr.mxu0 0.0
    %1423 = vmatpush2.msra.mxu0 %v296
    %1424 = vmatprep.subr.mxu0 0.0
    %1425 = vmatpush2.msra.mxu0 %v295
    %1426 = vmatprep.subr.mxu0 0.0
    %1427 = vmatpush2.msra.mxu0 %v294
    %1428 = vmatprep.subr.mxu0 0.0
    %1429 = vmatpush2.msra.mxu0 %v293
    %1430 = vmatprep.subr.mxu0 0.0
    %1431 = vmatpush2.msra.mxu0 %v292
    %1432 = vmatprep.subr.mxu0 0.0
    %1433 = vmatpush2.msra.mxu0 %v291
    %1434 = vmatprep.subr.mxu0 0.0
    %1435 = vmatpush2.msra.mxu0 %v290
    %1436 = vmatprep.subr.mxu0 0.0
    %1437 = vmatpush2.msra.mxu0 %v289
    %1438 = vmatprep.subr.mxu0 0.0
    %1439 = vmatpush2.msra.mxu0 %v288
    %1440 = vmatprep.subr.mxu0 0.0
    %1441 = vmatpush2.msra.mxu0 %v287
    %1442 = vmatprep.subr.mxu0 0.0
    %1443 = vmatpush2.msra.mxu0 %v286
    %1444 = vmatprep.subr.mxu0 0.0
    %1445 = vmatpush2.msra.mxu0 %v285
    %1446 = vmatprep.subr.mxu0 0.0
    %1447 = vmatpush2.msra.mxu0 %v284
    %1448 = vmatprep.subr.mxu0 0.0
    %1449 = vmatpush2.msra.mxu0 %v283
    %1450 = vmatprep.mubr.f32.mxu0 %v1229
    %1451 = vmatmul.mubr.f32.gmra.mxu0 %v1228
    %v1452 = vpop.f32.mrf.mxu0
    %v1453 = vadd.f32 %v1383, %v1452
    %v1454 = vpop.f32.mrf.mxu0
    %1455 = vdwg.mxu0
    %1456 = vmatprep.subr.mxu0 0.0
    %1457 = vmatpush1.msra.mxu0 %v314
    %1458 = vmatprep.subr.mxu0 0.0
    %1459 = vmatpush1.msra.mxu0 %v313
    %1460 = vmatprep.subr.mxu0 0.0
    %1461 = vmatpush1.msra.mxu0 %v312
    %1462 = vmatprep.subr.mxu0 0.0
    %1463 = vmatpush1.msra.mxu0 %v311
    %1464 = vmatprep.subr.mxu0 0.0
    %1465 = vmatpush1.msra.mxu0 %v310
    %1466 = vmatprep.subr.mxu0 0.0
    %1467 = vmatpush1.msra.mxu0 %v309
    %1468 = vmatprep.subr.mxu0 0.0
    %1469 = vmatpush1.msra.mxu0 %v308
    %1470 = vmatprep.subr.mxu0 0.0
    %1471 = vmatpush1.msra.mxu0 %v307
    %1472 = vmatprep.subr.mxu0 0.0
    %1473 = vmatpush1.msra.mxu0 %v306
    %1474 = vmatprep.subr.mxu0 0.0
    %1475 = vmatpush1.msra.mxu0 %v305
    %1476 = vmatprep.subr.mxu0 0.0
    %1477 = vmatpush1.msra.mxu0 %v304
    %1478 = vmatprep.subr.mxu0 0.0
    %1479 = vmatpush1.msra.mxu0 %v303
    %1480 = vmatprep.subr.mxu0 0.0
    %1481 = vmatpush1.msra.mxu0 %v302
    %1482 = vmatprep.subr.mxu0 0.0
    %1483 = vmatpush1.msra.mxu0 %v301
    %1484 = vmatprep.subr.mxu0 0.0
    %1485 = vmatpush1.msra.mxu0 %v300
    %1486 = vmatprep.subr.mxu0 0.0
    %1487 = vmatpush1.msra.mxu0 %v299
    %1488 = vmatprep.subr.mxu0 0.0
    %1489 = vmatpush2.msra.mxu0 %v330
    %1490 = vmatprep.subr.mxu0 0.0
    %1491 = vmatpush2.msra.mxu0 %v329
    %1492 = vmatprep.subr.mxu0 0.0
    %1493 = vmatpush2.msra.mxu0 %v328
    %1494 = vmatprep.subr.mxu0 0.0
    %1495 = vmatpush2.msra.mxu0 %v327
    %1496 = vmatprep.subr.mxu0 0.0
    %1497 = vmatpush2.msra.mxu0 %v326
    %1498 = vmatprep.subr.mxu0 0.0
    %1499 = vmatpush2.msra.mxu0 %v325
    %1500 = vmatprep.subr.mxu0 0.0
    %1501 = vmatpush2.msra.mxu0 %v324
    %1502 = vmatprep.subr.mxu0 0.0
    %1503 = vmatpush2.msra.mxu0 %v323
    %1504 = vmatprep.subr.mxu0 0.0
    %1505 = vmatpush2.msra.mxu0 %v322
    %1506 = vmatprep.subr.mxu0 0.0
    %1507 = vmatpush2.msra.mxu0 %v321
    %1508 = vmatprep.subr.mxu0 0.0
    %1509 = vmatpush2.msra.mxu0 %v320
    %1510 = vmatprep.subr.mxu0 0.0
    %1511 = vmatpush2.msra.mxu0 %v319
    %1512 = vmatprep.subr.mxu0 0.0
    %1513 = vmatpush2.msra.mxu0 %v318
    %1514 = vmatprep.subr.mxu0 0.0
    %1515 = vmatpush2.msra.mxu0 %v317
    %1516 = vmatprep.subr.mxu0 0.0
    %1517 = vmatpush2.msra.mxu0 %v316
    %1518 = vmatprep.subr.mxu0 0.0
    %1519 = vmatpush2.msra.mxu0 %v315
    %1520 = vmatprep.mubr.f32.mxu0 %v1231
    %1521 = vmatmul.mubr.f32.gmra.mxu0 %v1230
    %v1522 = vpop.f32.mrf.mxu0
    %v1523 = vadd.f32 %v1453, %v1522
    %v1524 = vpop.f32.mrf.mxu0
    %1525 = vdwg.mxu0
    %1526 = vmatprep.subr.mxu0 0.0
    %1527 = vmatpush1.msra.mxu0 %v346
    %1528 = vmatprep.subr.mxu0 0.0
    %1529 = vmatpush1.msra.mxu0 %v345
    %1530 = vmatprep.subr.mxu0 0.0
    %1531 = vmatpush1.msra.mxu0 %v344
    %1532 = vmatprep.subr.mxu0 0.0
    %1533 = vmatpush1.msra.mxu0 %v343
    %1534 = vmatprep.subr.mxu0 0.0
    %1535 = vmatpush1.msra.mxu0 %v342
    %1536 = vmatprep.subr.mxu0 0.0
    %1537 = vmatpush1.msra.mxu0 %v341
    %1538 = vmatprep.subr.mxu0 0.0
    %1539 = vmatpush1.msra.mxu0 %v340
    %1540 = vmatprep.subr.mxu0 0.0
    %1541 = vmatpush1.msra.mxu0 %v339
    %1542 = vmatprep.subr.mxu0 0.0
    %1543 = vmatpush1.msra.mxu0 %v338
    %1544 = vmatprep.subr.mxu0 0.0
    %1545 = vmatpush1.msra.mxu0 %v337
    %1546 = vmatprep.subr.mxu0 0.0
    %1547 = vmatpush1.msra.mxu0 %v336
    %1548 = vmatprep.subr.mxu0 0.0
    %1549 = vmatpush1.msra.mxu0 %v335
    %1550 = vmatprep.subr.mxu0 0.0
    %1551 = vmatpush1.msra.mxu0 %v334
    %1552 = vmatprep.subr.mxu0 0.0
    %1553 = vmatpush1.msra.mxu0 %v333
    %1554 = vmatprep.subr.mxu0 0.0
    %1555 = vmatpush1.msra.mxu0 %v332
    %1556 = vmatprep.subr.mxu0 0.0
    %1557 = vmatpush1.msra.mxu0 %v331
    %1558 = vmatprep.subr.mxu0 0.0
    %1559 = vmatpush2.msra.mxu0 %v362
    %1560 = vmatprep.subr.mxu0 0.0
    %1561 = vmatpush2.msra.mxu0 %v361
    %1562 = vmatprep.subr.mxu0 0.0
    %1563 = vmatpush2.msra.mxu0 %v360
    %1564 = vmatprep.subr.mxu0 0.0
    %1565 = vmatpush2.msra.mxu0 %v359
    %1566 = vmatprep.subr.mxu0 0.0
    %1567 = vmatpush2.msra.mxu0 %v358
    %1568 = vmatprep.subr.mxu0 0.0
    %1569 = vmatpush2.msra.mxu0 %v357
    %1570 = vmatprep.subr.mxu0 0.0
    %1571 = vmatpush2.msra.mxu0 %v356
    %1572 = vmatprep.subr.mxu0 0.0
    %1573 = vmatpush2.msra.mxu0 %v355
    %1574 = vmatprep.subr.mxu0 0.0
    %1575 = vmatpush2.msra.mxu0 %v354
    %1576 = vmatprep.subr.mxu0 0.0
    %1577 = vmatpush2.msra.mxu0 %v353
    %1578 = vmatprep.subr.mxu0 0.0
    %1579 = vmatpush2.msra.mxu0 %v352
    %1580 = vmatprep.subr.mxu0 0.0
    %1581 = vmatpush2.msra.mxu0 %v351
    %1582 = vmatprep.subr.mxu0 0.0
    %1583 = vmatpush2.msra.mxu0 %v350
    %1584 = vmatprep.subr.mxu0 0.0
    %1585 = vmatpush2.msra.mxu0 %v349
    %1586 = vmatprep.subr.mxu0 0.0
    %1587 = vmatpush2.msra.mxu0 %v348
    %1588 = vmatprep.subr.mxu0 0.0
    %1589 = vmatpush2.msra.mxu0 %v347
    %1590 = vmatprep.mubr.f32.mxu0 %v1233
    %1591 = vmatmul.mubr.f32.gmra.mxu0 %v1232
    %v1592 = vpop.f32.mrf.mxu0
    %v1593 = vadd.f32 %v1523, %v1592
    %v1594 = vpop.f32.mrf.mxu0
    %1595 = vdwg.mxu0
    %1596 = vmatprep.subr.mxu0 0.0
    %1597 = vmatpush1.msra.mxu0 %v378
    %1598 = vmatprep.subr.mxu0 0.0
    %1599 = vmatpush1.msra.mxu0 %v377
    %1600 = vmatprep.subr.mxu0 0.0
    %1601 = vmatpush1.msra.mxu0 %v376
    %1602 = vmatprep.subr.mxu0 0.0
    %1603 = vmatpush1.msra.mxu0 %v375
    %1604 = vmatprep.subr.mxu0 0.0
    %1605 = vmatpush1.msra.mxu0 %v374
    %1606 = vmatprep.subr.mxu0 0.0
    %1607 = vmatpush1.msra.mxu0 %v373
    %1608 = vmatprep.subr.mxu0 0.0
    %1609 = vmatpush1.msra.mxu0 %v372
    %1610 = vmatprep.subr.mxu0 0.0
    %1611 = vmatpush1.msra.mxu0 %v371
    %1612 = vmatprep.subr.mxu0 0.0
    %1613 = vmatpush1.msra.mxu0 %v370
    %1614 = vmatprep.subr.mxu0 0.0
    %1615 = vmatpush1.msra.mxu0 %v369
    %1616 = vmatprep.subr.mxu0 0.0
    %1617 = vmatpush1.msra.mxu0 %v368
    %1618 = vmatprep.subr.mxu0 0.0
    %1619 = vmatpush1.msra.mxu0 %v367
    %1620 = vmatprep.subr.mxu0 0.0
    %1621 = vmatpush1.msra.mxu0 %v366
    %1622 = vmatprep.subr.mxu0 0.0
    %1623 = vmatpush1.msra.mxu0 %v365
    %1624 = vmatprep.subr.mxu0 0.0
    %1625 = vmatpush1.msra.mxu0 %v364
    %1626 = vmatprep.subr.mxu0 0.0
    %1627 = vmatpush1.msra.mxu0 %v363
    %1628 = vmatprep.subr.mxu0 0.0
    %1629 = vmatpush2.msra.mxu0 %v394
    %1630 = vmatprep.subr.mxu0 0.0
    %1631 = vmatpush2.msra.mxu0 %v393
    %1632 = vmatprep.subr.mxu0 0.0
    %1633 = vmatpush2.msra.mxu0 %v392
    %1634 = vmatprep.subr.mxu0 0.0
    %1635 = vmatpush2.msra.mxu0 %v391
    %1636 = vmatprep.subr.mxu0 0.0
    %1637 = vmatpush2.msra.mxu0 %v390
    %1638 = vmatprep.subr.mxu0 0.0
    %1639 = vmatpush2.msra.mxu0 %v389
    %1640 = vmatprep.subr.mxu0 0.0
    %1641 = vmatpush2.msra.mxu0 %v388
    %1642 = vmatprep.subr.mxu0 0.0
    %1643 = vmatpush2.msra.mxu0 %v387
    %1644 = vmatprep.subr.mxu0 0.0
    %1645 = vmatpush2.msra.mxu0 %v386
    %1646 = vmatprep.subr.mxu0 0.0
    %1647 = vmatpush2.msra.mxu0 %v385
    %1648 = vmatprep.subr.mxu0 0.0
    %1649 = vmatpush2.msra.mxu0 %v384
    %1650 = vmatprep.subr.mxu0 0.0
    %1651 = vmatpush2.msra.mxu0 %v383
    %1652 = vmatprep.subr.mxu0 0.0
    %1653 = vmatpush2.msra.mxu0 %v382
    %1654 = vmatprep.subr.mxu0 0.0
    %1655 = vmatpush2.msra.mxu0 %v381
    %1656 = vmatprep.subr.mxu0 0.0
    %1657 = vmatpush2.msra.mxu0 %v380
    %1658 = vmatprep.subr.mxu0 0.0
    %1659 = vmatpush2.msra.mxu0 %v379
    %1660 = vmatprep.mubr.f32.mxu0 %v1235
    %1661 = vmatmul.mubr.f32.gmra.mxu0 %v1234
    %v1662 = vpop.f32.mrf.mxu0
    %v1663 = vadd.f32 %v1593, %v1662
    %v1664 = vpop.f32.mrf.mxu0
    %1665 = vdwg.mxu0
    %1666 = vmatprep.subr.mxu0 0.0
    %1667 = vmatpush1.msra.mxu0 %v410
    %1668 = vmatprep.subr.mxu0 0.0
    %1669 = vmatpush1.msra.mxu0 %v409
    %1670 = vmatprep.subr.mxu0 0.0
    %1671 = vmatpush1.msra.mxu0 %v408
    %1672 = vmatprep.subr.mxu0 0.0
    %1673 = vmatpush1.msra.mxu0 %v407
    %1674 = vmatprep.subr.mxu0 0.0
    %1675 = vmatpush1.msra.mxu0 %v406
    %1676 = vmatprep.subr.mxu0 0.0
    %1677 = vmatpush1.msra.mxu0 %v405
    %1678 = vmatprep.subr.mxu0 0.0
    %1679 = vmatpush1.msra.mxu0 %v404
    %1680 = vmatprep.subr.mxu0 0.0
    %1681 = vmatpush1.msra.mxu0 %v403
    %1682 = vmatprep.subr.mxu0 0.0
    %1683 = vmatpush1.msra.mxu0 %v402
    %1684 = vmatprep.subr.mxu0 0.0
    %1685 = vmatpush1.msra.mxu0 %v401
    %1686 = vmatprep.subr.mxu0 0.0
    %1687 = vmatpush1.msra.mxu0 %v400
    %1688 = vmatprep.subr.mxu0 0.0
    %1689 = vmatpush1.msra.mxu0 %v399
    %1690 = vmatprep.subr.mxu0 0.0
    %1691 = vmatpush1.msra.mxu0 %v398
    %1692 = vmatprep.subr.mxu0 0.0
    %1693 = vmatpush1.msra.mxu0 %v397
    %1694 = vmatprep.subr.mxu0 0.0
    %1695 = vmatpush1.msra.mxu0 %v396
    %1696 = vmatprep.subr.mxu0 0.0
    %1697 = vmatpush1.msra.mxu0 %v395
    %1698 = vmatprep.subr.mxu0 0.0
    %1699 = vmatpush2.msra.mxu0 %v426
    %1700 = vmatprep.subr.mxu0 0.0
    %1701 = vmatpush2.msra.mxu0 %v425
    %1702 = vmatprep.subr.mxu0 0.0
    %1703 = vmatpush2.msra.mxu0 %v424
    %1704 = vmatprep.subr.mxu0 0.0
    %1705 = vmatpush2.msra.mxu0 %v423
    %1706 = vmatprep.subr.mxu0 0.0
    %1707 = vmatpush2.msra.mxu0 %v422
    %1708 = vmatprep.subr.mxu0 0.0
    %1709 = vmatpush2.msra.mxu0 %v421
    %1710 = vmatprep.subr.mxu0 0.0
    %1711 = vmatpush2.msra.mxu0 %v420
    %1712 = vmatprep.subr.mxu0 0.0
    %1713 = vmatpush2.msra.mxu0 %v419
    %1714 = vmatprep.subr.mxu0 0.0
    %1715 = vmatpush2.msra.mxu0 %v418
    %1716 = vmatprep.subr.mxu0 0.0
    %1717 = vmatpush2.msra.mxu0 %v417
    %1718 = vmatprep.subr.mxu0 0.0
    %1719 = vmatpush2.msra.mxu0 %v416
    %1720 = vmatprep.subr.mxu0 0.0
    %1721 = vmatpush2.msra.mxu0 %v415
    %1722 = vmatprep.subr.mxu0 0.0
    %1723 = vmatpush2.msra.mxu0 %v414
    %1724 = vmatprep.subr.mxu0 0.0
    %1725 = vmatpush2.msra.mxu0 %v413
    %1726 = vmatprep.subr.mxu0 0.0
    %1727 = vmatpush2.msra.mxu0 %v412
    %1728 = vmatprep.subr.mxu0 0.0
    %1729 = vmatpush2.msra.mxu0 %v411
    %1730 = vmatprep.mubr.f32.mxu0 %v1237
    %1731 = vmatmul.mubr.f32.gmra.mxu0 %v1236
    %v1732 = vpop.f32.mrf.mxu0
    %v1733 = vadd.f32 %v1663, %v1732
    %v1734 = vpop.f32.mrf.mxu0
    %1735 = vdwg.mxu0
    %1736 = vmatprep.subr.mxu0 0.0
    %1737 = vmatpush1.msra.mxu0 %v442
    %1738 = vmatprep.subr.mxu0 0.0
    %1739 = vmatpush1.msra.mxu0 %v441
    %1740 = vmatprep.subr.mxu0 0.0
    %1741 = vmatpush1.msra.mxu0 %v440
    %1742 = vmatprep.subr.mxu0 0.0
    %1743 = vmatpush1.msra.mxu0 %v439
    %1744 = vmatprep.subr.mxu0 0.0
    %1745 = vmatpush1.msra.mxu0 %v438
    %1746 = vmatprep.subr.mxu0 0.0
    %1747 = vmatpush1.msra.mxu0 %v437
    %1748 = vmatprep.subr.mxu0 0.0
    %1749 = vmatpush1.msra.mxu0 %v436
    %1750 = vmatprep.subr.mxu0 0.0
    %1751 = vmatpush1.msra.mxu0 %v435
    %1752 = vmatprep.subr.mxu0 0.0
    %1753 = vmatpush1.msra.mxu0 %v434
    %1754 = vmatprep.subr.mxu0 0.0
    %1755 = vmatpush1.msra.mxu0 %v433
    %1756 = vmatprep.subr.mxu0 0.0
    %1757 = vmatpush1.msra.mxu0 %v432
    %1758 = vmatprep.subr.mxu0 0.0
    %1759 = vmatpush1.msra.mxu0 %v431
    %1760 = vmatprep.subr.mxu0 0.0
    %1761 = vmatpush1.msra.mxu0 %v430
    %1762 = vmatprep.subr.mxu0 0.0
    %1763 = vmatpush1.msra.mxu0 %v429
    %1764 = vmatprep.subr.mxu0 0.0
    %1765 = vmatpush1.msra.mxu0 %v428
    %1766 = vmatprep.subr.mxu0 0.0
    %1767 = vmatpush1.msra.mxu0 %v427
    %1768 = vmatprep.subr.mxu0 0.0
    %1769 = vmatpush2.msra.mxu0 %v458
    %1770 = vmatprep.subr.mxu0 0.0
    %1771 = vmatpush2.msra.mxu0 %v457
    %1772 = vmatprep.subr.mxu0 0.0
    %1773 = vmatpush2.msra.mxu0 %v456
    %1774 = vmatprep.subr.mxu0 0.0
    %1775 = vmatpush2.msra.mxu0 %v455
    %1776 = vmatprep.subr.mxu0 0.0
    %1777 = vmatpush2.msra.mxu0 %v454
    %1778 = vmatprep.subr.mxu0 0.0
    %1779 = vmatpush2.msra.mxu0 %v453
    %1780 = vmatprep.subr.mxu0 0.0
    %1781 = vmatpush2.msra.mxu0 %v452
    %1782 = vmatprep.subr.mxu0 0.0
    %1783 = vmatpush2.msra.mxu0 %v451
    %1784 = vmatprep.subr.mxu0 0.0
    %1785 = vmatpush2.msra.mxu0 %v450
    %1786 = vmatprep.subr.mxu0 0.0
    %1787 = vmatpush2.msra.mxu0 %v449
    %1788 = vmatprep.subr.mxu0 0.0
    %1789 = vmatpush2.msra.mxu0 %v448
    %1790 = vmatprep.subr.mxu0 0.0
    %1791 = vmatpush2.msra.mxu0 %v447
    %1792 = vmatprep.subr.mxu0 0.0
    %1793 = vmatpush2.msra.mxu0 %v446
    %1794 = vmatprep.subr.mxu0 0.0
    %1795 = vmatpush2.msra.mxu0 %v445
    %1796 = vmatprep.subr.mxu0 0.0
    %1797 = vmatpush2.msra.mxu0 %v444
    %1798 = vmatprep.subr.mxu0 0.0
    %1799 = vmatpush2.msra.mxu0 %v443
    %1800 = vmatprep.mubr.f32.mxu0 %v1239
    %1801 = vmatmul.mubr.f32.gmra.mxu0 %v1238
    %v1802 = vpop.f32.mrf.mxu0
    %v1803 = vadd.f32 %v1733, %v1802
    %v1804 = vpop.f32.mrf.mxu0
    %1805 = vdwg.mxu0
    %v1806 = vadd.f32 %v570, %v1803
    %v1807 = vsel %vm468, %v1806, 0.0
    %1808 = vadd.xlane.f32.xlu0 %v1807
    %v1809 = vpop.xlane.xlu0 %1808
    %v1810 = vmul.f32 %v1809, %v546
    %v1811 = vsub.f32 %v1806, %v1810
    %v1812 = vmul.f32 %v1811, %v1811
    %v1813 = vsel %vm468, %v1812, 0.0
    %1814 = vadd.xlane.f32.xlu0 %v1813
    %v1815 = vpop.xlane.xlu0 %1814
    %v1816 = vmul.f32 %v1815, %v546
    %v1817 = vadd.f32 %v1816, 1e-05
    %v1818 = vrsqrt.pop %v1817
    %v1819 = vmul.f32 %v1811, %v1818
    %v1821 = vlaneseq
    %v1822 = vshrl.u32 %v1821, 7
    %v1823 = vsub.s32 0, %v1822
    %v1824 = vrot.slane %v460, %v1823
    %v1826 = vmul.f32 %v1819, %v1824
    %v1828 = vlaneseq
    %v1829 = vshrl.u32 %v1828, 7
    %v1830 = vsub.s32 0, %v1829
    %v1831 = vrot.slane %v461, %v1830
    %v1833 = vadd.f32 %v1826, %v1831
    %v1834 = vld [vmem:[%s27] sm:$0xff]
    %v1835 = vld [vmem:[%s27 + $0x8] sm:$0xff]
    %v1836 = vld [vmem:[%s27 + $0x10] sm:$0xff]
    %v1837 = vld [vmem:[%s27 + $0x18] sm:$0xff]
    %v1838 = vld [vmem:[%s29] sm:$0x3]
    %v1840 = vlaneseq
    %v1841 = vshrl.u32 %v1840, 7
    %v1842 = vsub.s32 0, %v1841
    %v1843 = vrot.slane %v1838, %v1842
    %v1844 = vlaneseq
    %v1845 = vshrl.u32 %v1844, 7
    %v1846 = vsub.s32 1, %v1845
    %v1847 = vrot.slane %v1838, %v1846
    %v1851 = vsel %vm468, %v1833, 0
    %1853 = vmatprep.subr.mxu0 0.0
    %1854 = vmatpush1.msra.mxu0 0.0
    %1855 = vmatprep.subr.mxu0 0.0
    %1856 = vmatpush1.msra.mxu0 0.0
    %1857 = vmatprep.subr.mxu0 0.0
    %1858 = vmatpush1.msra.mxu0 0.0
    %1859 = vmatprep.subr.mxu0 0.0
    %1860 = vmatpush1.msra.mxu0 0.0
    %1861 = vmatprep.subr.mxu0 0.0
    %1862 = vmatpush1.msra.mxu0 0.0
    %1863 = vmatprep.subr.mxu0 0.0
    %1864 = vmatpush1.msra.mxu0 0.0
    %1865 = vmatprep.subr.mxu0 0.0
    %1866 = vmatpush1.msra.mxu0 0.0
    %1867 = vmatprep.subr.mxu0 0.0
    %1868 = vmatpush1.msra.mxu0 0.0
    %1869 = vmatprep.subr.mxu0 0.0
    %1870 = vmatpush1.msra.mxu0 0.0
    %1871 = vmatprep.subr.mxu0 0.0
    %1872 = vmatpush1.msra.mxu0 0.0
    %1873 = vmatprep.subr.mxu0 0.0
    %1874 = vmatpush1.msra.mxu0 0.0
    %1875 = vmatprep.subr.mxu0 0.0
    %1876 = vmatpush1.msra.mxu0 0.0
    %1877 = vmatprep.subr.mxu0 0.0
    %1878 = vmatpush1.msra.mxu0 0.0
    %1879 = vmatprep.subr.mxu0 0.0
    %1880 = vmatpush1.msra.mxu0 0.0
    %1881 = vmatprep.subr.mxu0 %v1837
    %1882 = vmatpush1.msra.mxu0 %v1836
    %1883 = vmatprep.subr.mxu0 %v1835
    %1884 = vmatpush1.msra.mxu0 %v1834
    %1885 = vmatprep.subr.mxu0 0.0
    %1886 = vmatpush2.msra.mxu0 0.0
    %1887 = vmatprep.subr.mxu0 0.0
    %1888 = vmatpush2.msra.mxu0 0.0
    %1889 = vmatprep.subr.mxu0 0.0
    %1890 = vmatpush2.msra.mxu0 0.0
    %1891 = vmatprep.subr.mxu0 0.0
    %1892 = vmatpush2.msra.mxu0 0.0
    %1893 = vmatprep.subr.mxu0 0.0
    %1894 = vmatpush2.msra.mxu0 0.0
    %1895 = vmatprep.subr.mxu0 0.0
    %1896 = vmatpush2.msra.mxu0 0.0
    %1897 = vmatprep.subr.mxu0 0.0
    %1898 = vmatpush2.msra.mxu0 0.0
    %1899 = vmatprep.subr.mxu0 0.0
    %1900 = vmatpush2.msra.mxu0 0.0
    %1901 = vmatprep.subr.mxu0 0.0
    %1902 = vmatpush2.msra.mxu0 0.0
    %1903 = vmatprep.subr.mxu0 0.0
    %1904 = vmatpush2.msra.mxu0 0.0
    %1905 = vmatprep.subr.mxu0 0.0
    %1906 = vmatpush2.msra.mxu0 0.0
    %1907 = vmatprep.subr.mxu0 0.0
    %1908 = vmatpush2.msra.mxu0 0.0
    %1909 = vmatprep.subr.mxu0 0.0
    %1910 = vmatpush2.msra.mxu0 0.0
    %1911 = vmatprep.subr.mxu0 0.0
    %1912 = vmatpush2.msra.mxu0 0.0
    %1913 = vmatprep.subr.mxu0 0.0
    %1914 = vmatpush2.msra.mxu0 0.0
    %1915 = vmatprep.subr.mxu0 0.0
    %1916 = vmatpush2.msra.mxu0 0.0
    %1917 = vmatprep.mubr.f32.mxu0 0.0
    %1918 = vmatmul.mubr.f32.gmra.mxu0 %v1851
    %v1919 = vpop.f32.mrf.mxu0
    %v1920 = vadd.f32 %v1843, %v1919
    %v1921 = vpop.f32.mrf.mxu0
    %v1922 = vadd.f32 %v1847, %v1921
    %1923 = vdwg.mxu0
    %v1924 = vxor.u32 %v1920, 2147483648
    %v1925 = vmul.f32 %v1924, 1.442695
    %v1926 = vpow.pop %v1925
    %v1927 = vadd.f32 %v1926, 1.0
    %v1928 = vrcp.pop %v1927
    %v1929 = vmul.f32 1.0, %v1928
    %v1930 = vtanh.pop %v1920
    %v1931 = vxor.u32 %v1922, 2147483648
    %v1932 = vmul.f32 %v1931, 1.442695
    %v1933 = vpow.pop %v1932
    %v1934 = vadd.f32 %v1933, 1.0
    %v1935 = vrcp.pop %v1934
    %v1936 = vmul.f32 1.0, %v1935
    %1938 = vrot.lane.b32.xlu0 %v1930, 64
    %v1939 = vpop.permute.xlu0 %1938
    %v1941 = vmul.f32 %v1929, %v1939
    %v1942 = vtanh.pop %v1941
    %v1943 = vmul.f32 %v1936, %v1942
    %v1944 = vld [vmem:[%s31] sm:$0xff]
    %v1945 = vld [vmem:[%s31 + $0x8] sm:$0xff]
    %v1946 = vld [vmem:[%s31 + $0x10] sm:$0xff]
    %v1947 = vld [vmem:[%s31 + $0x18] sm:$0xff]
    %v1948 = vld [vmem:[%s31 + $0x20] sm:$0xff]
    %v1949 = vld [vmem:[%s31 + $0x28] sm:$0xff]
    %v1950 = vld [vmem:[%s31 + $0x30] sm:$0xff]
    %v1951 = vld [vmem:[%s31 + $0x38] sm:$0xff]
    %v1952 = vld [vmem:[%s33] sm:$0x1]
    %v1954 = vlaneseq
    %v1955 = vshrl.u32 %v1954, 7
    %v1956 = vsub.s32 0, %v1955
    %v1957 = vrot.slane %v1952, %v1956
    %vm1959 = vcmask 523264
    %v1961 = vsel %vm1959, %v1943, 0
    %1963 = vmatprep.subr.mxu0 0.0
    %1964 = vmatpush1.msra.mxu0 0.0
    %1965 = vmatprep.subr.mxu0 0.0
    %1966 = vmatpush1.msra.mxu0 0.0
    %1967 = vmatprep.subr.mxu0 0.0
    %1968 = vmatpush1.msra.mxu0 0.0
    %1969 = vmatprep.subr.mxu0 0.0
    %1970 = vmatpush1.msra.mxu0 0.0
    %1971 = vmatprep.subr.mxu0 0.0
    %1972 = vmatpush1.msra.mxu0 0.0
    %1973 = vmatprep.subr.mxu0 0.0
    %1974 = vmatpush1.msra.mxu0 0.0
    %1975 = vmatprep.subr.mxu0 0.0
    %1976 = vmatpush1.msra.mxu0 0.0
    %1977 = vmatprep.subr.mxu0 0.0
    %1978 = vmatpush1.msra.mxu0 0.0
    %1979 = vmatprep.subr.mxu0 0.0
    %1980 = vmatpush1.msra.mxu0 %v1951
    %1981 = vmatprep.subr.mxu0 0.0
    %1982 = vmatpush1.msra.mxu0 %v1950
    %1983 = vmatprep.subr.mxu0 0.0
    %1984 = vmatpush1.msra.mxu0 %v1949
    %1985 = vmatprep.subr.mxu0 0.0
    %1986 = vmatpush1.msra.mxu0 %v1948
    %1987 = vmatprep.subr.mxu0 0.0
    %1988 = vmatpush1.msra.mxu0 %v1947
    %1989 = vmatprep.subr.mxu0 0.0
    %1990 = vmatpush1.msra.mxu0 %v1946
    %1991 = vmatprep.subr.mxu0 0.0
    %1992 = vmatpush1.msra.mxu0 %v1945
    %1993 = vmatprep.subr.mxu0 0.0
    %1994 = vmatpush1.msra.mxu0 %v1944
    %1995 = vmatprep.subr.mxu0 0.0
    %1996 = vmatpush2.msra.mxu0 0.0
    %1997 = vmatprep.subr.mxu0 0.0
    %1998 = vmatpush2.msra.mxu0 0.0
    %1999 = vmatprep.subr.mxu0 0.0
    %2000 = vmatpush2.msra.mxu0 0.0
    %2001 = vmatprep.subr.mxu0 0.0
    %2002 = vmatpush2.msra.mxu0 0.0
    %2003 = vmatprep.subr.mxu0 0.0
    %2004 = vmatpush2.msra.mxu0 0.0
    %2005 = vmatprep.subr.mxu0 0.0
    %2006 = vmatpush2.msra.mxu0 0.0
    %2007 = vmatprep.subr.mxu0 0.0
    %2008 = vmatpush2.msra.mxu0 0.0
    %2009 = vmatprep.subr.mxu0 0.0
    %2010 = vmatpush2.msra.mxu0 0.0
    %2011 = vmatprep.subr.mxu0 0.0
    %2012 = vmatpush2.msra.mxu0 0.0
    %2013 = vmatprep.subr.mxu0 0.0
    %2014 = vmatpush2.msra.mxu0 0.0
    %2015 = vmatprep.subr.mxu0 0.0
    %2016 = vmatpush2.msra.mxu0 0.0
    %2017 = vmatprep.subr.mxu0 0.0
    %2018 = vmatpush2.msra.mxu0 0.0
    %2019 = vmatprep.subr.mxu0 0.0
    %2020 = vmatpush2.msra.mxu0 0.0
    %2021 = vmatprep.subr.mxu0 0.0
    %2022 = vmatpush2.msra.mxu0 0.0
    %2023 = vmatprep.subr.mxu0 0.0
    %2024 = vmatpush2.msra.mxu0 0.0
    %2025 = vmatprep.subr.mxu0 0.0
    %2026 = vmatpush2.msra.mxu0 0.0
    %2027 = vmatprep.mubr.f32.mxu0 0.0
    %2028 = vmatmul.mubr.f32.gmra.mxu0 %v1961
    %v2029 = vpop.f32.mrf.mxu0
    %v2030 = vadd.f32 %v1957, %v2029
    %v2031 = vpop.f32.mrf.mxu0
    %2032 = vdwg.mxu0
    %v2033 = vxor.u32 %v2030, 2147483648
    %v2034 = vmul.f32 %v2033, 1.442695
    %v2035 = vpow.pop %v2034
    %v2036 = vadd.f32 %v2035, 1.0
    %v2037 = vrcp.pop %v2036
    %v2038 = vmul.f32 1.0, %v2037
    %v2039 = vtanh.pop %v2030
    %2041 = vrot.lane.b32.xlu0 %v2039, 96
    %v2042 = vpop.permute.xlu0 %2041
    %v2044 = vmul.f32 %v2038, %v2042
    %v2045 = vtanh.pop %v2044
    %2047 = vrot.lane.b32.xlu0 %v2045, 64
    %v2048 = vpop.permute.xlu0 %2047
    %v2050 = vmul.f32 %v2038, %v2048
    %v2051 = vld [vmem:[%s35] sm:$0x1]
    %v2053 = vlaneseq
    %v2054 = vshrl.u32 %v2053, 7
    %v2055 = vsub.s32 0, %v2054
    %v2056 = vrot.slane %v2051, %v2055
    %v2058 = vadd.f32 %v155, %v2056
    %v2059 = vld [vmem:[%s37] sm:$0xff]
    %v2060 = vld [vmem:[%s37 + $0x8] sm:$0xff]
    %v2061 = vld [vmem:[%s39] sm:$0x1]
    %v2062 = vld [vmem:[%s41] sm:$0x1]
    %v2063 = vld [vmem:[%s43] sm:$0x1]
    %v2064 = vld [vmem:[%s45] sm:$0xff]
    %v2065 = vld [vmem:[%s45 + $0x8] sm:$0xff]
    %v2066 = vld [vmem:[%s45 + $0x10] sm:$0xff]
    %v2067 = vld [vmem:[%s45 + $0x18] sm:$0xff]
    %v2068 = vld [vmem:[%s45 + $0x20] sm:$0xff]
    %v2069 = vld [vmem:[%s45 + $0x28] sm:$0xff]
    %v2070 = vld [vmem:[%s45 + $0x30] sm:$0xff]
    %v2071 = vld [vmem:[%s45 + $0x38] sm:$0xff]
    %v2072 = vld [vmem:[%s45 + $0x40] sm:$0xff]
    %v2073 = vld [vmem:[%s45 + $0x48] sm:$0xff]
    %v2074 = vld [vmem:[%s45 + $0x50] sm:$0xff]
    %v2075 = vld [vmem:[%s45 + $0x58] sm:$0xff]
    %v2076 = vld [vmem:[%s45 + $0x60] sm:$0xff]
    %v2077 = vld [vmem:[%s45 + $0x68] sm:$0xff]
    %v2078 = vld [vmem:[%s45 + $0x70] sm:$0xff]
    %v2079 = vld [vmem:[%s45 + $0x78] sm:$0xff]
    %v2080 = vld [vmem:[%s45 + $0x80] sm:$0xff]
    %v2081 = vld [vmem:[%s45 + $0x88] sm:$0xff]
    %v2082 = vld [vmem:[%s45 + $0x90] sm:$0xff]
    %v2083 = vld [vmem:[%s45 + $0x98] sm:$0xff]
    %v2084 = vld [vmem:[%s45 + $0xa0] sm:$0xff]
    %v2085 = vld [vmem:[%s45 + $0xa8] sm:$0xff]
    %v2086 = vld [vmem:[%s45 + $0xb0] sm:$0xff]
    %v2087 = vld [vmem:[%s45 + $0xb8] sm:$0xff]
    %v2088 = vld [vmem:[%s45 + $0xc0] sm:$0xff]
    %v2089 = vld [vmem:[%s45 + $0xc8] sm:$0xff]
    %v2090 = vld [vmem:[%s45 + $0xd0] sm:$0xff]
    %v2091 = vld [vmem:[%s45 + $0xd8] sm:$0xff]
    %v2092 = vld [vmem:[%s45 + $0xe0] sm:$0xff]
    %v2093 = vld [vmem:[%s45 + $0xe8] sm:$0xff]
    %v2094 = vld [vmem:[%s45 + $0xf0] sm:$0xff]
    %v2095 = vld [vmem:[%s45 + $0xf8] sm:$0xff]
    %v2096 = vld [vmem:[%s47] sm:$0xff]
    %v2097 = vld [vmem:[%s47 + $0x8] sm:$0xff]
    %v2098 = vld [vmem:[%s49] sm:$0xff]
    %v2099 = vld [vmem:[%s49 + $0x8] sm:$0xff]
    %v2100 = vld [vmem:[%s49 + $0x10] sm:$0xff]
    %v2101 = vld [vmem:[%s49 + $0x18] sm:$0xff]
    %v2102 = vld [vmem:[%s49 + $0x20] sm:$0xff]
    %v2103 = vld [vmem:[%s49 + $0x28] sm:$0xff]
    %v2104 = vld [vmem:[%s49 + $0x30] sm:$0xff]
    %v2105 = vld [vmem:[%s49 + $0x38] sm:$0xff]
    %v2106 = vld [vmem:[%s49 + $0x40] sm:$0xff]
    %v2107 = vld [vmem:[%s49 + $0x48] sm:$0xff]
    %v2108 = vld [vmem:[%s49 + $0x50] sm:$0xff]
    %v2109 = vld [vmem:[%s49 + $0x58] sm:$0xff]
    %v2110 = vld [vmem:[%s49 + $0x60] sm:$0xff]
    %v2111 = vld [vmem:[%s49 + $0x68] sm:$0xff]
    %v2112 = vld [vmem:[%s49 + $0x70] sm:$0xff]
    %v2113 = vld [vmem:[%s49 + $0x78] sm:$0xff]
    %v2114 = vld [vmem:[%s49 + $0x80] sm:$0xff]
    %v2115 = vld [vmem:[%s49 + $0x88] sm:$0xff]
    %v2116 = vld [vmem:[%s49 + $0x90] sm:$0xff]
    %v2117 = vld [vmem:[%s49 + $0x98] sm:$0xff]
    %v2118 = vld [vmem:[%s49 + $0xa0] sm:$0xff]
    %v2119 = vld [vmem:[%s49 + $0xa8] sm:$0xff]
    %v2120 = vld [vmem:[%s49 + $0xb0] sm:$0xff]
    %v2121 = vld [vmem:[%s49 + $0xb8] sm:$0xff]
    %v2122 = vld [vmem:[%s49 + $0xc0] sm:$0xff]
    %v2123 = vld [vmem:[%s49 + $0xc8] sm:$0xff]
    %v2124 = vld [vmem:[%s49 + $0xd0] sm:$0xff]
    %v2125 = vld [vmem:[%s49 + $0xd8] sm:$0xff]
    %v2126 = vld [vmem:[%s49 + $0xe0] sm:$0xff]
    %v2127 = vld [vmem:[%s49 + $0xe8] sm:$0xff]
    %v2128 = vld [vmem:[%s49 + $0xf0] sm:$0xff]
    %v2129 = vld [vmem:[%s49 + $0xf8] sm:$0xff]
    %v2130 = vld [vmem:[%s49 + $0x100] sm:$0xff]
    %v2131 = vld [vmem:[%s49 + $0x108] sm:$0xff]
    %v2132 = vld [vmem:[%s49 + $0x110] sm:$0xff]
    %v2133 = vld [vmem:[%s49 + $0x118] sm:$0xff]
    %v2134 = vld [vmem:[%s49 + $0x120] sm:$0xff]
    %v2135 = vld [vmem:[%s49 + $0x128] sm:$0xff]
    %v2136 = vld [vmem:[%s49 + $0x130] sm:$0xff]
    %v2137 = vld [vmem:[%s49 + $0x138] sm:$0xff]
    %v2138 = vld [vmem:[%s49 + $0x140] sm:$0xff]
    %v2139 = vld [vmem:[%s49 + $0x148] sm:$0xff]
    %v2140 = vld [vmem:[%s49 + $0x150] sm:$0xff]
    %v2141 = vld [vmem:[%s49 + $0x158] sm:$0xff]
    %v2142 = vld [vmem:[%s49 + $0x160] sm:$0xff]
    %v2143 = vld [vmem:[%s49 + $0x168] sm:$0xff]
    %v2144 = vld [vmem:[%s49 + $0x170] sm:$0xff]
    %v2145 = vld [vmem:[%s49 + $0x178] sm:$0xff]
    %v2146 = vld [vmem:[%s49 + $0x180] sm:$0xff]
    %v2147 = vld [vmem:[%s49 + $0x188] sm:$0xff]
    %v2148 = vld [vmem:[%s49 + $0x190] sm:$0xff]
    %v2149 = vld [vmem:[%s49 + $0x198] sm:$0xff]
    %v2150 = vld [vmem:[%s49 + $0x1a0] sm:$0xff]
    %v2151 = vld [vmem:[%s49 + $0x1a8] sm:$0xff]
    %v2152 = vld [vmem:[%s49 + $0x1b0] sm:$0xff]
    %v2153 = vld [vmem:[%s49 + $0x1b8] sm:$0xff]
    %v2154 = vld [vmem:[%s49 + $0x1c0] sm:$0xff]
    %v2155 = vld [vmem:[%s49 + $0x1c8] sm:$0xff]
    %v2156 = vld [vmem:[%s49 + $0x1d0] sm:$0xff]
    %v2157 = vld [vmem:[%s49 + $0x1d8] sm:$0xff]
    %v2158 = vld [vmem:[%s49 + $0x1e0] sm:$0xff]
    %v2159 = vld [vmem:[%s49 + $0x1e8] sm:$0xff]
    %v2160 = vld [vmem:[%s49 + $0x1f0] sm:$0xff]
    %v2161 = vld [vmem:[%s49 + $0x1f8] sm:$0xff]
    %v2162 = vld [vmem:[%s49 + $0x200] sm:$0xff]
    %v2163 = vld [vmem:[%s49 + $0x208] sm:$0xff]
    %v2164 = vld [vmem:[%s49 + $0x210] sm:$0xff]
    %v2165 = vld [vmem:[%s49 + $0x218] sm:$0xff]
    %v2166 = vld [vmem:[%s49 + $0x220] sm:$0xff]
    %v2167 = vld [vmem:[%s49 + $0x228] sm:$0xff]
    %v2168 = vld [vmem:[%s49 + $0x230] sm:$0xff]
    %v2169 = vld [vmem:[%s49 + $0x238] sm:$0xff]
    %v2170 = vld [vmem:[%s49 + $0x240] sm:$0xff]
    %v2171 = vld [vmem:[%s49 + $0x248] sm:$0xff]
    %v2172 = vld [vmem:[%s49 + $0x250] sm:$0xff]
    %v2173 = vld [vmem:[%s49 + $0x258] sm:$0xff]
    %v2174 = vld [vmem:[%s49 + $0x260] sm:$0xff]
    %v2175 = vld [vmem:[%s49 + $0x268] sm:$0xff]
    %v2176 = vld [vmem:[%s49 + $0x270] sm:$0xff]
    %v2177 = vld [vmem:[%s49 + $0x278] sm:$0xff]
    %v2178 = vld [vmem:[%s49 + $0x280] sm:$0xff]
    %v2179 = vld [vmem:[%s49 + $0x288] sm:$0xff]
    %v2180 = vld [vmem:[%s49 + $0x290] sm:$0xff]
    %v2181 = vld [vmem:[%s49 + $0x298] sm:$0xff]
    %v2182 = vld [vmem:[%s49 + $0x2a0] sm:$0xff]
    %v2183 = vld [vmem:[%s49 + $0x2a8] sm:$0xff]
    %v2184 = vld [vmem:[%s49 + $0x2b0] sm:$0xff]
    %v2185 = vld [vmem:[%s49 + $0x2b8] sm:$0xff]
    %v2186 = vld [vmem:[%s49 + $0x2c0] sm:$0xff]
    %v2187 = vld [vmem:[%s49 + $0x2c8] sm:$0xff]
    %v2188 = vld [vmem:[%s49 + $0x2d0] sm:$0xff]
    %v2189 = vld [vmem:[%s49 + $0x2d8] sm:$0xff]
    %v2190 = vld [vmem:[%s49 + $0x2e0] sm:$0xff]
    %v2191 = vld [vmem:[%s49 + $0x2e8] sm:$0xff]
    %v2192 = vld [vmem:[%s49 + $0x2f0] sm:$0xff]
    %v2193 = vld [vmem:[%s49 + $0x2f8] sm:$0xff]
    %v2194 = vld [vmem:[%s49 + $0x300] sm:$0xff]
    %v2195 = vld [vmem:[%s49 + $0x308] sm:$0xff]
    %v2196 = vld [vmem:[%s49 + $0x310] sm:$0xff]
    %v2197 = vld [vmem:[%s49 + $0x318] sm:$0xff]
    %v2198 = vld [vmem:[%s49 + $0x320] sm:$0xff]
    %v2199 = vld [vmem:[%s49 + $0x328] sm:$0xff]
    %v2200 = vld [vmem:[%s49 + $0x330] sm:$0xff]
    %v2201 = vld [vmem:[%s49 + $0x338] sm:$0xff]
    %v2202 = vld [vmem:[%s49 + $0x340] sm:$0xff]
    %v2203 = vld [vmem:[%s49 + $0x348] sm:$0xff]
    %v2204 = vld [vmem:[%s49 + $0x350] sm:$0xff]
    %v2205 = vld [vmem:[%s49 + $0x358] sm:$0xff]
    %v2206 = vld [vmem:[%s49 + $0x360] sm:$0xff]
    %v2207 = vld [vmem:[%s49 + $0x368] sm:$0xff]
    %v2208 = vld [vmem:[%s49 + $0x370] sm:$0xff]
    %v2209 = vld [vmem:[%s49 + $0x378] sm:$0xff]
    %v2210 = vld [vmem:[%s49 + $0x380] sm:$0xff]
    %v2211 = vld [vmem:[%s49 + $0x388] sm:$0xff]
    %v2212 = vld [vmem:[%s49 + $0x390] sm:$0xff]
    %v2213 = vld [vmem:[%s49 + $0x398] sm:$0xff]
    %v2214 = vld [vmem:[%s49 + $0x3a0] sm:$0xff]
    %v2215 = vld [vmem:[%s49 + $0x3a8] sm:$0xff]
    %v2216 = vld [vmem:[%s49 + $0x3b0] sm:$0xff]
    %v2217 = vld [vmem:[%s49 + $0x3b8] sm:$0xff]
    %v2218 = vld [vmem:[%s49 + $0x3c0] sm:$0xff]
    %v2219 = vld [vmem:[%s49 + $0x3c8] sm:$0xff]
    %v2220 = vld [vmem:[%s49 + $0x3d0] sm:$0xff]
    %v2221 = vld [vmem:[%s49 + $0x3d8] sm:$0xff]
    %v2222 = vld [vmem:[%s49 + $0x3e0] sm:$0xff]
    %v2223 = vld [vmem:[%s49 + $0x3e8] sm:$0xff]
    %v2224 = vld [vmem:[%s49 + $0x3f0] sm:$0xff]
    %v2225 = vld [vmem:[%s49 + $0x3f8] sm:$0xff]
    %v2226 = vld [vmem:[%s49 + $0x400] sm:$0xff]
    %v2227 = vld [vmem:[%s49 + $0x408] sm:$0xff]
    %v2228 = vld [vmem:[%s49 + $0x410] sm:$0xff]
    %v2229 = vld [vmem:[%s49 + $0x418] sm:$0xff]
    %v2230 = vld [vmem:[%s49 + $0x420] sm:$0xff]
    %v2231 = vld [vmem:[%s49 + $0x428] sm:$0xff]
    %v2232 = vld [vmem:[%s49 + $0x430] sm:$0xff]
    %v2233 = vld [vmem:[%s49 + $0x438] sm:$0xff]
    %v2234 = vld [vmem:[%s49 + $0x440] sm:$0xff]
    %v2235 = vld [vmem:[%s49 + $0x448] sm:$0xff]
    %v2236 = vld [vmem:[%s49 + $0x450] sm:$0xff]
    %v2237 = vld [vmem:[%s49 + $0x458] sm:$0xff]
    %v2238 = vld [vmem:[%s49 + $0x460] sm:$0xff]
    %v2239 = vld [vmem:[%s49 + $0x468] sm:$0xff]
    %v2240 = vld [vmem:[%s49 + $0x470] sm:$0xff]
    %v2241 = vld [vmem:[%s49 + $0x478] sm:$0xff]
    %v2242 = vld [vmem:[%s49 + $0x480] sm:$0xff]
    %v2243 = vld [vmem:[%s49 + $0x488] sm:$0xff]
    %v2244 = vld [vmem:[%s49 + $0x490] sm:$0xff]
    %v2245 = vld [vmem:[%s49 + $0x498] sm:$0xff]
    %v2246 = vld [vmem:[%s49 + $0x4a0] sm:$0xff]
    %v2247 = vld [vmem:[%s49 + $0x4a8] sm:$0xff]
    %v2248 = vld [vmem:[%s49 + $0x4b0] sm:$0xff]
    %v2249 = vld [vmem:[%s49 + $0x4b8] sm:$0xff]
    %v2250 = vld [vmem:[%s49 + $0x4c0] sm:$0xff]
    %v2251 = vld [vmem:[%s49 + $0x4c8] sm:$0xff]
    %v2252 = vld [vmem:[%s49 + $0x4d0] sm:$0xff]
    %v2253 = vld [vmem:[%s49 + $0x4d8] sm:$0xff]
    %v2254 = vld [vmem:[%s49 + $0x4e0] sm:$0xff]
    %v2255 = vld [vmem:[%s49 + $0x4e8] sm:$0xff]
    %v2256 = vld [vmem:[%s49 + $0x4f0] sm:$0xff]
    %v2257 = vld [vmem:[%s49 + $0x4f8] sm:$0xff]
    %v2258 = vld [vmem:[%s49 + $0x500] sm:$0xff]
    %v2259 = vld [vmem:[%s49 + $0x508] sm:$0xff]
    %v2260 = vld [vmem:[%s49 + $0x510] sm:$0xff]
    %v2261 = vld [vmem:[%s49 + $0x518] sm:$0xff]
    %v2262 = vld [vmem:[%s49 + $0x520] sm:$0xff]
    %v2263 = vld [vmem:[%s49 + $0x528] sm:$0xff]
    %v2264 = vld [vmem:[%s49 + $0x530] sm:$0xff]
    %v2265 = vld [vmem:[%s49 + $0x538] sm:$0xff]
    %v2266 = vld [vmem:[%s49 + $0x540] sm:$0xff]
    %v2267 = vld [vmem:[%s49 + $0x548] sm:$0xff]
    %v2268 = vld [vmem:[%s49 + $0x550] sm:$0xff]
    %v2269 = vld [vmem:[%s49 + $0x558] sm:$0xff]
    %v2270 = vld [vmem:[%s49 + $0x560] sm:$0xff]
    %v2271 = vld [vmem:[%s49 + $0x568] sm:$0xff]
    %v2272 = vld [vmem:[%s49 + $0x570] sm:$0xff]
    %v2273 = vld [vmem:[%s49 + $0x578] sm:$0xff]
    %v2274 = vld [vmem:[%s49 + $0x580] sm:$0xff]
    %v2275 = vld [vmem:[%s49 + $0x588] sm:$0xff]
    %v2276 = vld [vmem:[%s49 + $0x590] sm:$0xff]
    %v2277 = vld [vmem:[%s49 + $0x598] sm:$0xff]
    %v2278 = vld [vmem:[%s49 + $0x5a0] sm:$0xff]
    %v2279 = vld [vmem:[%s49 + $0x5a8] sm:$0xff]
    %v2280 = vld [vmem:[%s49 + $0x5b0] sm:$0xff]
    %v2281 = vld [vmem:[%s49 + $0x5b8] sm:$0xff]
    %v2282 = vld [vmem:[%s49 + $0x5c0] sm:$0xff]
    %v2283 = vld [vmem:[%s49 + $0x5c8] sm:$0xff]
    %v2284 = vld [vmem:[%s49 + $0x5d0] sm:$0xff]
    %v2285 = vld [vmem:[%s49 + $0x5d8] sm:$0xff]
    %v2286 = vld [vmem:[%s49 + $0x5e0] sm:$0xff]
    %v2287 = vld [vmem:[%s49 + $0x5e8] sm:$0xff]
    %v2288 = vld [vmem:[%s49 + $0x5f0] sm:$0xff]
    %v2289 = vld [vmem:[%s49 + $0x5f8] sm:$0xff]
    %v2290 = vld [vmem:[%s49 + $0x600] sm:$0xff]
    %v2291 = vld [vmem:[%s49 + $0x608] sm:$0xff]
    %v2292 = vld [vmem:[%s49 + $0x610] sm:$0xff]
    %v2293 = vld [vmem:[%s49 + $0x618] sm:$0xff]
    %v2294 = vld [vmem:[%s49 + $0x620] sm:$0xff]
    %v2295 = vld [vmem:[%s49 + $0x628] sm:$0xff]
    %v2296 = vld [vmem:[%s49 + $0x630] sm:$0xff]
    %v2297 = vld [vmem:[%s49 + $0x638] sm:$0xff]
    %v2298 = vld [vmem:[%s49 + $0x640] sm:$0xff]
    %v2299 = vld [vmem:[%s49 + $0x648] sm:$0xff]
    %v2300 = vld [vmem:[%s49 + $0x650] sm:$0xff]
    %v2301 = vld [vmem:[%s49 + $0x658] sm:$0xff]
    %v2302 = vld [vmem:[%s49 + $0x660] sm:$0xff]
    %v2303 = vld [vmem:[%s49 + $0x668] sm:$0xff]
    %v2304 = vld [vmem:[%s49 + $0x670] sm:$0xff]
    %v2305 = vld [vmem:[%s49 + $0x678] sm:$0xff]
    %v2306 = vld [vmem:[%s49 + $0x680] sm:$0xff]
    %v2307 = vld [vmem:[%s49 + $0x688] sm:$0xff]
    %v2308 = vld [vmem:[%s49 + $0x690] sm:$0xff]
    %v2309 = vld [vmem:[%s49 + $0x698] sm:$0xff]
    %v2310 = vld [vmem:[%s49 + $0x6a0] sm:$0xff]
    %v2311 = vld [vmem:[%s49 + $0x6a8] sm:$0xff]
    %v2312 = vld [vmem:[%s49 + $0x6b0] sm:$0xff]
    %v2313 = vld [vmem:[%s49 + $0x6b8] sm:$0xff]
    %v2314 = vld [vmem:[%s49 + $0x6c0] sm:$0xff]
    %v2315 = vld [vmem:[%s49 + $0x6c8] sm:$0xff]
    %v2316 = vld [vmem:[%s49 + $0x6d0] sm:$0xff]
    %v2317 = vld [vmem:[%s49 + $0x6d8] sm:$0xff]
    %v2318 = vld [vmem:[%s49 + $0x6e0] sm:$0xff]
    %v2319 = vld [vmem:[%s49 + $0x6e8] sm:$0xff]
    %v2320 = vld [vmem:[%s49 + $0x6f0] sm:$0xff]
    %v2321 = vld [vmem:[%s49 + $0x6f8] sm:$0xff]
    %v2322 = vld [vmem:[%s49 + $0x700] sm:$0xff]
    %v2323 = vld [vmem:[%s49 + $0x708] sm:$0xff]
    %v2324 = vld [vmem:[%s49 + $0x710] sm:$0xff]
    %v2325 = vld [vmem:[%s49 + $0x718] sm:$0xff]
    %v2326 = vld [vmem:[%s49 + $0x720] sm:$0xff]
    %v2327 = vld [vmem:[%s49 + $0x728] sm:$0xff]
    %v2328 = vld [vmem:[%s49 + $0x730] sm:$0xff]
    %v2329 = vld [vmem:[%s49 + $0x738] sm:$0xff]
    %v2330 = vld [vmem:[%s49 + $0x740] sm:$0xff]
    %v2331 = vld [vmem:[%s49 + $0x748] sm:$0xff]
    %v2332 = vld [vmem:[%s49 + $0x750] sm:$0xff]
    %v2333 = vld [vmem:[%s49 + $0x758] sm:$0xff]
    %v2334 = vld [vmem:[%s49 + $0x760] sm:$0xff]
    %v2335 = vld [vmem:[%s49 + $0x768] sm:$0xff]
    %v2336 = vld [vmem:[%s49 + $0x770] sm:$0xff]
    %v2337 = vld [vmem:[%s49 + $0x778] sm:$0xff]
    %v2338 = vld [vmem:[%s49 + $0x780] sm:$0xff]
    %v2339 = vld [vmem:[%s49 + $0x788] sm:$0xff]
    %v2340 = vld [vmem:[%s49 + $0x790] sm:$0xff]
    %v2341 = vld [vmem:[%s49 + $0x798] sm:$0xff]
    %v2342 = vld [vmem:[%s49 + $0x7a0] sm:$0xff]
    %v2343 = vld [vmem:[%s49 + $0x7a8] sm:$0xff]
    %v2344 = vld [vmem:[%s49 + $0x7b0] sm:$0xff]
    %v2345 = vld [vmem:[%s49 + $0x7b8] sm:$0xff]
    %v2346 = vld [vmem:[%s49 + $0x7c0] sm:$0xff]
    %v2347 = vld [vmem:[%s49 + $0x7c8] sm:$0xff]
    %v2348 = vld [vmem:[%s49 + $0x7d0] sm:$0xff]
    %v2349 = vld [vmem:[%s49 + $0x7d8] sm:$0xff]
    %v2350 = vld [vmem:[%s49 + $0x7e0] sm:$0xff]
    %v2351 = vld [vmem:[%s49 + $0x7e8] sm:$0xff]
    %v2352 = vld [vmem:[%s49 + $0x7f0] sm:$0xff]
    %v2353 = vld [vmem:[%s49 + $0x7f8] sm:$0xff]
    %v2354 = vld [vmem:[%s51] sm:$0x1]
    %v2355 = vld [vmem:[%s53] sm:$0x1]
    %v2356 = vld [vmem:[%s55] sm:$0x1]
    %v2358 = vlaneseq
    %v2359 = vshrl.u32 %v2358, 7
    %v2360 = vsub.s32 0, %v2359
    %v2361 = vrot.slane %v2061, %v2360
    %v2364 = vsel %vm468, %v2058, 0
    %2366 = vmatprep.subr.mxu0 0.0
    %2367 = vmatpush1.msra.mxu0 0.0
    %2368 = vmatprep.subr.mxu0 0.0
    %2369 = vmatpush1.msra.mxu0 0.0
    %2370 = vmatprep.subr.mxu0 0.0
    %2371 = vmatpush1.msra.mxu0 0.0
    %2372 = vmatprep.subr.mxu0 0.0
    %2373 = vmatpush1.msra.mxu0 0.0
    %2374 = vmatprep.subr.mxu0 0.0
    %2375 = vmatpush1.msra.mxu0 0.0
    %2376 = vmatprep.subr.mxu0 0.0
    %2377 = vmatpush1.msra.mxu0 0.0
    %2378 = vmatprep.subr.mxu0 0.0
    %2379 = vmatpush1.msra.mxu0 0.0
    %2380 = vmatprep.subr.mxu0 0.0
    %2381 = vmatpush1.msra.mxu0 0.0
    %2382 = vmatprep.subr.mxu0 0.0
    %2383 = vmatpush1.msra.mxu0 0.0
    %2384 = vmatprep.subr.mxu0 0.0
    %2385 = vmatpush1.msra.mxu0 0.0
    %2386 = vmatprep.subr.mxu0 0.0
    %2387 = vmatpush1.msra.mxu0 0.0
    %2388 = vmatprep.subr.mxu0 0.0
    %2389 = vmatpush1.msra.mxu0 0.0
    %2390 = vmatprep.subr.mxu0 0.0
    %2391 = vmatpush1.msra.mxu0 0.0
    %2392 = vmatprep.subr.mxu0 0.0
    %2393 = vmatpush1.msra.mxu0 0.0
    %2394 = vmatprep.subr.mxu0 0.0
    %2395 = vmatpush1.msra.mxu0 %v2060
    %2396 = vmatprep.subr.mxu0 0.0
    %2397 = vmatpush1.msra.mxu0 %v2059
    %2398 = vmatprep.subr.mxu0 0.0
    %2399 = vmatpush2.msra.mxu0 0.0
    %2400 = vmatprep.subr.mxu0 0.0
    %2401 = vmatpush2.msra.mxu0 0.0
    %2402 = vmatprep.subr.mxu0 0.0
    %2403 = vmatpush2.msra.mxu0 0.0
    %2404 = vmatprep.subr.mxu0 0.0
    %2405 = vmatpush2.msra.mxu0 0.0
    %2406 = vmatprep.subr.mxu0 0.0
    %2407 = vmatpush2.msra.mxu0 0.0
    %2408 = vmatprep.subr.mxu0 0.0
    %2409 = vmatpush2.msra.mxu0 0.0
    %2410 = vmatprep.subr.mxu0 0.0
    %2411 = vmatpush2.msra.mxu0 0.0
    %2412 = vmatprep.subr.mxu0 0.0
    %2413 = vmatpush2.msra.mxu0 0.0
    %2414 = vmatprep.subr.mxu0 0.0
    %2415 = vmatpush2.msra.mxu0 0.0
    %2416 = vmatprep.subr.mxu0 0.0
    %2417 = vmatpush2.msra.mxu0 0.0
    %2418 = vmatprep.subr.mxu0 0.0
    %2419 = vmatpush2.msra.mxu0 0.0
    %2420 = vmatprep.subr.mxu0 0.0
    %2421 = vmatpush2.msra.mxu0 0.0
    %2422 = vmatprep.subr.mxu0 0.0
    %2423 = vmatpush2.msra.mxu0 0.0
    %2424 = vmatprep.subr.mxu0 0.0
    %2425 = vmatpush2.msra.mxu0 0.0
    %2426 = vmatprep.subr.mxu0 0.0
    %2427 = vmatpush2.msra.mxu0 0.0
    %2428 = vmatprep.subr.mxu0 0.0
    %2429 = vmatpush2.msra.mxu0 0.0
    %2430 = vmatprep.mubr.f32.mxu0 0.0
    %2431 = vmatmul.mubr.f32.gmra.mxu0 %v2364
    %v2432 = vpop.f32.mrf.mxu0
    %v2433 = vadd.f32 %v2361, %v2432
    %v2434 = vpop.f32.mrf.mxu0
    %2435 = vdwg.mxu0
    %v2436 = vadd.f32 %v2058, %v2433
    %v2437 = vsel %vm468, %v2436, 0.0
    %2438 = vadd.xlane.f32.xlu0 %v2437
    %v2439 = vpop.xlane.xlu0 %2438
    %v2440 = vmul.f32 %v2439, %v546
    %v2441 = vsub.f32 %v2436, %v2440
    %v2442 = vmul.f32 %v2441, %v2441
    %v2443 = vsel %vm468, %v2442, 0.0
    %2444 = vadd.xlane.f32.xlu0 %v2443
    %v2445 = vpop.xlane.xlu0 %2444
    %v2446 = vmul.f32 %v2445, %v546
    %v2447 = vadd.f32 %v2446, 1e-05
    %v2448 = vrsqrt.pop %v2447
    %v2449 = vmul.f32 %v2441, %v2448
    %v2451 = vlaneseq
    %v2452 = vshrl.u32 %v2451, 7
    %v2453 = vsub.s32 0, %v2452
    %v2454 = vrot.slane %v2062, %v2453
    %v2456 = vmul.f32 %v2449, %v2454
    %v2458 = vlaneseq
    %v2459 = vshrl.u32 %v2458, 7
    %v2460 = vsub.s32 0, %v2459
    %v2461 = vrot.slane %v2063, %v2460
    %v2463 = vadd.f32 %v2456, %v2461
    %v2466 = vlaneseq
    %v2467 = vshrl.u32 %v2466, 7
    %v2468 = vsub.s32 0, %v2467
    %v2469 = vrot.slane %v2096, %v2468
    %v2470 = vlaneseq
    %v2471 = vshrl.u32 %v2470, 7
    %v2472 = vsub.s32 1, %v2471
    %v2473 = vrot.slane %v2096, %v2472
    %v2474 = vlaneseq
    %v2475 = vshrl.u32 %v2474, 7
    %v2476 = vsub.s32 2, %v2475
    %v2477 = vrot.slane %v2096, %v2476
    %v2478 = vlaneseq
    %v2479 = vshrl.u32 %v2478, 7
    %v2480 = vsub.s32 3, %v2479
    %v2481 = vrot.slane %v2096, %v2480
    %v2482 = vlaneseq
    %v2483 = vshrl.u32 %v2482, 7
    %v2484 = vsub.s32 4, %v2483
    %v2485 = vrot.slane %v2096, %v2484
    %v2486 = vlaneseq
    %v2487 = vshrl.u32 %v2486, 7
    %v2488 = vsub.s32 5, %v2487
    %v2489 = vrot.slane %v2096, %v2488
    %v2490 = vlaneseq
    %v2491 = vshrl.u32 %v2490, 7
    %v2492 = vsub.s32 6, %v2491
    %v2493 = vrot.slane %v2096, %v2492
    %v2494 = vlaneseq
    %v2495 = vshrl.u32 %v2494, 7
    %v2496 = vsub.s32 7, %v2495
    %v2497 = vrot.slane %v2096, %v2496
    %v2498 = vlaneseq
    %v2499 = vshrl.u32 %v2498, 7
    %v2500 = vsub.s32 0, %v2499
    %v2501 = vrot.slane %v2097, %v2500
    %v2502 = vlaneseq
    %v2503 = vshrl.u32 %v2502, 7
    %v2504 = vsub.s32 1, %v2503
    %v2505 = vrot.slane %v2097, %v2504
    %v2506 = vlaneseq
    %v2507 = vshrl.u32 %v2506, 7
    %v2508 = vsub.s32 2, %v2507
    %v2509 = vrot.slane %v2097, %v2508
    %v2510 = vlaneseq
    %v2511 = vshrl.u32 %v2510, 7
    %v2512 = vsub.s32 3, %v2511
    %v2513 = vrot.slane %v2097, %v2512
    %v2514 = vlaneseq
    %v2515 = vshrl.u32 %v2514, 7
    %v2516 = vsub.s32 4, %v2515
    %v2517 = vrot.slane %v2097, %v2516
    %v2518 = vlaneseq
    %v2519 = vshrl.u32 %v2518, 7
    %v2520 = vsub.s32 5, %v2519
    %v2521 = vrot.slane %v2097, %v2520
    %v2522 = vlaneseq
    %v2523 = vshrl.u32 %v2522, 7
    %v2524 = vsub.s32 6, %v2523
    %v2525 = vrot.slane %v2097, %v2524
    %v2526 = vlaneseq
    %v2527 = vshrl.u32 %v2526, 7
    %v2528 = vsub.s32 7, %v2527
    %v2529 = vrot.slane %v2097, %v2528
    %v2547 = vsel %vm468, %v2463, 0
    %2549 = vmatprep.subr.mxu0 0.0
    %2550 = vmatpush1.msra.mxu0 0.0
    %2551 = vmatprep.subr.mxu0 0.0
    %2552 = vmatpush1.msra.mxu0 0.0
    %2553 = vmatprep.subr.mxu0 0.0
    %2554 = vmatpush1.msra.mxu0 0.0
    %2555 = vmatprep.subr.mxu0 0.0
    %2556 = vmatpush1.msra.mxu0 0.0
    %2557 = vmatprep.subr.mxu0 0.0
    %2558 = vmatpush1.msra.mxu0 0.0
    %2559 = vmatprep.subr.mxu0 0.0
    %2560 = vmatpush1.msra.mxu0 0.0
    %2561 = vmatprep.subr.mxu0 0.0
    %2562 = vmatpush1.msra.mxu0 0.0
    %2563 = vmatprep.subr.mxu0 0.0
    %2564 = vmatpush1.msra.mxu0 0.0
    %2565 = vmatprep.subr.mxu0 0.0
    %2566 = vmatpush1.msra.mxu0 0.0
    %2567 = vmatprep.subr.mxu0 0.0
    %2568 = vmatpush1.msra.mxu0 0.0
    %2569 = vmatprep.subr.mxu0 0.0
    %2570 = vmatpush1.msra.mxu0 0.0
    %2571 = vmatprep.subr.mxu0 0.0
    %2572 = vmatpush1.msra.mxu0 0.0
    %2573 = vmatprep.subr.mxu0 0.0
    %2574 = vmatpush1.msra.mxu0 0.0
    %2575 = vmatprep.subr.mxu0 0.0
    %2576 = vmatpush1.msra.mxu0 0.0
    %2577 = vmatprep.subr.mxu0 %v2081
    %2578 = vmatpush1.msra.mxu0 %v2080
    %2579 = vmatprep.subr.mxu0 %v2065
    %2580 = vmatpush1.msra.mxu0 %v2064
    %2581 = vmatprep.subr.mxu0 0.0
    %2582 = vmatpush2.msra.mxu0 0.0
    %2583 = vmatprep.subr.mxu0 0.0
    %2584 = vmatpush2.msra.mxu0 0.0
    %2585 = vmatprep.subr.mxu0 0.0
    %2586 = vmatpush2.msra.mxu0 0.0
    %2587 = vmatprep.subr.mxu0 0.0
    %2588 = vmatpush2.msra.mxu0 0.0
    %2589 = vmatprep.subr.mxu0 0.0
    %2590 = vmatpush2.msra.mxu0 0.0
    %2591 = vmatprep.subr.mxu0 0.0
    %2592 = vmatpush2.msra.mxu0 0.0
    %2593 = vmatprep.subr.mxu0 0.0
    %2594 = vmatpush2.msra.mxu0 0.0
    %2595 = vmatprep.subr.mxu0 0.0
    %2596 = vmatpush2.msra.mxu0 0.0
    %2597 = vmatprep.subr.mxu0 0.0
    %2598 = vmatpush2.msra.mxu0 0.0
    %2599 = vmatprep.subr.mxu0 0.0
    %2600 = vmatpush2.msra.mxu0 0.0
    %2601 = vmatprep.subr.mxu0 0.0
    %2602 = vmatpush2.msra.mxu0 0.0
    %2603 = vmatprep.subr.mxu0 0.0
    %2604 = vmatpush2.msra.mxu0 0.0
    %2605 = vmatprep.subr.mxu0 0.0
    %2606 = vmatpush2.msra.mxu0 0.0
    %2607 = vmatprep.subr.mxu0 0.0
    %2608 = vmatpush2.msra.mxu0 0.0
    %2609 = vmatprep.subr.mxu0 0.0
    %2610 = vmatpush2.msra.mxu0 0.0
    %2611 = vmatprep.subr.mxu0 0.0
    %2612 = vmatpush2.msra.mxu0 0.0
    %2613 = vmatprep.mubr.f32.mxu0 0.0
    %2614 = vmatmul.mubr.f32.gmra.mxu0 %v2547
    %v2615 = vpop.f32.mrf.mxu0
    %v2616 = vadd.f32 %v2469, %v2615
    %v2617 = vpop.f32.mrf.mxu0
    %v2618 = vadd.f32 %v2473, %v2617
    %2619 = vdwg.mxu0
    %2620 = vmatprep.subr.mxu0 0.0
    %2621 = vmatpush1.msra.mxu0 0.0
    %2622 = vmatprep.subr.mxu0 0.0
    %2623 = vmatpush1.msra.mxu0 0.0
    %2624 = vmatprep.subr.mxu0 0.0
    %2625 = vmatpush1.msra.mxu0 0.0
    %2626 = vmatprep.subr.mxu0 0.0
    %2627 = vmatpush1.msra.mxu0 0.0
    %2628 = vmatprep.subr.mxu0 0.0
    %2629 = vmatpush1.msra.mxu0 0.0
    %2630 = vmatprep.subr.mxu0 0.0
    %2631 = vmatpush1.msra.mxu0 0.0
    %2632 = vmatprep.subr.mxu0 0.0
    %2633 = vmatpush1.msra.mxu0 0.0
    %2634 = vmatprep.subr.mxu0 0.0
    %2635 = vmatpush1.msra.mxu0 0.0
    %2636 = vmatprep.subr.mxu0 0.0
    %2637 = vmatpush1.msra.mxu0 0.0
    %2638 = vmatprep.subr.mxu0 0.0
    %2639 = vmatpush1.msra.mxu0 0.0
    %2640 = vmatprep.subr.mxu0 0.0
    %2641 = vmatpush1.msra.mxu0 0.0
    %2642 = vmatprep.subr.mxu0 0.0
    %2643 = vmatpush1.msra.mxu0 0.0
    %2644 = vmatprep.subr.mxu0 0.0
    %2645 = vmatpush1.msra.mxu0 0.0
    %2646 = vmatprep.subr.mxu0 0.0
    %2647 = vmatpush1.msra.mxu0 0.0
    %2648 = vmatprep.subr.mxu0 %v2083
    %2649 = vmatpush1.msra.mxu0 %v2082
    %2650 = vmatprep.subr.mxu0 %v2067
    %2651 = vmatpush1.msra.mxu0 %v2066
    %2652 = vmatprep.subr.mxu0 0.0
    %2653 = vmatpush2.msra.mxu0 0.0
    %2654 = vmatprep.subr.mxu0 0.0
    %2655 = vmatpush2.msra.mxu0 0.0
    %2656 = vmatprep.subr.mxu0 0.0
    %2657 = vmatpush2.msra.mxu0 0.0
    %2658 = vmatprep.subr.mxu0 0.0
    %2659 = vmatpush2.msra.mxu0 0.0
    %2660 = vmatprep.subr.mxu0 0.0
    %2661 = vmatpush2.msra.mxu0 0.0
    %2662 = vmatprep.subr.mxu0 0.0
    %2663 = vmatpush2.msra.mxu0 0.0
    %2664 = vmatprep.subr.mxu0 0.0
    %2665 = vmatpush2.msra.mxu0 0.0
    %2666 = vmatprep.subr.mxu0 0.0
    %2667 = vmatpush2.msra.mxu0 0.0
    %2668 = vmatprep.subr.mxu0 0.0
    %2669 = vmatpush2.msra.mxu0 0.0
    %2670 = vmatprep.subr.mxu0 0.0
    %2671 = vmatpush2.msra.mxu0 0.0
    %2672 = vmatprep.subr.mxu0 0.0
    %2673 = vmatpush2.msra.mxu0 0.0
    %2674 = vmatprep.subr.mxu0 0.0
    %2675 = vmatpush2.msra.mxu0 0.0
    %2676 = vmatprep.subr.mxu0 0.0
    %2677 = vmatpush2.msra.mxu0 0.0
    %2678 = vmatprep.subr.mxu0 0.0
    %2679 = vmatpush2.msra.mxu0 0.0
    %2680 = vmatprep.subr.mxu0 0.0
    %2681 = vmatpush2.msra.mxu0 0.0
    %2682 = vmatprep.subr.mxu0 0.0
    %2683 = vmatpush2.msra.mxu0 0.0
    %2684 = vmatprep.mubr.f32.mxu0 0.0
    %2685 = vmatmul.mubr.f32.gmra.mxu0 %v2547
    %v2686 = vpop.f32.mrf.mxu0
    %v2687 = vadd.f32 %v2477, %v2686
    %v2688 = vpop.f32.mrf.mxu0
    %v2689 = vadd.f32 %v2481, %v2688
    %2690 = vdwg.mxu0
    %2691 = vmatprep.subr.mxu0 0.0
    %2692 = vmatpush1.msra.mxu0 0.0
    %2693 = vmatprep.subr.mxu0 0.0
    %2694 = vmatpush1.msra.mxu0 0.0
    %2695 = vmatprep.subr.mxu0 0.0
    %2696 = vmatpush1.msra.mxu0 0.0
    %2697 = vmatprep.subr.mxu0 0.0
    %2698 = vmatpush1.msra.mxu0 0.0
    %2699 = vmatprep.subr.mxu0 0.0
    %2700 = vmatpush1.msra.mxu0 0.0
    %2701 = vmatprep.subr.mxu0 0.0
    %2702 = vmatpush1.msra.mxu0 0.0
    %2703 = vmatprep.subr.mxu0 0.0
    %2704 = vmatpush1.msra.mxu0 0.0
    %2705 = vmatprep.subr.mxu0 0.0
    %2706 = vmatpush1.msra.mxu0 0.0
    %2707 = vmatprep.subr.mxu0 0.0
    %2708 = vmatpush1.msra.mxu0 0.0
    %2709 = vmatprep.subr.mxu0 0.0
    %2710 = vmatpush1.msra.mxu0 0.0
    %2711 = vmatprep.subr.mxu0 0.0
    %2712 = vmatpush1.msra.mxu0 0.0
    %2713 = vmatprep.subr.mxu0 0.0
    %2714 = vmatpush1.msra.mxu0 0.0
    %2715 = vmatprep.subr.mxu0 0.0
    %2716 = vmatpush1.msra.mxu0 0.0
    %2717 = vmatprep.subr.mxu0 0.0
    %2718 = vmatpush1.msra.mxu0 0.0
    %2719 = vmatprep.subr.mxu0 %v2085
    %2720 = vmatpush1.msra.mxu0 %v2084
    %2721 = vmatprep.subr.mxu0 %v2069
    %2722 = vmatpush1.msra.mxu0 %v2068
    %2723 = vmatprep.subr.mxu0 0.0
    %2724 = vmatpush2.msra.mxu0 0.0
    %2725 = vmatprep.subr.mxu0 0.0
    %2726 = vmatpush2.msra.mxu0 0.0
    %2727 = vmatprep.subr.mxu0 0.0
    %2728 = vmatpush2.msra.mxu0 0.0
    %2729 = vmatprep.subr.mxu0 0.0
    %2730 = vmatpush2.msra.mxu0 0.0
    %2731 = vmatprep.subr.mxu0 0.0
    %2732 = vmatpush2.msra.mxu0 0.0
    %2733 = vmatprep.subr.mxu0 0.0
    %2734 = vmatpush2.msra.mxu0 0.0
    %2735 = vmatprep.subr.mxu0 0.0
    %2736 = vmatpush2.msra.mxu0 0.0
    %2737 = vmatprep.subr.mxu0 0.0
    %2738 = vmatpush2.msra.mxu0 0.0
    %2739 = vmatprep.subr.mxu0 0.0
    %2740 = vmatpush2.msra.mxu0 0.0
    %2741 = vmatprep.subr.mxu0 0.0
    %2742 = vmatpush2.msra.mxu0 0.0
    %2743 = vmatprep.subr.mxu0 0.0
    %2744 = vmatpush2.msra.mxu0 0.0
    %2745 = vmatprep.subr.mxu0 0.0
    %2746 = vmatpush2.msra.mxu0 0.0
    %2747 = vmatprep.subr.mxu0 0.0
    %2748 = vmatpush2.msra.mxu0 0.0
    %2749 = vmatprep.subr.mxu0 0.0
    %2750 = vmatpush2.msra.mxu0 0.0
    %2751 = vmatprep.subr.mxu0 0.0
    %2752 = vmatpush2.msra.mxu0 0.0
    %2753 = vmatprep.subr.mxu0 0.0
    %2754 = vmatpush2.msra.mxu0 0.0
    %2755 = vmatprep.mubr.f32.mxu0 0.0
    %2756 = vmatmul.mubr.f32.gmra.mxu0 %v2547
    %v2757 = vpop.f32.mrf.mxu0
    %v2758 = vadd.f32 %v2485, %v2757
    %v2759 = vpop.f32.mrf.mxu0
    %v2760 = vadd.f32 %v2489, %v2759
    %2761 = vdwg.mxu0
    %2762 = vmatprep.subr.mxu0 0.0
    %2763 = vmatpush1.msra.mxu0 0.0
    %2764 = vmatprep.subr.mxu0 0.0
    %2765 = vmatpush1.msra.mxu0 0.0
    %2766 = vmatprep.subr.mxu0 0.0
    %2767 = vmatpush1.msra.mxu0 0.0
    %2768 = vmatprep.subr.mxu0 0.0
    %2769 = vmatpush1.msra.mxu0 0.0
    %2770 = vmatprep.subr.mxu0 0.0
    %2771 = vmatpush1.msra.mxu0 0.0
    %2772 = vmatprep.subr.mxu0 0.0
    %2773 = vmatpush1.msra.mxu0 0.0
    %2774 = vmatprep.subr.mxu0 0.0
    %2775 = vmatpush1.msra.mxu0 0.0
    %2776 = vmatprep.subr.mxu0 0.0
    %2777 = vmatpush1.msra.mxu0 0.0
    %2778 = vmatprep.subr.mxu0 0.0
    %2779 = vmatpush1.msra.mxu0 0.0
    %2780 = vmatprep.subr.mxu0 0.0
    %2781 = vmatpush1.msra.mxu0 0.0
    %2782 = vmatprep.subr.mxu0 0.0
    %2783 = vmatpush1.msra.mxu0 0.0
    %2784 = vmatprep.subr.mxu0 0.0
    %2785 = vmatpush1.msra.mxu0 0.0
    %2786 = vmatprep.subr.mxu0 0.0
    %2787 = vmatpush1.msra.mxu0 0.0
    %2788 = vmatprep.subr.mxu0 0.0
    %2789 = vmatpush1.msra.mxu0 0.0
    %2790 = vmatprep.subr.mxu0 %v2087
    %2791 = vmatpush1.msra.mxu0 %v2086
    %2792 = vmatprep.subr.mxu0 %v2071
    %2793 = vmatpush1.msra.mxu0 %v2070
    %2794 = vmatprep.subr.mxu0 0.0
    %2795 = vmatpush2.msra.mxu0 0.0
    %2796 = vmatprep.subr.mxu0 0.0
    %2797 = vmatpush2.msra.mxu0 0.0
    %2798 = vmatprep.subr.mxu0 0.0
    %2799 = vmatpush2.msra.mxu0 0.0
    %2800 = vmatprep.subr.mxu0 0.0
    %2801 = vmatpush2.msra.mxu0 0.0
    %2802 = vmatprep.subr.mxu0 0.0
    %2803 = vmatpush2.msra.mxu0 0.0
    %2804 = vmatprep.subr.mxu0 0.0
    %2805 = vmatpush2.msra.mxu0 0.0
    %2806 = vmatprep.subr.mxu0 0.0
    %2807 = vmatpush2.msra.mxu0 0.0
    %2808 = vmatprep.subr.mxu0 0.0
    %2809 = vmatpush2.msra.mxu0 0.0
    %2810 = vmatprep.subr.mxu0 0.0
    %2811 = vmatpush2.msra.mxu0 0.0
    %2812 = vmatprep.subr.mxu0 0.0
    %2813 = vmatpush2.msra.mxu0 0.0
    %2814 = vmatprep.subr.mxu0 0.0
    %2815 = vmatpush2.msra.mxu0 0.0
    %2816 = vmatprep.subr.mxu0 0.0
    %2817 = vmatpush2.msra.mxu0 0.0
    %2818 = vmatprep.subr.mxu0 0.0
    %2819 = vmatpush2.msra.mxu0 0.0
    %2820 = vmatprep.subr.mxu0 0.0
    %2821 = vmatpush2.msra.mxu0 0.0
    %2822 = vmatprep.subr.mxu0 0.0
    %2823 = vmatpush2.msra.mxu0 0.0
    %2824 = vmatprep.subr.mxu0 0.0
    %2825 = vmatpush2.msra.mxu0 0.0
    %2826 = vmatprep.mubr.f32.mxu0 0.0
    %2827 = vmatmul.mubr.f32.gmra.mxu0 %v2547
    %v2828 = vpop.f32.mrf.mxu0
    %v2829 = vadd.f32 %v2493, %v2828
    %v2830 = vpop.f32.mrf.mxu0
    %v2831 = vadd.f32 %v2497, %v2830
    %2832 = vdwg.mxu0
    %2833 = vmatprep.subr.mxu0 0.0
    %2834 = vmatpush1.msra.mxu0 0.0
    %2835 = vmatprep.subr.mxu0 0.0
    %2836 = vmatpush1.msra.mxu0 0.0
    %2837 = vmatprep.subr.mxu0 0.0
    %2838 = vmatpush1.msra.mxu0 0.0
    %2839 = vmatprep.subr.mxu0 0.0
    %2840 = vmatpush1.msra.mxu0 0.0
    %2841 = vmatprep.subr.mxu0 0.0
    %2842 = vmatpush1.msra.mxu0 0.0
    %2843 = vmatprep.subr.mxu0 0.0
    %2844 = vmatpush1.msra.mxu0 0.0
    %2845 = vmatprep.subr.mxu0 0.0
    %2846 = vmatpush1.msra.mxu0 0.0
    %2847 = vmatprep.subr.mxu0 0.0
    %2848 = vmatpush1.msra.mxu0 0.0
    %2849 = vmatprep.subr.mxu0 0.0
    %2850 = vmatpush1.msra.mxu0 0.0
    %2851 = vmatprep.subr.mxu0 0.0
    %2852 = vmatpush1.msra.mxu0 0.0
    %2853 = vmatprep.subr.mxu0 0.0
    %2854 = vmatpush1.msra.mxu0 0.0
    %2855 = vmatprep.subr.mxu0 0.0
    %2856 = vmatpush1.msra.mxu0 0.0
    %2857 = vmatprep.subr.mxu0 0.0
    %2858 = vmatpush1.msra.mxu0 0.0
    %2859 = vmatprep.subr.mxu0 0.0
    %2860 = vmatpush1.msra.mxu0 0.0
    %2861 = vmatprep.subr.mxu0 %v2089
    %2862 = vmatpush1.msra.mxu0 %v2088
    %2863 = vmatprep.subr.mxu0 %v2073
    %2864 = vmatpush1.msra.mxu0 %v2072
    %2865 = vmatprep.subr.mxu0 0.0
    %2866 = vmatpush2.msra.mxu0 0.0
    %2867 = vmatprep.subr.mxu0 0.0
    %2868 = vmatpush2.msra.mxu0 0.0
    %2869 = vmatprep.subr.mxu0 0.0
    %2870 = vmatpush2.msra.mxu0 0.0
    %2871 = vmatprep.subr.mxu0 0.0
    %2872 = vmatpush2.msra.mxu0 0.0
    %2873 = vmatprep.subr.mxu0 0.0
    %2874 = vmatpush2.msra.mxu0 0.0
    %2875 = vmatprep.subr.mxu0 0.0
    %2876 = vmatpush2.msra.mxu0 0.0
    %2877 = vmatprep.subr.mxu0 0.0
    %2878 = vmatpush2.msra.mxu0 0.0
    %2879 = vmatprep.subr.mxu0 0.0
    %2880 = vmatpush2.msra.mxu0 0.0
    %2881 = vmatprep.subr.mxu0 0.0
    %2882 = vmatpush2.msra.mxu0 0.0
    %2883 = vmatprep.subr.mxu0 0.0
    %2884 = vmatpush2.msra.mxu0 0.0
    %2885 = vmatprep.subr.mxu0 0.0
    %2886 = vmatpush2.msra.mxu0 0.0
    %2887 = vmatprep.subr.mxu0 0.0
    %2888 = vmatpush2.msra.mxu0 0.0
    %2889 = vmatprep.subr.mxu0 0.0
    %2890 = vmatpush2.msra.mxu0 0.0
    %2891 = vmatprep.subr.mxu0 0.0
    %2892 = vmatpush2.msra.mxu0 0.0
    %2893 = vmatprep.subr.mxu0 0.0
    %2894 = vmatpush2.msra.mxu0 0.0
    %2895 = vmatprep.subr.mxu0 0.0
    %2896 = vmatpush2.msra.mxu0 0.0
    %2897 = vmatprep.mubr.f32.mxu0 0.0
    %2898 = vmatmul.mubr.f32.gmra.mxu0 %v2547
    %v2899 = vpop.f32.mrf.mxu0
    %v2900 = vadd.f32 %v2501, %v2899
    %v2901 = vpop.f32.mrf.mxu0
    %v2902 = vadd.f32 %v2505, %v2901
    %2903 = vdwg.mxu0
    %2904 = vmatprep.subr.mxu0 0.0
    %2905 = vmatpush1.msra.mxu0 0.0
    %2906 = vmatprep.subr.mxu0 0.0
    %2907 = vmatpush1.msra.mxu0 0.0
    %2908 = vmatprep.subr.mxu0 0.0
    %2909 = vmatpush1.msra.mxu0 0.0
    %2910 = vmatprep.subr.mxu0 0.0
    %2911 = vmatpush1.msra.mxu0 0.0
    %2912 = vmatprep.subr.mxu0 0.0
    %2913 = vmatpush1.msra.mxu0 0.0
    %2914 = vmatprep.subr.mxu0 0.0
    %2915 = vmatpush1.msra.mxu0 0.0
    %2916 = vmatprep.subr.mxu0 0.0
    %2917 = vmatpush1.msra.mxu0 0.0
    %2918 = vmatprep.subr.mxu0 0.0
    %2919 = vmatpush1.msra.mxu0 0.0
    %2920 = vmatprep.subr.mxu0 0.0
    %2921 = vmatpush1.msra.mxu0 0.0
    %2922 = vmatprep.subr.mxu0 0.0
    %2923 = vmatpush1.msra.mxu0 0.0
    %2924 = vmatprep.subr.mxu0 0.0
    %2925 = vmatpush1.msra.mxu0 0.0
    %2926 = vmatprep.subr.mxu0 0.0
    %2927 = vmatpush1.msra.mxu0 0.0
    %2928 = vmatprep.subr.mxu0 0.0
    %2929 = vmatpush1.msra.mxu0 0.0
    %2930 = vmatprep.subr.mxu0 0.0
    %2931 = vmatpush1.msra.mxu0 0.0
    %2932 = vmatprep.subr.mxu0 %v2091
    %2933 = vmatpush1.msra.mxu0 %v2090
    %2934 = vmatprep.subr.mxu0 %v2075
    %2935 = vmatpush1.msra.mxu0 %v2074
    %2936 = vmatprep.subr.mxu0 0.0
    %2937 = vmatpush2.msra.mxu0 0.0
    %2938 = vmatprep.subr.mxu0 0.0
    %2939 = vmatpush2.msra.mxu0 0.0
    %2940 = vmatprep.subr.mxu0 0.0
    %2941 = vmatpush2.msra.mxu0 0.0
    %2942 = vmatprep.subr.mxu0 0.0
    %2943 = vmatpush2.msra.mxu0 0.0
    %2944 = vmatprep.subr.mxu0 0.0
    %2945 = vmatpush2.msra.mxu0 0.0
    %2946 = vmatprep.subr.mxu0 0.0
    %2947 = vmatpush2.msra.mxu0 0.0
    %2948 = vmatprep.subr.mxu0 0.0
    %2949 = vmatpush2.msra.mxu0 0.0
    %2950 = vmatprep.subr.mxu0 0.0
    %2951 = vmatpush2.msra.mxu0 0.0
    %2952 = vmatprep.subr.mxu0 0.0
    %2953 = vmatpush2.msra.mxu0 0.0
    %2954 = vmatprep.subr.mxu0 0.0
    %2955 = vmatpush2.msra.mxu0 0.0
    %2956 = vmatprep.subr.mxu0 0.0
    %2957 = vmatpush2.msra.mxu0 0.0
    %2958 = vmatprep.subr.mxu0 0.0
    %2959 = vmatpush2.msra.mxu0 0.0
    %2960 = vmatprep.subr.mxu0 0.0
    %2961 = vmatpush2.msra.mxu0 0.0
    %2962 = vmatprep.subr.mxu0 0.0
    %2963 = vmatpush2.msra.mxu0 0.0
    %2964 = vmatprep.subr.mxu0 0.0
    %2965 = vmatpush2.msra.mxu0 0.0
    %2966 = vmatprep.subr.mxu0 0.0
    %2967 = vmatpush2.msra.mxu0 0.0
    %2968 = vmatprep.mubr.f32.mxu0 0.0
    %2969 = vmatmul.mubr.f32.gmra.mxu0 %v2547
    %v2970 = vpop.f32.mrf.mxu0
    %v2971 = vadd.f32 %v2509, %v2970
    %v2972 = vpop.f32.mrf.mxu0
    %v2973 = vadd.f32 %v2513, %v2972
    %2974 = vdwg.mxu0
    %2975 = vmatprep.subr.mxu0 0.0
    %2976 = vmatpush1.msra.mxu0 0.0
    %2977 = vmatprep.subr.mxu0 0.0
    %2978 = vmatpush1.msra.mxu0 0.0
    %2979 = vmatprep.subr.mxu0 0.0
    %2980 = vmatpush1.msra.mxu0 0.0
    %2981 = vmatprep.subr.mxu0 0.0
    %2982 = vmatpush1.msra.mxu0 0.0
    %2983 = vmatprep.subr.mxu0 0.0
    %2984 = vmatpush1.msra.mxu0 0.0
    %2985 = vmatprep.subr.mxu0 0.0
    %2986 = vmatpush1.msra.mxu0 0.0
    %2987 = vmatprep.subr.mxu0 0.0
    %2988 = vmatpush1.msra.mxu0 0.0
    %2989 = vmatprep.subr.mxu0 0.0
    %2990 = vmatpush1.msra.mxu0 0.0
    %2991 = vmatprep.subr.mxu0 0.0
    %2992 = vmatpush1.msra.mxu0 0.0
    %2993 = vmatprep.subr.mxu0 0.0
    %2994 = vmatpush1.msra.mxu0 0.0
    %2995 = vmatprep.subr.mxu0 0.0
    %2996 = vmatpush1.msra.mxu0 0.0
    %2997 = vmatprep.subr.mxu0 0.0
    %2998 = vmatpush1.msra.mxu0 0.0
    %2999 = vmatprep.subr.mxu0 0.0
    %3000 = vmatpush1.msra.mxu0 0.0
    %3001 = vmatprep.subr.mxu0 0.0
    %3002 = vmatpush1.msra.mxu0 0.0
    %3003 = vmatprep.subr.mxu0 %v2093
    %3004 = vmatpush1.msra.mxu0 %v2092
    %3005 = vmatprep.subr.mxu0 %v2077
    %3006 = vmatpush1.msra.mxu0 %v2076
    %3007 = vmatprep.subr.mxu0 0.0
    %3008 = vmatpush2.msra.mxu0 0.0
    %3009 = vmatprep.subr.mxu0 0.0
    %3010 = vmatpush2.msra.mxu0 0.0
    %3011 = vmatprep.subr.mxu0 0.0
    %3012 = vmatpush2.msra.mxu0 0.0
    %3013 = vmatprep.subr.mxu0 0.0
    %3014 = vmatpush2.msra.mxu0 0.0
    %3015 = vmatprep.subr.mxu0 0.0
    %3016 = vmatpush2.msra.mxu0 0.0
    %3017 = vmatprep.subr.mxu0 0.0
    %3018 = vmatpush2.msra.mxu0 0.0
    %3019 = vmatprep.subr.mxu0 0.0
    %3020 = vmatpush2.msra.mxu0 0.0
    %3021 = vmatprep.subr.mxu0 0.0
    %3022 = vmatpush2.msra.mxu0 0.0
    %3023 = vmatprep.subr.mxu0 0.0
    %3024 = vmatpush2.msra.mxu0 0.0
    %3025 = vmatprep.subr.mxu0 0.0
    %3026 = vmatpush2.msra.mxu0 0.0
    %3027 = vmatprep.subr.mxu0 0.0
    %3028 = vmatpush2.msra.mxu0 0.0
    %3029 = vmatprep.subr.mxu0 0.0
    %3030 = vmatpush2.msra.mxu0 0.0
    %3031 = vmatprep.subr.mxu0 0.0
    %3032 = vmatpush2.msra.mxu0 0.0
    %3033 = vmatprep.subr.mxu0 0.0
    %3034 = vmatpush2.msra.mxu0 0.0
    %3035 = vmatprep.subr.mxu0 0.0
    %3036 = vmatpush2.msra.mxu0 0.0
    %3037 = vmatprep.subr.mxu0 0.0
    %3038 = vmatpush2.msra.mxu0 0.0
    %3039 = vmatprep.mubr.f32.mxu0 0.0
    %3040 = vmatmul.mubr.f32.gmra.mxu0 %v2547
    %v3041 = vpop.f32.mrf.mxu0
    %v3042 = vadd.f32 %v2517, %v3041
    %v3043 = vpop.f32.mrf.mxu0
    %v3044 = vadd.f32 %v2521, %v3043
    %3045 = vdwg.mxu0
    %3046 = vmatprep.subr.mxu0 0.0
    %3047 = vmatpush1.msra.mxu0 0.0
    %3048 = vmatprep.subr.mxu0 0.0
    %3049 = vmatpush1.msra.mxu0 0.0
    %3050 = vmatprep.subr.mxu0 0.0
    %3051 = vmatpush1.msra.mxu0 0.0
    %3052 = vmatprep.subr.mxu0 0.0
    %3053 = vmatpush1.msra.mxu0 0.0
    %3054 = vmatprep.subr.mxu0 0.0
    %3055 = vmatpush1.msra.mxu0 0.0
    %3056 = vmatprep.subr.mxu0 0.0
    %3057 = vmatpush1.msra.mxu0 0.0
    %3058 = vmatprep.subr.mxu0 0.0
    %3059 = vmatpush1.msra.mxu0 0.0
    %3060 = vmatprep.subr.mxu0 0.0
    %3061 = vmatpush1.msra.mxu0 0.0
    %3062 = vmatprep.subr.mxu0 0.0
    %3063 = vmatpush1.msra.mxu0 0.0
    %3064 = vmatprep.subr.mxu0 0.0
    %3065 = vmatpush1.msra.mxu0 0.0
    %3066 = vmatprep.subr.mxu0 0.0
    %3067 = vmatpush1.msra.mxu0 0.0
    %3068 = vmatprep.subr.mxu0 0.0
    %3069 = vmatpush1.msra.mxu0 0.0
    %3070 = vmatprep.subr.mxu0 0.0
    %3071 = vmatpush1.msra.mxu0 0.0
    %3072 = vmatprep.subr.mxu0 0.0
    %3073 = vmatpush1.msra.mxu0 0.0
    %3074 = vmatprep.subr.mxu0 %v2095
    %3075 = vmatpush1.msra.mxu0 %v2094
    %3076 = vmatprep.subr.mxu0 %v2079
    %3077 = vmatpush1.msra.mxu0 %v2078
    %3078 = vmatprep.subr.mxu0 0.0
    %3079 = vmatpush2.msra.mxu0 0.0
    %3080 = vmatprep.subr.mxu0 0.0
    %3081 = vmatpush2.msra.mxu0 0.0
    %3082 = vmatprep.subr.mxu0 0.0
    %3083 = vmatpush2.msra.mxu0 0.0
    %3084 = vmatprep.subr.mxu0 0.0
    %3085 = vmatpush2.msra.mxu0 0.0
    %3086 = vmatprep.subr.mxu0 0.0
    %3087 = vmatpush2.msra.mxu0 0.0
    %3088 = vmatprep.subr.mxu0 0.0
    %3089 = vmatpush2.msra.mxu0 0.0
    %3090 = vmatprep.subr.mxu0 0.0
    %3091 = vmatpush2.msra.mxu0 0.0
    %3092 = vmatprep.subr.mxu0 0.0
    %3093 = vmatpush2.msra.mxu0 0.0
    %3094 = vmatprep.subr.mxu0 0.0
    %3095 = vmatpush2.msra.mxu0 0.0
    %3096 = vmatprep.subr.mxu0 0.0
    %3097 = vmatpush2.msra.mxu0 0.0
    %3098 = vmatprep.subr.mxu0 0.0
    %3099 = vmatpush2.msra.mxu0 0.0
    %3100 = vmatprep.subr.mxu0 0.0
    %3101 = vmatpush2.msra.mxu0 0.0
    %3102 = vmatprep.subr.mxu0 0.0
    %3103 = vmatpush2.msra.mxu0 0.0
    %3104 = vmatprep.subr.mxu0 0.0
    %3105 = vmatpush2.msra.mxu0 0.0
    %3106 = vmatprep.subr.mxu0 0.0
    %3107 = vmatpush2.msra.mxu0 0.0
    %3108 = vmatprep.subr.mxu0 0.0
    %3109 = vmatpush2.msra.mxu0 0.0
    %3110 = vmatprep.mubr.f32.mxu0 0.0
    %3111 = vmatmul.mubr.f32.gmra.mxu0 %v2547
    %v3112 = vpop.f32.mrf.mxu0
    %v3113 = vadd.f32 %v2525, %v3112
    %v3114 = vpop.f32.mrf.mxu0
    %v3115 = vadd.f32 %v2529, %v3114
    %3116 = vdwg.mxu0
    %v3117 = vmax.f32 %v2616, 0.0
    %v3118 = vmax.f32 %v2618, 0.0
    %v3119 = vmax.f32 %v2687, 0.0
    %v3120 = vmax.f32 %v2689, 0.0
    %v3121 = vmax.f32 %v2758, 0.0
    %v3122 = vmax.f32 %v2760, 0.0
    %v3123 = vmax.f32 %v2829, 0.0
    %v3124 = vmax.f32 %v2831, 0.0
    %v3125 = vmax.f32 %v2900, 0.0
    %v3126 = vmax.f32 %v2902, 0.0
    %v3127 = vmax.f32 %v2971, 0.0
    %v3128 = vmax.f32 %v2973, 0.0
    %v3129 = vmax.f32 %v3042, 0.0
    %v3130 = vmax.f32 %v3044, 0.0
    %v3131 = vmax.f32 %v3113, 0.0
    %v3132 = vmax.f32 %v3115, 0.0
    %v3134 = vlaneseq
    %v3135 = vshrl.u32 %v3134, 7
    %v3136 = vsub.s32 0, %v3135
    %v3137 = vrot.slane %v2354, %v3136
    %3139 = vmatprep.subr.mxu0 0.0
    %3140 = vmatpush1.msra.mxu0 %v2113
    %3141 = vmatprep.subr.mxu0 0.0
    %3142 = vmatpush1.msra.mxu0 %v2112
    %3143 = vmatprep.subr.mxu0 0.0
    %3144 = vmatpush1.msra.mxu0 %v2111
    %3145 = vmatprep.subr.mxu0 0.0
    %3146 = vmatpush1.msra.mxu0 %v2110
    %3147 = vmatprep.subr.mxu0 0.0
    %3148 = vmatpush1.msra.mxu0 %v2109
    %3149 = vmatprep.subr.mxu0 0.0
    %3150 = vmatpush1.msra.mxu0 %v2108
    %3151 = vmatprep.subr.mxu0 0.0
    %3152 = vmatpush1.msra.mxu0 %v2107
    %3153 = vmatprep.subr.mxu0 0.0
    %3154 = vmatpush1.msra.mxu0 %v2106
    %3155 = vmatprep.subr.mxu0 0.0
    %3156 = vmatpush1.msra.mxu0 %v2105
    %3157 = vmatprep.subr.mxu0 0.0
    %3158 = vmatpush1.msra.mxu0 %v2104
    %3159 = vmatprep.subr.mxu0 0.0
    %3160 = vmatpush1.msra.mxu0 %v2103
    %3161 = vmatprep.subr.mxu0 0.0
    %3162 = vmatpush1.msra.mxu0 %v2102
    %3163 = vmatprep.subr.mxu0 0.0
    %3164 = vmatpush1.msra.mxu0 %v2101
    %3165 = vmatprep.subr.mxu0 0.0
    %3166 = vmatpush1.msra.mxu0 %v2100
    %3167 = vmatprep.subr.mxu0 0.0
    %3168 = vmatpush1.msra.mxu0 %v2099
    %3169 = vmatprep.subr.mxu0 0.0
    %3170 = vmatpush1.msra.mxu0 %v2098
    %3171 = vmatprep.subr.mxu0 0.0
    %3172 = vmatpush2.msra.mxu0 %v2129
    %3173 = vmatprep.subr.mxu0 0.0
    %3174 = vmatpush2.msra.mxu0 %v2128
    %3175 = vmatprep.subr.mxu0 0.0
    %3176 = vmatpush2.msra.mxu0 %v2127
    %3177 = vmatprep.subr.mxu0 0.0
    %3178 = vmatpush2.msra.mxu0 %v2126
    %3179 = vmatprep.subr.mxu0 0.0
    %3180 = vmatpush2.msra.mxu0 %v2125
    %3181 = vmatprep.subr.mxu0 0.0
    %3182 = vmatpush2.msra.mxu0 %v2124
    %3183 = vmatprep.subr.mxu0 0.0
    %3184 = vmatpush2.msra.mxu0 %v2123
    %3185 = vmatprep.subr.mxu0 0.0
    %3186 = vmatpush2.msra.mxu0 %v2122
    %3187 = vmatprep.subr.mxu0 0.0
    %3188 = vmatpush2.msra.mxu0 %v2121
    %3189 = vmatprep.subr.mxu0 0.0
    %3190 = vmatpush2.msra.mxu0 %v2120
    %3191 = vmatprep.subr.mxu0 0.0
    %3192 = vmatpush2.msra.mxu0 %v2119
    %3193 = vmatprep.subr.mxu0 0.0
    %3194 = vmatpush2.msra.mxu0 %v2118
    %3195 = vmatprep.subr.mxu0 0.0
    %3196 = vmatpush2.msra.mxu0 %v2117
    %3197 = vmatprep.subr.mxu0 0.0
    %3198 = vmatpush2.msra.mxu0 %v2116
    %3199 = vmatprep.subr.mxu0 0.0
    %3200 = vmatpush2.msra.mxu0 %v2115
    %3201 = vmatprep.subr.mxu0 0.0
    %3202 = vmatpush2.msra.mxu0 %v2114
    %3203 = vmatprep.mubr.f32.mxu0 %v3118
    %3204 = vmatmul.mubr.f32.gmra.mxu0 %v3117
    %v3205 = vpop.f32.mrf.mxu0
    %v3206 = vadd.f32 %v3137, %v3205
    %v3207 = vpop.f32.mrf.mxu0
    %3208 = vdwg.mxu0
    %3209 = vmatprep.subr.mxu0 0.0
    %3210 = vmatpush1.msra.mxu0 %v2145
    %3211 = vmatprep.subr.mxu0 0.0
    %3212 = vmatpush1.msra.mxu0 %v2144
    %3213 = vmatprep.subr.mxu0 0.0
    %3214 = vmatpush1.msra.mxu0 %v2143
    %3215 = vmatprep.subr.mxu0 0.0
    %3216 = vmatpush1.msra.mxu0 %v2142
    %3217 = vmatprep.subr.mxu0 0.0
    %3218 = vmatpush1.msra.mxu0 %v2141
    %3219 = vmatprep.subr.mxu0 0.0
    %3220 = vmatpush1.msra.mxu0 %v2140
    %3221 = vmatprep.subr.mxu0 0.0
    %3222 = vmatpush1.msra.mxu0 %v2139
    %3223 = vmatprep.subr.mxu0 0.0
    %3224 = vmatpush1.msra.mxu0 %v2138
    %3225 = vmatprep.subr.mxu0 0.0
    %3226 = vmatpush1.msra.mxu0 %v2137
    %3227 = vmatprep.subr.mxu0 0.0
    %3228 = vmatpush1.msra.mxu0 %v2136
    %3229 = vmatprep.subr.mxu0 0.0
    %3230 = vmatpush1.msra.mxu0 %v2135
    %3231 = vmatprep.subr.mxu0 0.0
    %3232 = vmatpush1.msra.mxu0 %v2134
    %3233 = vmatprep.subr.mxu0 0.0
    %3234 = vmatpush1.msra.mxu0 %v2133
    %3235 = vmatprep.subr.mxu0 0.0
    %3236 = vmatpush1.msra.mxu0 %v2132
    %3237 = vmatprep.subr.mxu0 0.0
    %3238 = vmatpush1.msra.mxu0 %v2131
    %3239 = vmatprep.subr.mxu0 0.0
    %3240 = vmatpush1.msra.mxu0 %v2130
    %3241 = vmatprep.subr.mxu0 0.0
    %3242 = vmatpush2.msra.mxu0 %v2161
    %3243 = vmatprep.subr.mxu0 0.0
    %3244 = vmatpush2.msra.mxu0 %v2160
    %3245 = vmatprep.subr.mxu0 0.0
    %3246 = vmatpush2.msra.mxu0 %v2159
    %3247 = vmatprep.subr.mxu0 0.0
    %3248 = vmatpush2.msra.mxu0 %v2158
    %3249 = vmatprep.subr.mxu0 0.0
    %3250 = vmatpush2.msra.mxu0 %v2157
    %3251 = vmatprep.subr.mxu0 0.0
    %3252 = vmatpush2.msra.mxu0 %v2156
    %3253 = vmatprep.subr.mxu0 0.0
    %3254 = vmatpush2.msra.mxu0 %v2155
    %3255 = vmatprep.subr.mxu0 0.0
    %3256 = vmatpush2.msra.mxu0 %v2154
    %3257 = vmatprep.subr.mxu0 0.0
    %3258 = vmatpush2.msra.mxu0 %v2153
    %3259 = vmatprep.subr.mxu0 0.0
    %3260 = vmatpush2.msra.mxu0 %v2152
    %3261 = vmatprep.subr.mxu0 0.0
    %3262 = vmatpush2.msra.mxu0 %v2151
    %3263 = vmatprep.subr.mxu0 0.0
    %3264 = vmatpush2.msra.mxu0 %v2150
    %3265 = vmatprep.subr.mxu0 0.0
    %3266 = vmatpush2.msra.mxu0 %v2149
    %3267 = vmatprep.subr.mxu0 0.0
    %3268 = vmatpush2.msra.mxu0 %v2148
    %3269 = vmatprep.subr.mxu0 0.0
    %3270 = vmatpush2.msra.mxu0 %v2147
    %3271 = vmatprep.subr.mxu0 0.0
    %3272 = vmatpush2.msra.mxu0 %v2146
    %3273 = vmatprep.mubr.f32.mxu0 %v3120
    %3274 = vmatmul.mubr.f32.gmra.mxu0 %v3119
    %v3275 = vpop.f32.mrf.mxu0
    %v3276 = vadd.f32 %v3206, %v3275
    %v3277 = vpop.f32.mrf.mxu0
    %3278 = vdwg.mxu0
    %3279 = vmatprep.subr.mxu0 0.0
    %3280 = vmatpush1.msra.mxu0 %v2177
    %3281 = vmatprep.subr.mxu0 0.0
    %3282 = vmatpush1.msra.mxu0 %v2176
    %3283 = vmatprep.subr.mxu0 0.0
    %3284 = vmatpush1.msra.mxu0 %v2175
    %3285 = vmatprep.subr.mxu0 0.0
    %3286 = vmatpush1.msra.mxu0 %v2174
    %3287 = vmatprep.subr.mxu0 0.0
    %3288 = vmatpush1.msra.mxu0 %v2173
    %3289 = vmatprep.subr.mxu0 0.0
    %3290 = vmatpush1.msra.mxu0 %v2172
    %3291 = vmatprep.subr.mxu0 0.0
    %3292 = vmatpush1.msra.mxu0 %v2171
    %3293 = vmatprep.subr.mxu0 0.0
    %3294 = vmatpush1.msra.mxu0 %v2170
    %3295 = vmatprep.subr.mxu0 0.0
    %3296 = vmatpush1.msra.mxu0 %v2169
    %3297 = vmatprep.subr.mxu0 0.0
    %3298 = vmatpush1.msra.mxu0 %v2168
    %3299 = vmatprep.subr.mxu0 0.0
    %3300 = vmatpush1.msra.mxu0 %v2167
    %3301 = vmatprep.subr.mxu0 0.0
    %3302 = vmatpush1.msra.mxu0 %v2166
    %3303 = vmatprep.subr.mxu0 0.0
    %3304 = vmatpush1.msra.mxu0 %v2165
    %3305 = vmatprep.subr.mxu0 0.0
    %3306 = vmatpush1.msra.mxu0 %v2164
    %3307 = vmatprep.subr.mxu0 0.0
    %3308 = vmatpush1.msra.mxu0 %v2163
    %3309 = vmatprep.subr.mxu0 0.0
    %3310 = vmatpush1.msra.mxu0 %v2162
    %3311 = vmatprep.subr.mxu0 0.0
    %3312 = vmatpush2.msra.mxu0 %v2193
    %3313 = vmatprep.subr.mxu0 0.0
    %3314 = vmatpush2.msra.mxu0 %v2192
    %3315 = vmatprep.subr.mxu0 0.0
    %3316 = vmatpush2.msra.mxu0 %v2191
    %3317 = vmatprep.subr.mxu0 0.0
    %3318 = vmatpush2.msra.mxu0 %v2190
    %3319 = vmatprep.subr.mxu0 0.0
    %3320 = vmatpush2.msra.mxu0 %v2189
    %3321 = vmatprep.subr.mxu0 0.0
    %3322 = vmatpush2.msra.mxu0 %v2188
    %3323 = vmatprep.subr.mxu0 0.0
    %3324 = vmatpush2.msra.mxu0 %v2187
    %3325 = vmatprep.subr.mxu0 0.0
    %3326 = vmatpush2.msra.mxu0 %v2186
    %3327 = vmatprep.subr.mxu0 0.0
    %3328 = vmatpush2.msra.mxu0 %v2185
    %3329 = vmatprep.subr.mxu0 0.0
    %3330 = vmatpush2.msra.mxu0 %v2184
    %3331 = vmatprep.subr.mxu0 0.0
    %3332 = vmatpush2.msra.mxu0 %v2183
    %3333 = vmatprep.subr.mxu0 0.0
    %3334 = vmatpush2.msra.mxu0 %v2182
    %3335 = vmatprep.subr.mxu0 0.0
    %3336 = vmatpush2.msra.mxu0 %v2181
    %3337 = vmatprep.subr.mxu0 0.0
    %3338 = vmatpush2.msra.mxu0 %v2180
    %3339 = vmatprep.subr.mxu0 0.0
    %3340 = vmatpush2.msra.mxu0 %v2179
    %3341 = vmatprep.subr.mxu0 0.0
    %3342 = vmatpush2.msra.mxu0 %v2178
    %3343 = vmatprep.mubr.f32.mxu0 %v3122
    %3344 = vmatmul.mubr.f32.gmra.mxu0 %v3121
    %v3345 = vpop.f32.mrf.mxu0
    %v3346 = vadd.f32 %v3276, %v3345
    %v3347 = vpop.f32.mrf.mxu0
    %3348 = vdwg.mxu0
    %3349 = vmatprep.subr.mxu0 0.0
    %3350 = vmatpush1.msra.mxu0 %v2209
    %3351 = vmatprep.subr.mxu0 0.0
    %3352 = vmatpush1.msra.mxu0 %v2208
    %3353 = vmatprep.subr.mxu0 0.0
    %3354 = vmatpush1.msra.mxu0 %v2207
    %3355 = vmatprep.subr.mxu0 0.0
    %3356 = vmatpush1.msra.mxu0 %v2206
    %3357 = vmatprep.subr.mxu0 0.0
    %3358 = vmatpush1.msra.mxu0 %v2205
    %3359 = vmatprep.subr.mxu0 0.0
    %3360 = vmatpush1.msra.mxu0 %v2204
    %3361 = vmatprep.subr.mxu0 0.0
    %3362 = vmatpush1.msra.mxu0 %v2203
    %3363 = vmatprep.subr.mxu0 0.0
    %3364 = vmatpush1.msra.mxu0 %v2202
    %3365 = vmatprep.subr.mxu0 0.0
    %3366 = vmatpush1.msra.mxu0 %v2201
    %3367 = vmatprep.subr.mxu0 0.0
    %3368 = vmatpush1.msra.mxu0 %v2200
    %3369 = vmatprep.subr.mxu0 0.0
    %3370 = vmatpush1.msra.mxu0 %v2199
    %3371 = vmatprep.subr.mxu0 0.0
    %3372 = vmatpush1.msra.mxu0 %v2198
    %3373 = vmatprep.subr.mxu0 0.0
    %3374 = vmatpush1.msra.mxu0 %v2197
    %3375 = vmatprep.subr.mxu0 0.0
    %3376 = vmatpush1.msra.mxu0 %v2196
    %3377 = vmatprep.subr.mxu0 0.0
    %3378 = vmatpush1.msra.mxu0 %v2195
    %3379 = vmatprep.subr.mxu0 0.0
    %3380 = vmatpush1.msra.mxu0 %v2194
    %3381 = vmatprep.subr.mxu0 0.0
    %3382 = vmatpush2.msra.mxu0 %v2225
    %3383 = vmatprep.subr.mxu0 0.0
    %3384 = vmatpush2.msra.mxu0 %v2224
    %3385 = vmatprep.subr.mxu0 0.0
    %3386 = vmatpush2.msra.mxu0 %v2223
    %3387 = vmatprep.subr.mxu0 0.0
    %3388 = vmatpush2.msra.mxu0 %v2222
    %3389 = vmatprep.subr.mxu0 0.0
    %3390 = vmatpush2.msra.mxu0 %v2221
    %3391 = vmatprep.subr.mxu0 0.0
    %3392 = vmatpush2.msra.mxu0 %v2220
    %3393 = vmatprep.subr.mxu0 0.0
    %3394 = vmatpush2.msra.mxu0 %v2219
    %3395 = vmatprep.subr.mxu0 0.0
    %3396 = vmatpush2.msra.mxu0 %v2218
    %3397 = vmatprep.subr.mxu0 0.0
    %3398 = vmatpush2.msra.mxu0 %v2217
    %3399 = vmatprep.subr.mxu0 0.0
    %3400 = vmatpush2.msra.mxu0 %v2216
    %3401 = vmatprep.subr.mxu0 0.0
    %3402 = vmatpush2.msra.mxu0 %v2215
    %3403 = vmatprep.subr.mxu0 0.0
    %3404 = vmatpush2.msra.mxu0 %v2214
    %3405 = vmatprep.subr.mxu0 0.0
    %3406 = vmatpush2.msra.mxu0 %v2213
    %3407 = vmatprep.subr.mxu0 0.0
    %3408 = vmatpush2.msra.mxu0 %v2212
    %3409 = vmatprep.subr.mxu0 0.0
    %3410 = vmatpush2.msra.mxu0 %v2211
    %3411 = vmatprep.subr.mxu0 0.0
    %3412 = vmatpush2.msra.mxu0 %v2210
    %3413 = vmatprep.mubr.f32.mxu0 %v3124
    %3414 = vmatmul.mubr.f32.gmra.mxu0 %v3123
    %v3415 = vpop.f32.mrf.mxu0
    %v3416 = vadd.f32 %v3346, %v3415
    %v3417 = vpop.f32.mrf.mxu0
    %3418 = vdwg.mxu0
    %3419 = vmatprep.subr.mxu0 0.0
    %3420 = vmatpush1.msra.mxu0 %v2241
    %3421 = vmatprep.subr.mxu0 0.0
    %3422 = vmatpush1.msra.mxu0 %v2240
    %3423 = vmatprep.subr.mxu0 0.0
    %3424 = vmatpush1.msra.mxu0 %v2239
    %3425 = vmatprep.subr.mxu0 0.0
    %3426 = vmatpush1.msra.mxu0 %v2238
    %3427 = vmatprep.subr.mxu0 0.0
    %3428 = vmatpush1.msra.mxu0 %v2237
    %3429 = vmatprep.subr.mxu0 0.0
    %3430 = vmatpush1.msra.mxu0 %v2236
    %3431 = vmatprep.subr.mxu0 0.0
    %3432 = vmatpush1.msra.mxu0 %v2235
    %3433 = vmatprep.subr.mxu0 0.0
    %3434 = vmatpush1.msra.mxu0 %v2234
    %3435 = vmatprep.subr.mxu0 0.0
    %3436 = vmatpush1.msra.mxu0 %v2233
    %3437 = vmatprep.subr.mxu0 0.0
    %3438 = vmatpush1.msra.mxu0 %v2232
    %3439 = vmatprep.subr.mxu0 0.0
    %3440 = vmatpush1.msra.mxu0 %v2231
    %3441 = vmatprep.subr.mxu0 0.0
    %3442 = vmatpush1.msra.mxu0 %v2230
    %3443 = vmatprep.subr.mxu0 0.0
    %3444 = vmatpush1.msra.mxu0 %v2229
    %3445 = vmatprep.subr.mxu0 0.0
    %3446 = vmatpush1.msra.mxu0 %v2228
    %3447 = vmatprep.subr.mxu0 0.0
    %3448 = vmatpush1.msra.mxu0 %v2227
    %3449 = vmatprep.subr.mxu0 0.0
    %3450 = vmatpush1.msra.mxu0 %v2226
    %3451 = vmatprep.subr.mxu0 0.0
    %3452 = vmatpush2.msra.mxu0 %v2257
    %3453 = vmatprep.subr.mxu0 0.0
    %3454 = vmatpush2.msra.mxu0 %v2256
    %3455 = vmatprep.subr.mxu0 0.0
    %3456 = vmatpush2.msra.mxu0 %v2255
    %3457 = vmatprep.subr.mxu0 0.0
    %3458 = vmatpush2.msra.mxu0 %v2254
    %3459 = vmatprep.subr.mxu0 0.0
    %3460 = vmatpush2.msra.mxu0 %v2253
    %3461 = vmatprep.subr.mxu0 0.0
    %3462 = vmatpush2.msra.mxu0 %v2252
    %3463 = vmatprep.subr.mxu0 0.0
    %3464 = vmatpush2.msra.mxu0 %v2251
    %3465 = vmatprep.subr.mxu0 0.0
    %3466 = vmatpush2.msra.mxu0 %v2250
    %3467 = vmatprep.subr.mxu0 0.0
    %3468 = vmatpush2.msra.mxu0 %v2249
    %3469 = vmatprep.subr.mxu0 0.0
    %3470 = vmatpush2.msra.mxu0 %v2248
    %3471 = vmatprep.subr.mxu0 0.0
    %3472 = vmatpush2.msra.mxu0 %v2247
    %3473 = vmatprep.subr.mxu0 0.0
    %3474 = vmatpush2.msra.mxu0 %v2246
    %3475 = vmatprep.subr.mxu0 0.0
    %3476 = vmatpush2.msra.mxu0 %v2245
    %3477 = vmatprep.subr.mxu0 0.0
    %3478 = vmatpush2.msra.mxu0 %v2244
    %3479 = vmatprep.subr.mxu0 0.0
    %3480 = vmatpush2.msra.mxu0 %v2243
    %3481 = vmatprep.subr.mxu0 0.0
    %3482 = vmatpush2.msra.mxu0 %v2242
    %3483 = vmatprep.mubr.f32.mxu0 %v3126
    %3484 = vmatmul.mubr.f32.gmra.mxu0 %v3125
    %v3485 = vpop.f32.mrf.mxu0
    %v3486 = vadd.f32 %v3416, %v3485
    %v3487 = vpop.f32.mrf.mxu0
    %3488 = vdwg.mxu0
    %3489 = vmatprep.subr.mxu0 0.0
    %3490 = vmatpush1.msra.mxu0 %v2273
    %3491 = vmatprep.subr.mxu0 0.0
    %3492 = vmatpush1.msra.mxu0 %v2272
    %3493 = vmatprep.subr.mxu0 0.0
    %3494 = vmatpush1.msra.mxu0 %v2271
    %3495 = vmatprep.subr.mxu0 0.0
    %3496 = vmatpush1.msra.mxu0 %v2270
    %3497 = vmatprep.subr.mxu0 0.0
    %3498 = vmatpush1.msra.mxu0 %v2269
    %3499 = vmatprep.subr.mxu0 0.0
    %3500 = vmatpush1.msra.mxu0 %v2268
    %3501 = vmatprep.subr.mxu0 0.0
    %3502 = vmatpush1.msra.mxu0 %v2267
    %3503 = vmatprep.subr.mxu0 0.0
    %3504 = vmatpush1.msra.mxu0 %v2266
    %3505 = vmatprep.subr.mxu0 0.0
    %3506 = vmatpush1.msra.mxu0 %v2265
    %3507 = vmatprep.subr.mxu0 0.0
    %3508 = vmatpush1.msra.mxu0 %v2264
    %3509 = vmatprep.subr.mxu0 0.0
    %3510 = vmatpush1.msra.mxu0 %v2263
    %3511 = vmatprep.subr.mxu0 0.0
    %3512 = vmatpush1.msra.mxu0 %v2262
    %3513 = vmatprep.subr.mxu0 0.0
    %3514 = vmatpush1.msra.mxu0 %v2261
    %3515 = vmatprep.subr.mxu0 0.0
    %3516 = vmatpush1.msra.mxu0 %v2260
    %3517 = vmatprep.subr.mxu0 0.0
    %3518 = vmatpush1.msra.mxu0 %v2259
    %3519 = vmatprep.subr.mxu0 0.0
    %3520 = vmatpush1.msra.mxu0 %v2258
    %3521 = vmatprep.subr.mxu0 0.0
    %3522 = vmatpush2.msra.mxu0 %v2289
    %3523 = vmatprep.subr.mxu0 0.0
    %3524 = vmatpush2.msra.mxu0 %v2288
    %3525 = vmatprep.subr.mxu0 0.0
    %3526 = vmatpush2.msra.mxu0 %v2287
    %3527 = vmatprep.subr.mxu0 0.0
    %3528 = vmatpush2.msra.mxu0 %v2286
    %3529 = vmatprep.subr.mxu0 0.0
    %3530 = vmatpush2.msra.mxu0 %v2285
    %3531 = vmatprep.subr.mxu0 0.0
    %3532 = vmatpush2.msra.mxu0 %v2284
    %3533 = vmatprep.subr.mxu0 0.0
    %3534 = vmatpush2.msra.mxu0 %v2283
    %3535 = vmatprep.subr.mxu0 0.0
    %3536 = vmatpush2.msra.mxu0 %v2282
    %3537 = vmatprep.subr.mxu0 0.0
    %3538 = vmatpush2.msra.mxu0 %v2281
    %3539 = vmatprep.subr.mxu0 0.0
    %3540 = vmatpush2.msra.mxu0 %v2280
    %3541 = vmatprep.subr.mxu0 0.0
    %3542 = vmatpush2.msra.mxu0 %v2279
    %3543 = vmatprep.subr.mxu0 0.0
    %3544 = vmatpush2.msra.mxu0 %v2278
    %3545 = vmatprep.subr.mxu0 0.0
    %3546 = vmatpush2.msra.mxu0 %v2277
    %3547 = vmatprep.subr.mxu0 0.0
    %3548 = vmatpush2.msra.mxu0 %v2276
    %3549 = vmatprep.subr.mxu0 0.0
    %3550 = vmatpush2.msra.mxu0 %v2275
    %3551 = vmatprep.subr.mxu0 0.0
    %3552 = vmatpush2.msra.mxu0 %v2274
    %3553 = vmatprep.mubr.f32.mxu0 %v3128
    %3554 = vmatmul.mubr.f32.gmra.mxu0 %v3127
    %v3555 = vpop.f32.mrf.mxu0
    %v3556 = vadd.f32 %v3486, %v3555
    %v3557 = vpop.f32.mrf.mxu0
    %3558 = vdwg.mxu0
    %3559 = vmatprep.subr.mxu0 0.0
    %3560 = vmatpush1.msra.mxu0 %v2305
    %3561 = vmatprep.subr.mxu0 0.0
    %3562 = vmatpush1.msra.mxu0 %v2304
    %3563 = vmatprep.subr.mxu0 0.0
    %3564 = vmatpush1.msra.mxu0 %v2303
    %3565 = vmatprep.subr.mxu0 0.0
    %3566 = vmatpush1.msra.mxu0 %v2302
    %3567 = vmatprep.subr.mxu0 0.0
    %3568 = vmatpush1.msra.mxu0 %v2301
    %3569 = vmatprep.subr.mxu0 0.0
    %3570 = vmatpush1.msra.mxu0 %v2300
    %3571 = vmatprep.subr.mxu0 0.0
    %3572 = vmatpush1.msra.mxu0 %v2299
    %3573 = vmatprep.subr.mxu0 0.0
    %3574 = vmatpush1.msra.mxu0 %v2298
    %3575 = vmatprep.subr.mxu0 0.0
    %3576 = vmatpush1.msra.mxu0 %v2297
    %3577 = vmatprep.subr.mxu0 0.0
    %3578 = vmatpush1.msra.mxu0 %v2296
    %3579 = vmatprep.subr.mxu0 0.0
    %3580 = vmatpush1.msra.mxu0 %v2295
    %3581 = vmatprep.subr.mxu0 0.0
    %3582 = vmatpush1.msra.mxu0 %v2294
    %3583 = vmatprep.subr.mxu0 0.0
    %3584 = vmatpush1.msra.mxu0 %v2293
    %3585 = vmatprep.subr.mxu0 0.0
    %3586 = vmatpush1.msra.mxu0 %v2292
    %3587 = vmatprep.subr.mxu0 0.0
    %3588 = vmatpush1.msra.mxu0 %v2291
    %3589 = vmatprep.subr.mxu0 0.0
    %3590 = vmatpush1.msra.mxu0 %v2290
    %3591 = vmatprep.subr.mxu0 0.0
    %3592 = vmatpush2.msra.mxu0 %v2321
    %3593 = vmatprep.subr.mxu0 0.0
    %3594 = vmatpush2.msra.mxu0 %v2320
    %3595 = vmatprep.subr.mxu0 0.0
    %3596 = vmatpush2.msra.mxu0 %v2319
    %3597 = vmatprep.subr.mxu0 0.0
    %3598 = vmatpush2.msra.mxu0 %v2318
    %3599 = vmatprep.subr.mxu0 0.0
    %3600 = vmatpush2.msra.mxu0 %v2317
    %3601 = vmatprep.subr.mxu0 0.0
    %3602 = vmatpush2.msra.mxu0 %v2316
    %3603 = vmatprep.subr.mxu0 0.0
    %3604 = vmatpush2.msra.mxu0 %v2315
    %3605 = vmatprep.subr.mxu0 0.0
    %3606 = vmatpush2.msra.mxu0 %v2314
    %3607 = vmatprep.subr.mxu0 0.0
    %3608 = vmatpush2.msra.mxu0 %v2313
    %3609 = vmatprep.subr.mxu0 0.0
    %3610 = vmatpush2.msra.mxu0 %v2312
    %3611 = vmatprep.subr.mxu0 0.0
    %3612 = vmatpush2.msra.mxu0 %v2311
    %3613 = vmatprep.subr.mxu0 0.0
    %3614 = vmatpush2.msra.mxu0 %v2310
    %3615 = vmatprep.subr.mxu0 0.0
    %3616 = vmatpush2.msra.mxu0 %v2309
    %3617 = vmatprep.subr.mxu0 0.0
    %3618 = vmatpush2.msra.mxu0 %v2308
    %3619 = vmatprep.subr.mxu0 0.0
    %3620 = vmatpush2.msra.mxu0 %v2307
    %3621 = vmatprep.subr.mxu0 0.0
    %3622 = vmatpush2.msra.mxu0 %v2306
    %3623 = vmatprep.mubr.f32.mxu0 %v3130
    %3624 = vmatmul.mubr.f32.gmra.mxu0 %v3129
    %v3625 = vpop.f32.mrf.mxu0
    %v3626 = vadd.f32 %v3556, %v3625
    %v3627 = vpop.f32.mrf.mxu0
    %3628 = vdwg.mxu0
    %3629 = vmatprep.subr.mxu0 0.0
    %3630 = vmatpush1.msra.mxu0 %v2337
    %3631 = vmatprep.subr.mxu0 0.0
    %3632 = vmatpush1.msra.mxu0 %v2336
    %3633 = vmatprep.subr.mxu0 0.0
    %3634 = vmatpush1.msra.mxu0 %v2335
    %3635 = vmatprep.subr.mxu0 0.0
    %3636 = vmatpush1.msra.mxu0 %v2334
    %3637 = vmatprep.subr.mxu0 0.0
    %3638 = vmatpush1.msra.mxu0 %v2333
    %3639 = vmatprep.subr.mxu0 0.0
    %3640 = vmatpush1.msra.mxu0 %v2332
    %3641 = vmatprep.subr.mxu0 0.0
    %3642 = vmatpush1.msra.mxu0 %v2331
    %3643 = vmatprep.subr.mxu0 0.0
    %3644 = vmatpush1.msra.mxu0 %v2330
    %3645 = vmatprep.subr.mxu0 0.0
    %3646 = vmatpush1.msra.mxu0 %v2329
    %3647 = vmatprep.subr.mxu0 0.0
    %3648 = vmatpush1.msra.mxu0 %v2328
    %3649 = vmatprep.subr.mxu0 0.0
    %3650 = vmatpush1.msra.mxu0 %v2327
    %3651 = vmatprep.subr.mxu0 0.0
    %3652 = vmatpush1.msra.mxu0 %v2326
    %3653 = vmatprep.subr.mxu0 0.0
    %3654 = vmatpush1.msra.mxu0 %v2325
    %3655 = vmatprep.subr.mxu0 0.0
    %3656 = vmatpush1.msra.mxu0 %v2324
    %3657 = vmatprep.subr.mxu0 0.0
    %3658 = vmatpush1.msra.mxu0 %v2323
    %3659 = vmatprep.subr.mxu0 0.0
    %3660 = vmatpush1.msra.mxu0 %v2322
    %3661 = vmatprep.subr.mxu0 0.0
    %3662 = vmatpush2.msra.mxu0 %v2353
    %3663 = vmatprep.subr.mxu0 0.0
    %3664 = vmatpush2.msra.mxu0 %v2352
    %3665 = vmatprep.subr.mxu0 0.0
    %3666 = vmatpush2.msra.mxu0 %v2351
    %3667 = vmatprep.subr.mxu0 0.0
    %3668 = vmatpush2.msra.mxu0 %v2350
    %3669 = vmatprep.subr.mxu0 0.0
    %3670 = vmatpush2.msra.mxu0 %v2349
    %3671 = vmatprep.subr.mxu0 0.0
    %3672 = vmatpush2.msra.mxu0 %v2348
    %3673 = vmatprep.subr.mxu0 0.0
    %3674 = vmatpush2.msra.mxu0 %v2347
    %3675 = vmatprep.subr.mxu0 0.0
    %3676 = vmatpush2.msra.mxu0 %v2346
    %3677 = vmatprep.subr.mxu0 0.0
    %3678 = vmatpush2.msra.mxu0 %v2345
    %3679 = vmatprep.subr.mxu0 0.0
    %3680 = vmatpush2.msra.mxu0 %v2344
    %3681 = vmatprep.subr.mxu0 0.0
    %3682 = vmatpush2.msra.mxu0 %v2343
    %3683 = vmatprep.subr.mxu0 0.0
    %3684 = vmatpush2.msra.mxu0 %v2342
    %3685 = vmatprep.subr.mxu0 0.0
    %3686 = vmatpush2.msra.mxu0 %v2341
    %3687 = vmatprep.subr.mxu0 0.0
    %3688 = vmatpush2.msra.mxu0 %v2340
    %3689 = vmatprep.subr.mxu0 0.0
    %3690 = vmatpush2.msra.mxu0 %v2339
    %3691 = vmatprep.subr.mxu0 0.0
    %3692 = vmatpush2.msra.mxu0 %v2338
    %3693 = vmatprep.mubr.f32.mxu0 %v3132
    %3694 = vmatmul.mubr.f32.gmra.mxu0 %v3131
    %v3695 = vpop.f32.mrf.mxu0
    %v3696 = vadd.f32 %v3626, %v3695
    %v3697 = vpop.f32.mrf.mxu0
    %3698 = vdwg.mxu0
    %v3699 = vadd.f32 %v2463, %v3696
    %v3700 = vsel %vm468, %v3699, 0.0
    %3701 = vadd.xlane.f32.xlu0 %v3700
    %v3702 = vpop.xlane.xlu0 %3701
    %v3703 = vmul.f32 %v3702, %v546
    %v3704 = vsub.f32 %v3699, %v3703
    %v3705 = vmul.f32 %v3704, %v3704
    %v3706 = vsel %vm468, %v3705, 0.0
    %3707 = vadd.xlane.f32.xlu0 %v3706
    %v3708 = vpop.xlane.xlu0 %3707
    %v3709 = vmul.f32 %v3708, %v546
    %v3710 = vadd.f32 %v3709, 1e-05
    %v3711 = vrsqrt.pop %v3710
    %v3712 = vmul.f32 %v3704, %v3711
    %v3714 = vlaneseq
    %v3715 = vshrl.u32 %v3714, 7
    %v3716 = vsub.s32 0, %v3715
    %v3717 = vrot.slane %v2355, %v3716
    %v3719 = vmul.f32 %v3712, %v3717
    %v3721 = vlaneseq
    %v3722 = vshrl.u32 %v3721, 7
    %v3723 = vsub.s32 0, %v3722
    %v3724 = vrot.slane %v2356, %v3723
    %v3726 = vadd.f32 %v3719, %v3724
    %v3727 = vld [vmem:[%s57] sm:$0xff]
    %v3728 = vld [vmem:[%s57 + $0x8] sm:$0xff]
    %v3729 = vld [vmem:[%s57 + $0x10] sm:$0xff]
    %v3730 = vld [vmem:[%s57 + $0x18] sm:$0xff]
    %v3731 = vld [vmem:[%s59] sm:$0x3]
    %v3733 = vlaneseq
    %v3734 = vshrl.u32 %v3733, 7
    %v3735 = vsub.s32 0, %v3734
    %v3736 = vrot.slane %v3731, %v3735
    %v3737 = vlaneseq
    %v3738 = vshrl.u32 %v3737, 7
    %v3739 = vsub.s32 1, %v3738
    %v3740 = vrot.slane %v3731, %v3739
    %v3744 = vsel %vm468, %v3726, 0
    %3746 = vmatprep.subr.mxu0 0.0
    %3747 = vmatpush1.msra.mxu0 0.0
    %3748 = vmatprep.subr.mxu0 0.0
    %3749 = vmatpush1.msra.mxu0 0.0
    %3750 = vmatprep.subr.mxu0 0.0
    %3751 = vmatpush1.msra.mxu0 0.0
    %3752 = vmatprep.subr.mxu0 0.0
    %3753 = vmatpush1.msra.mxu0 0.0
    %3754 = vmatprep.subr.mxu0 0.0
    %3755 = vmatpush1.msra.mxu0 0.0
    %3756 = vmatprep.subr.mxu0 0.0
    %3757 = vmatpush1.msra.mxu0 0.0
    %3758 = vmatprep.subr.mxu0 0.0
    %3759 = vmatpush1.msra.mxu0 0.0
    %3760 = vmatprep.subr.mxu0 0.0
    %3761 = vmatpush1.msra.mxu0 0.0
    %3762 = vmatprep.subr.mxu0 0.0
    %3763 = vmatpush1.msra.mxu0 0.0
    %3764 = vmatprep.subr.mxu0 0.0
    %3765 = vmatpush1.msra.mxu0 0.0
    %3766 = vmatprep.subr.mxu0 0.0
    %3767 = vmatpush1.msra.mxu0 0.0
    %3768 = vmatprep.subr.mxu0 0.0
    %3769 = vmatpush1.msra.mxu0 0.0
    %3770 = vmatprep.subr.mxu0 0.0
    %3771 = vmatpush1.msra.mxu0 0.0
    %3772 = vmatprep.subr.mxu0 0.0
    %3773 = vmatpush1.msra.mxu0 0.0
    %3774 = vmatprep.subr.mxu0 %v3730
    %3775 = vmatpush1.msra.mxu0 %v3729
    %3776 = vmatprep.subr.mxu0 %v3728
    %3777 = vmatpush1.msra.mxu0 %v3727
    %3778 = vmatprep.subr.mxu0 0.0
    %3779 = vmatpush2.msra.mxu0 0.0
    %3780 = vmatprep.subr.mxu0 0.0
    %3781 = vmatpush2.msra.mxu0 0.0
    %3782 = vmatprep.subr.mxu0 0.0
    %3783 = vmatpush2.msra.mxu0 0.0
    %3784 = vmatprep.subr.mxu0 0.0
    %3785 = vmatpush2.msra.mxu0 0.0
    %3786 = vmatprep.subr.mxu0 0.0
    %3787 = vmatpush2.msra.mxu0 0.0
    %3788 = vmatprep.subr.mxu0 0.0
    %3789 = vmatpush2.msra.mxu0 0.0
    %3790 = vmatprep.subr.mxu0 0.0
    %3791 = vmatpush2.msra.mxu0 0.0
    %3792 = vmatprep.subr.mxu0 0.0
    %3793 = vmatpush2.msra.mxu0 0.0
    %3794 = vmatprep.subr.mxu0 0.0
    %3795 = vmatpush2.msra.mxu0 0.0
    %3796 = vmatprep.subr.mxu0 0.0
    %3797 = vmatpush2.msra.mxu0 0.0
    %3798 = vmatprep.subr.mxu0 0.0
    %3799 = vmatpush2.msra.mxu0 0.0
    %3800 = vmatprep.subr.mxu0 0.0
    %3801 = vmatpush2.msra.mxu0 0.0
    %3802 = vmatprep.subr.mxu0 0.0
    %3803 = vmatpush2.msra.mxu0 0.0
    %3804 = vmatprep.subr.mxu0 0.0
    %3805 = vmatpush2.msra.mxu0 0.0
    %3806 = vmatprep.subr.mxu0 0.0
    %3807 = vmatpush2.msra.mxu0 0.0
    %3808 = vmatprep.subr.mxu0 0.0
    %3809 = vmatpush2.msra.mxu0 0.0
    %3810 = vmatprep.mubr.f32.mxu0 0.0
    %3811 = vmatmul.mubr.f32.gmra.mxu0 %v3744
    %v3812 = vpop.f32.mrf.mxu0
    %v3813 = vadd.f32 %v3736, %v3812
    %v3814 = vpop.f32.mrf.mxu0
    %v3815 = vadd.f32 %v3740, %v3814
    %3816 = vdwg.mxu0
    %v3817 = vxor.u32 %v3813, 2147483648
    %v3818 = vmul.f32 %v3817, 1.442695
    %v3819 = vpow.pop %v3818
    %v3820 = vadd.f32 %v3819, 1.0
    %v3821 = vrcp.pop %v3820
    %v3822 = vmul.f32 1.0, %v3821
    %v3823 = vtanh.pop %v3813
    %v3824 = vxor.u32 %v3815, 2147483648
    %v3825 = vmul.f32 %v3824, 1.442695
    %v3826 = vpow.pop %v3825
    %v3827 = vadd.f32 %v3826, 1.0
    %v3828 = vrcp.pop %v3827
    %v3829 = vmul.f32 1.0, %v3828
    %3831 = vrot.lane.b32.xlu0 %v3823, 64
    %v3832 = vpop.permute.xlu0 %3831
    %v3834 = vmul.f32 %v3822, %v3832
    %v3835 = vtanh.pop %v3834
    %v3836 = vmul.f32 %v3829, %v3835
    %v3837 = vld [vmem:[%s61] sm:$0xff]
    %v3838 = vld [vmem:[%s61 + $0x8] sm:$0xff]
    %v3839 = vld [vmem:[%s61 + $0x10] sm:$0xff]
    %v3840 = vld [vmem:[%s61 + $0x18] sm:$0xff]
    %v3841 = vld [vmem:[%s61 + $0x20] sm:$0xff]
    %v3842 = vld [vmem:[%s61 + $0x28] sm:$0xff]
    %v3843 = vld [vmem:[%s61 + $0x30] sm:$0xff]
    %v3844 = vld [vmem:[%s61 + $0x38] sm:$0xff]
    %v3845 = vld [vmem:[%s63] sm:$0x1]
    %v3847 = vlaneseq
    %v3848 = vshrl.u32 %v3847, 7
    %v3849 = vsub.s32 0, %v3848
    %v3850 = vrot.slane %v3845, %v3849
    %v3853 = vsel %vm1959, %v3836, 0
    %3855 = vmatprep.subr.mxu0 0.0
    %3856 = vmatpush1.msra.mxu0 0.0
    %3857 = vmatprep.subr.mxu0 0.0
    %3858 = vmatpush1.msra.mxu0 0.0
    %3859 = vmatprep.subr.mxu0 0.0
    %3860 = vmatpush1.msra.mxu0 0.0
    %3861 = vmatprep.subr.mxu0 0.0
    %3862 = vmatpush1.msra.mxu0 0.0
    %3863 = vmatprep.subr.mxu0 0.0
    %3864 = vmatpush1.msra.mxu0 0.0
    %3865 = vmatprep.subr.mxu0 0.0
    %3866 = vmatpush1.msra.mxu0 0.0
    %3867 = vmatprep.subr.mxu0 0.0
    %3868 = vmatpush1.msra.mxu0 0.0
    %3869 = vmatprep.subr.mxu0 0.0
    %3870 = vmatpush1.msra.mxu0 0.0
    %3871 = vmatprep.subr.mxu0 0.0
    %3872 = vmatpush1.msra.mxu0 %v3844
    %3873 = vmatprep.subr.mxu0 0.0
    %3874 = vmatpush1.msra.mxu0 %v3843
    %3875 = vmatprep.subr.mxu0 0.0
    %3876 = vmatpush1.msra.mxu0 %v3842
    %3877 = vmatprep.subr.mxu0 0.0
    %3878 = vmatpush1.msra.mxu0 %v3841
    %3879 = vmatprep.subr.mxu0 0.0
    %3880 = vmatpush1.msra.mxu0 %v3840
    %3881 = vmatprep.subr.mxu0 0.0
    %3882 = vmatpush1.msra.mxu0 %v3839
    %3883 = vmatprep.subr.mxu0 0.0
    %3884 = vmatpush1.msra.mxu0 %v3838
    %3885 = vmatprep.subr.mxu0 0.0
    %3886 = vmatpush1.msra.mxu0 %v3837
    %3887 = vmatprep.subr.mxu0 0.0
    %3888 = vmatpush2.msra.mxu0 0.0
    %3889 = vmatprep.subr.mxu0 0.0
    %3890 = vmatpush2.msra.mxu0 0.0
    %3891 = vmatprep.subr.mxu0 0.0
    %3892 = vmatpush2.msra.mxu0 0.0
    %3893 = vmatprep.subr.mxu0 0.0
    %3894 = vmatpush2.msra.mxu0 0.0
    %3895 = vmatprep.subr.mxu0 0.0
    %3896 = vmatpush2.msra.mxu0 0.0
    %3897 = vmatprep.subr.mxu0 0.0
    %3898 = vmatpush2.msra.mxu0 0.0
    %3899 = vmatprep.subr.mxu0 0.0
    %3900 = vmatpush2.msra.mxu0 0.0
    %3901 = vmatprep.subr.mxu0 0.0
    %3902 = vmatpush2.msra.mxu0 0.0
    %3903 = vmatprep.subr.mxu0 0.0
    %3904 = vmatpush2.msra.mxu0 0.0
    %3905 = vmatprep.subr.mxu0 0.0
    %3906 = vmatpush2.msra.mxu0 0.0
    %3907 = vmatprep.subr.mxu0 0.0
    %3908 = vmatpush2.msra.mxu0 0.0
    %3909 = vmatprep.subr.mxu0 0.0
    %3910 = vmatpush2.msra.mxu0 0.0
    %3911 = vmatprep.subr.mxu0 0.0
    %3912 = vmatpush2.msra.mxu0 0.0
    %3913 = vmatprep.subr.mxu0 0.0
    %3914 = vmatpush2.msra.mxu0 0.0
    %3915 = vmatprep.subr.mxu0 0.0
    %3916 = vmatpush2.msra.mxu0 0.0
    %3917 = vmatprep.subr.mxu0 0.0
    %3918 = vmatpush2.msra.mxu0 0.0
    %3919 = vmatprep.mubr.f32.mxu0 0.0
    %3920 = vmatmul.mubr.f32.gmra.mxu0 %v3853
    %v3921 = vpop.f32.mrf.mxu0
    %v3922 = vadd.f32 %v3850, %v3921
    %v3923 = vpop.f32.mrf.mxu0
    %3924 = vdwg.mxu0
    %v3925 = vxor.u32 %v3922, 2147483648
    %v3926 = vmul.f32 %v3925, 1.442695
    %v3927 = vpow.pop %v3926
    %v3928 = vadd.f32 %v3927, 1.0
    %v3929 = vrcp.pop %v3928
    %v3930 = vmul.f32 1.0, %v3929
    %v3931 = vtanh.pop %v3922
    %3933 = vrot.lane.b32.xlu0 %v3931, 96
    %v3934 = vpop.permute.xlu0 %3933
    %v3936 = vmul.f32 %v3930, %v3934
    %v3937 = vtanh.pop %v3936
    %3939 = vrot.lane.b32.xlu0 %v3937, 64
    %v3940 = vpop.permute.xlu0 %3939
    %v3942 = vmul.f32 %v3930, %v3940
    %v3943 = vld [vmem:[%s65] sm:$0xff]
    %v3944 = vld [vmem:[%s65 + $0x8] sm:$0xff]
    %v3945 = vld [vmem:[%s65 + $0x10] sm:$0xff]
    %v3946 = vld [vmem:[%s65 + $0x18] sm:$0xff]
    %v3947 = vld [vmem:[%s65 + $0x20] sm:$0xff]
    %v3948 = vld [vmem:[%s65 + $0x28] sm:$0xff]
    %v3949 = vld [vmem:[%s65 + $0x30] sm:$0xff]
    %v3950 = vld [vmem:[%s65 + $0x38] sm:$0xff]
    %v3951 = vld [vmem:[%s67] sm:$0x1]
    %v3952 = vld [vmem:[%s69] sm:$0xff]
    %v3953 = vld [vmem:[%s69 + $0x8] sm:$0xff]
    %v3954 = vld [vmem:[%s69 + $0x10] sm:$0xff]
    %v3955 = vld [vmem:[%s69 + $0x18] sm:$0xff]
    %v3956 = vld [vmem:[%s71] sm:$0x1]
    %3958 = vrot.lane.b32.xlu0 %v2050, 64
    %v3959 = vpop.permute.xlu0 %3958
    %vm3961 = vcmask 261120
    %3962 = vst.msk [vmem:[#allocation2] sm:$0xff] %vm3961, %v3959
    %3964 = vrot.lane.b32.xlu0 %v3942, 96
    %v3965 = vpop.permute.xlu0 %3964
    %vm3967 = vcmask 523520
    %3968 = vst.msk [vmem:[#allocation2] sm:$0xff] %vm3967, %v3965
    %3969 = vrot.lane.b32.xlu0 %v3942, 64
    %v3970 = vpop.permute.xlu0 %3969
    %v3971 = vsel %vm3961, %v3970, 0
    %3973 = vmatprep.subr.mxu0 0.0
    %3974 = vmatpush1.msra.mxu0 0.0
    %3975 = vmatprep.subr.mxu0 0.0
    %3976 = vmatpush1.msra.mxu0 0.0
    %3977 = vmatprep.subr.mxu0 0.0
    %3978 = vmatpush1.msra.mxu0 0.0
    %3979 = vmatprep.subr.mxu0 0.0
    %3980 = vmatpush1.msra.mxu0 0.0
    %3981 = vmatprep.subr.mxu0 0.0
    %3982 = vmatpush1.msra.mxu0 0.0
    %3983 = vmatprep.subr.mxu0 0.0
    %3984 = vmatpush1.msra.mxu0 0.0
    %3985 = vmatprep.subr.mxu0 0.0
    %3986 = vmatpush1.msra.mxu0 0.0
    %3987 = vmatprep.subr.mxu0 0.0
    %3988 = vmatpush1.msra.mxu0 0.0
    %3989 = vmatprep.subr.mxu0 0.0
    %3990 = vmatpush1.msra.mxu0 0.0
    %3991 = vmatprep.subr.mxu0 0.0
    %3992 = vmatpush1.msra.mxu0 0.0
    %3993 = vmatprep.subr.mxu0 0.0
    %3994 = vmatpush1.msra.mxu0 0.0
    %3995 = vmatprep.subr.mxu0 0.0
    %3996 = vmatpush1.msra.mxu0 0.0
    %3997 = vmatprep.subr.mxu0 0.0
    %3998 = vmatpush1.msra.mxu0 %v3950
    %3999 = vmatprep.subr.mxu0 0.0
    %4000 = vmatpush1.msra.mxu0 %v3949
    %4001 = vmatprep.subr.mxu0 0.0
    %4002 = vmatpush1.msra.mxu0 %v3948
    %4003 = vmatprep.subr.mxu0 0.0
    %4004 = vmatpush1.msra.mxu0 %v3947
    %4005 = vmatprep.subr.mxu0 0.0
    %4006 = vmatpush2.msra.mxu0 0.0
    %4007 = vmatprep.subr.mxu0 0.0
    %4008 = vmatpush2.msra.mxu0 0.0
    %4009 = vmatprep.subr.mxu0 0.0
    %4010 = vmatpush2.msra.mxu0 0.0
    %4011 = vmatprep.subr.mxu0 0.0
    %4012 = vmatpush2.msra.mxu0 0.0
    %4013 = vmatprep.subr.mxu0 0.0
    %4014 = vmatpush2.msra.mxu0 0.0
    %4015 = vmatprep.subr.mxu0 0.0
    %4016 = vmatpush2.msra.mxu0 0.0
    %4017 = vmatprep.subr.mxu0 0.0
    %4018 = vmatpush2.msra.mxu0 0.0
    %4019 = vmatprep.subr.mxu0 0.0
    %4020 = vmatpush2.msra.mxu0 0.0
    %4021 = vmatprep.subr.mxu0 0.0
    %4022 = vmatpush2.msra.mxu0 0.0
    %4023 = vmatprep.subr.mxu0 0.0
    %4024 = vmatpush2.msra.mxu0 0.0
    %4025 = vmatprep.subr.mxu0 0.0
    %4026 = vmatpush2.msra.mxu0 0.0
    %4027 = vmatprep.subr.mxu0 0.0
    %4028 = vmatpush2.msra.mxu0 0.0
    %4029 = vmatprep.subr.mxu0 0.0
    %4030 = vmatpush2.msra.mxu0 0.0
    %4031 = vmatprep.subr.mxu0 0.0
    %4032 = vmatpush2.msra.mxu0 0.0
    %4033 = vmatprep.subr.mxu0 0.0
    %4034 = vmatpush2.msra.mxu0 0.0
    %4035 = vmatprep.subr.mxu0 0.0
    %4036 = vmatpush2.msra.mxu0 0.0
    %4037 = vmatprep.mubr.f32.mxu0 0.0
    %4038 = vmatmul.mubr.f32.gmra.mxu0 %v3971
    %v4039 = vpop.f32.mrf.mxu0
    %v4040 = vadd.f32 0.0, %v4039
    %v4041 = vpop.f32.mrf.mxu0
    %4042 = vdwg.mxu0
    %v4043 = vsel %vm3961, %v3959, 0
    %4045 = vmatprep.subr.mxu0 0.0
    %4046 = vmatpush1.msra.mxu0 0.0
    %4047 = vmatprep.subr.mxu0 0.0
    %4048 = vmatpush1.msra.mxu0 0.0
    %4049 = vmatprep.subr.mxu0 0.0
    %4050 = vmatpush1.msra.mxu0 0.0
    %4051 = vmatprep.subr.mxu0 0.0
    %4052 = vmatpush1.msra.mxu0 0.0
    %4053 = vmatprep.subr.mxu0 0.0
    %4054 = vmatpush1.msra.mxu0 0.0
    %4055 = vmatprep.subr.mxu0 0.0
    %4056 = vmatpush1.msra.mxu0 0.0
    %4057 = vmatprep.subr.mxu0 0.0
    %4058 = vmatpush1.msra.mxu0 0.0
    %4059 = vmatprep.subr.mxu0 0.0
    %4060 = vmatpush1.msra.mxu0 0.0
    %4061 = vmatprep.subr.mxu0 0.0
    %4062 = vmatpush1.msra.mxu0 0.0
    %4063 = vmatprep.subr.mxu0 0.0
    %4064 = vmatpush1.msra.mxu0 0.0
    %4065 = vmatprep.subr.mxu0 0.0
    %4066 = vmatpush1.msra.mxu0 0.0
    %4067 = vmatprep.subr.mxu0 0.0
    %4068 = vmatpush1.msra.mxu0 0.0
    %4069 = vmatprep.subr.mxu0 0.0
    %4070 = vmatpush1.msra.mxu0 %v3946
    %4071 = vmatprep.subr.mxu0 0.0
    %4072 = vmatpush1.msra.mxu0 %v3945
    %4073 = vmatprep.subr.mxu0 0.0
    %4074 = vmatpush1.msra.mxu0 %v3944
    %4075 = vmatprep.subr.mxu0 0.0
    %4076 = vmatpush1.msra.mxu0 %v3943
    %4077 = vmatprep.subr.mxu0 0.0
    %4078 = vmatpush2.msra.mxu0 0.0
    %4079 = vmatprep.subr.mxu0 0.0
    %4080 = vmatpush2.msra.mxu0 0.0
    %4081 = vmatprep.subr.mxu0 0.0
    %4082 = vmatpush2.msra.mxu0 0.0
    %4083 = vmatprep.subr.mxu0 0.0
    %4084 = vmatpush2.msra.mxu0 0.0
    %4085 = vmatprep.subr.mxu0 0.0
    %4086 = vmatpush2.msra.mxu0 0.0
    %4087 = vmatprep.subr.mxu0 0.0
    %4088 = vmatpush2.msra.mxu0 0.0
    %4089 = vmatprep.subr.mxu0 0.0
    %4090 = vmatpush2.msra.mxu0 0.0
    %4091 = vmatprep.subr.mxu0 0.0
    %4092 = vmatpush2.msra.mxu0 0.0
    %4093 = vmatprep.subr.mxu0 0.0
    %4094 = vmatpush2.msra.mxu0 0.0
    %4095 = vmatprep.subr.mxu0 0.0
    %4096 = vmatpush2.msra.mxu0 0.0
    %4097 = vmatprep.subr.mxu0 0.0
    %4098 = vmatpush2.msra.mxu0 0.0
    %4099 = vmatprep.subr.mxu0 0.0
    %4100 = vmatpush2.msra.mxu0 0.0
    %4101 = vmatprep.subr.mxu0 0.0
    %4102 = vmatpush2.msra.mxu0 0.0
    %4103 = vmatprep.subr.mxu0 0.0
    %4104 = vmatpush2.msra.mxu0 0.0
    %4105 = vmatprep.subr.mxu0 0.0
    %4106 = vmatpush2.msra.mxu0 0.0
    %4107 = vmatprep.subr.mxu0 0.0
    %4108 = vmatpush2.msra.mxu0 0.0
    %4109 = vmatprep.mubr.f32.mxu0 0.0
    %4110 = vmatmul.mubr.f32.gmra.mxu0 %v4043
    %v4111 = vpop.f32.mrf.mxu0
    %v4112 = vadd.f32 %v4040, %v4111
    %v4113 = vpop.f32.mrf.mxu0
    %4114 = vdwg.mxu0
    %v4116 = vlaneseq
    %v4117 = vshrl.u32 %v4116, 7
    %v4118 = vsub.s32 0, %v4117
    %v4119 = vrot.slane %v3951, %v4118
    %v4121 = vadd.f32 %v4112, %v4119
    %v4123 = vlaneseq
    %v4124 = vshrl.u32 %v4123, 7
    %v4125 = vsub.s32 0, %v4124
    %v4126 = vrot.slane %v3956, %v4125
    %v4129 = vsel %vm3961, %v4121, 0
    %4131 = vmatprep.subr.mxu0 0.0
    %4132 = vmatpush1.msra.mxu0 0.0
    %4133 = vmatprep.subr.mxu0 0.0
    %4134 = vmatpush1.msra.mxu0 0.0
    %4135 = vmatprep.subr.mxu0 0.0
    %4136 = vmatpush1.msra.mxu0 0.0
    %4137 = vmatprep.subr.mxu0 0.0
    %4138 = vmatpush1.msra.mxu0 0.0
    %4139 = vmatprep.subr.mxu0 0.0
    %4140 = vmatpush1.msra.mxu0 0.0
    %4141 = vmatprep.subr.mxu0 0.0
    %4142 = vmatpush1.msra.mxu0 0.0
    %4143 = vmatprep.subr.mxu0 0.0
    %4144 = vmatpush1.msra.mxu0 0.0
    %4145 = vmatprep.subr.mxu0 0.0
    %4146 = vmatpush1.msra.mxu0 0.0
    %4147 = vmatprep.subr.mxu0 0.0
    %4148 = vmatpush1.msra.mxu0 0.0
    %4149 = vmatprep.subr.mxu0 0.0
    %4150 = vmatpush1.msra.mxu0 0.0
    %4151 = vmatprep.subr.mxu0 0.0
    %4152 = vmatpush1.msra.mxu0 0.0
    %4153 = vmatprep.subr.mxu0 0.0
    %4154 = vmatpush1.msra.mxu0 0.0
    %4155 = vmatprep.subr.mxu0 0.0
    %4156 = vmatpush1.msra.mxu0 %v3955
    %4157 = vmatprep.subr.mxu0 0.0
    %4158 = vmatpush1.msra.mxu0 %v3954
    %4159 = vmatprep.subr.mxu0 0.0
    %4160 = vmatpush1.msra.mxu0 %v3953
    %4161 = vmatprep.subr.mxu0 0.0
    %4162 = vmatpush1.msra.mxu0 %v3952
    %4163 = vmatprep.subr.mxu0 0.0
    %4164 = vmatpush2.msra.mxu0 0.0
    %4165 = vmatprep.subr.mxu0 0.0
    %4166 = vmatpush2.msra.mxu0 0.0
    %4167 = vmatprep.subr.mxu0 0.0
    %4168 = vmatpush2.msra.mxu0 0.0
    %4169 = vmatprep.subr.mxu0 0.0
    %4170 = vmatpush2.msra.mxu0 0.0
    %4171 = vmatprep.subr.mxu0 0.0
    %4172 = vmatpush2.msra.mxu0 0.0
    %4173 = vmatprep.subr.mxu0 0.0
    %4174 = vmatpush2.msra.mxu0 0.0
    %4175 = vmatprep.subr.mxu0 0.0
    %4176 = vmatpush2.msra.mxu0 0.0
    %4177 = vmatprep.subr.mxu0 0.0
    %4178 = vmatpush2.msra.mxu0 0.0
    %4179 = vmatprep.subr.mxu0 0.0
    %4180 = vmatpush2.msra.mxu0 0.0
    %4181 = vmatprep.subr.mxu0 0.0
    %4182 = vmatpush2.msra.mxu0 0.0
    %4183 = vmatprep.subr.mxu0 0.0
    %4184 = vmatpush2.msra.mxu0 0.0
    %4185 = vmatprep.subr.mxu0 0.0
    %4186 = vmatpush2.msra.mxu0 0.0
    %4187 = vmatprep.subr.mxu0 0.0
    %4188 = vmatpush2.msra.mxu0 0.0
    %4189 = vmatprep.subr.mxu0 0.0
    %4190 = vmatpush2.msra.mxu0 0.0
    %4191 = vmatprep.subr.mxu0 0.0
    %4192 = vmatpush2.msra.mxu0 0.0
    %4193 = vmatprep.subr.mxu0 0.0
    %4194 = vmatpush2.msra.mxu0 0.0
    %4195 = vmatprep.mubr.f32.mxu0 0.0
    %4196 = vmatmul.mubr.f32.gmra.mxu0 %v4129
    %v4197 = vpop.f32.mrf.mxu0
    %v4198 = vadd.f32 %v4126, %v4197
    %v4199 = vpop.f32.mrf.mxu0
    %4200 = vdwg.mxu0
    %vm4201 = vcmask 31744
    %4202 = vst.msk [vmem:[%s73] sm:$0xff] %vm4201, %v4198
    // Predicated region
    $region146: #{tpu_custom_call.1} parent=1 // pred_check
      _
    $region147: #{tpu_custom_call.1} parent=1 // pred_check_branch
      %4204 = sbr.rel (0) target = $region149
    $region148: #{tpu_custom_call.1} parent=1 // pred_region
      _
    $region149: #{tpu_custom_call.1} parent=1 // pred_fallthru
      _
    // Predicated region
    $region150: #{tpu_custom_call.1} parent=1 // pred_check
      _
    $region151: #{tpu_custom_call.1} parent=1 // pred_check_branch
      %4206 = sbr.rel (0) target = $region153
    $region152: #{tpu_custom_call.1} parent=1 // pred_region
      %s4208 = ssub.s32 128, 128
      %4209 = vsyncadd [#allocation3], %s4208
      %s4211 = sshll.u32 [#allocation2], 4
      %s4212 = int_to_ptr.vmem [resolvable:$true] %s4211
      %4214 = dma.vmem_to_hbm [thread:$0]  %s4212, 128, %s75, [#allocation3]
    $region153: #{tpu_custom_call.1} parent=1 // pred_fallthru
      _
    // Predicated region
    $region154: #{tpu_custom_call.1} parent=1 // pred_check
      _
    $region155: #{tpu_custom_call.1} parent=1 // pred_check_branch
      %4216 = sbr.rel (0) target = $region157
    $region156: #{tpu_custom_call.1} parent=1 // pred_region
      _
    $region157: #{tpu_custom_call.1} parent=1 // pred_fallthru
      _
    // Predicated region
    $region158: #{tpu_custom_call.1} parent=1 // pred_check
      _
    $region159: #{tpu_custom_call.1} parent=1 // pred_check_branch
      %4218 = sbr.rel (0) target = $region161
    $region160: #{tpu_custom_call.1} parent=1 // pred_region
      %4219 = dma.done [#allocation3], 128
    $region161: #{tpu_custom_call.1} parent=1 // pred_fallthru
      _
    %4220 = vsyncpa [#allocation3], 1

</llo_original>
